<compile_context>
chip_gen: v6e
topology: v6e:2x2x1
jax: 0.10.0
libtpu: 0.0.40
codegen_flags: <defaults>
</compile_context>

<pallas_src>
import math
from functools import partial

import jax
import jax.numpy as jnp
from jax import lax
from jax.experimental import pallas as pl
from jax.experimental.pallas import tpu as pltpu

LN_EPS_TORCH = 1e-5    # nn.LayerNorm default inside nn.TransformerEncoderLayer
LN_EPS_SANN = 1e-12    # custom LayerNorm in SANN

# bf16 MXU operands (f32 accumulation) for v6e/v7x native throughput; weights are cast
# ONCE at init, activations are cast right before each matmul.  Use jnp.float32 here if
# strict numerical parity with the f32 PyTorch reference is required.
MXU_DTYPE = jnp.bfloat16


# ----------------------------------------------------------------------------- helpers
def _layernorm(x, gamma, beta, eps):
    mean = jnp.mean(x, axis=-1, keepdims=True)
    var = jnp.mean((x - mean) ** 2, axis=-1, keepdims=True)
    return gamma * (x - mean) * lax.rsqrt(var + eps) + beta


def _gelu_exact(x):
    # exact (erf-based) GELU, matching torch.nn.functional.gelu default
    return 0.5 * x * (1.0 + lax.erf(x / math.sqrt(2.0)))


# ----------------------------------------------------------------------------- fused kernel
def sann_kernel(x_ref, mask_ref,
                ln1g_ref, ln1b_ref, wqkv_ref, bqkv_ref, wo_ref, bo_ref,
                ln2g_ref, ln2b_ref, w1_ref, b1_ref, w2_ref, b2_ref,
                ng_ref, nb_ref, fc1w_ref, fc1b_ref, fc2w_ref, fc2b_ref,
                fc3w_ref, fc3b_ref, o_ref, *, num_heads, num_layers):
    H = num_heads
    Bb, T, D = x_ref.shape
    Dh = D // H
    M = Bb * T          # matmul M-dimension: whole batch block flattened
    HB = H * Bb         # attention batch dimension (head x batch-block)

    x = x_ref[...].reshape(M, D)                                   # (M, D) f32

    # additive key-padding bias, hoisted out of the layer/head loops: (H*Bb, 1, T)
    mbias = mask_ref[...].reshape(1, Bb, 1, T) * (-1e30)
    key_bias = jnp.broadcast_to(mbias, (H, Bb, 1, T)).reshape(HB, 1, T)

    for l in range(num_layers):
        # ---- self-attention block (norm_first) ----
        h = _layernorm(x, ln1g_ref[l], ln1b_ref[l], LN_EPS_TORCH)  # (M, D)
        # fused Q/K/V projection: one (M, D) x (D, 3D) matmul (scale folded into W_q)
        qkv = jnp.dot(h.astype(MXU_DTYPE), wqkv_ref[l],
                      preferred_element_type=jnp.float32) + bqkv_ref[l]     # (M, 3D)
        qkv3 = qkv.reshape(Bb, T, 3 * D)

        # head split: static lane slices stacked into a single leading batch axis
        q = jnp.stack([qkv3[:, :, i * Dh:(i + 1) * Dh]
                       for i in range(H)], axis=0).reshape(HB, T, Dh)
        k = jnp.stack([qkv3[:, :, D + i * Dh:D + (i + 1) * Dh]
                       for i in range(H)], axis=0).reshape(HB, T, Dh)
        v = jnp.stack([qkv3[:, :, 2 * D + i * Dh:2 * D + (i + 1) * Dh]
                       for i in range(H)], axis=0).reshape(HB, T, Dh)

        # batched attention over all (head, batch-block) pairs at once
        scores = jnp.einsum('bqd,bkd->bqk', q.astype(MXU_DTYPE), k.astype(MXU_DTYPE),
                            preferred_element_type=jnp.float32) + key_bias  # (HB, T, T)
        scores = scores - jnp.max(scores, axis=-1, keepdims=True)
        p = jnp.exp(scores)
        p = p * pl.reciprocal(jnp.sum(p, axis=-1, keepdims=True), approx=True)

        ctx = jnp.einsum('bqk,bkd->bqd', p.astype(MXU_DTYPE), v.astype(MXU_DTYPE),
                         preferred_element_type=jnp.float32)                # (HB, T, Dh)

        # fuse the head reduction into the output projection: lane-concat heads back to
        # (M, D) and do ONE (D, D) matmul (K = H*Dh) instead of H tiny matmuls + sum.
        ctx = ctx.reshape(H, Bb, T, Dh)
        ctx = jnp.concatenate([ctx[i] for i in range(H)], axis=-1)          # (Bb, T, D)
        attn = jnp.dot(ctx.reshape(M, D).astype(MXU_DTYPE), wo_ref[l],
                       preferred_element_type=jnp.float32) + bo_ref[l]      # (M, D)
        x = x + attn

        # ---- feed-forward block (norm_first, ReLU activation) ----
        h2 = _layernorm(x, ln2g_ref[l], ln2b_ref[l], LN_EPS_TORCH)
        ff = jnp.dot(h2.astype(MXU_DTYPE), w1_ref[l],
                     preferred_element_type=jnp.float32) + b1_ref[l]
        ff = jnp.maximum(ff, 0.0)
        ff = jnp.dot(ff.astype(MXU_DTYPE), w2_ref[l],
                     preferred_element_type=jnp.float32) + b2_ref[l]
        x = x + ff

    # ---- classification head ----
    x = _layernorm(x, ng_ref[...], nb_ref[...], LN_EPS_SANN)       # custom LayerNorm
    x = jnp.mean(x.reshape(Bb, T, D), axis=1)                      # (Bb, D) mean over subtrees
    residual = x
    h = jnp.dot(x.astype(MXU_DTYPE), fc1w_ref[...],
                preferred_element_type=jnp.float32) + fc1b_ref[...]
    x = _gelu_exact(h) + residual
    h = jnp.dot(x.astype(MXU_DTYPE), fc2w_ref[...],
                preferred_element_type=jnp.float32) + fc2b_ref[...]
    h = _gelu_exact(h)
    logits = jnp.dot(h.astype(MXU_DTYPE), fc3w_ref[...],
                     preferred_element_type=jnp.float32) + fc3b_ref[...]    # (Bb, 2)
    o_ref[0] = logits


# ----------------------------------------------------------------------------- model glue
def positional_encoding(max_len, d_model):
    pos = jnp.arange(max_len, dtype=jnp.float32)[:, None]
    div = jnp.exp(jnp.arange(0, d_model, 2, dtype=jnp.float32)
                  * (-math.log(10000.0) / d_model))
    pe = jnp.zeros((max_len, d_model), jnp.float32)
    pe = pe.at[:, 0::2].set(jnp.sin(pos * div))
    pe = pe.at[:, 1::2].set(jnp.cos(pos * div))
    return pe[None]                                                # (1, max_len, D)


def init_params(key, *, vocab, D, H, L, max_len=200):
    assert D % H == 0
    Dh = D // H
    scale_q = 1.0 / math.sqrt(Dh)                                  # folded into W_q / b_q
    ks = iter(jax.random.split(key, 1 + 6 * L + 3))

    def dense(shape, fan_in):
        return jax.random.normal(next(ks), shape, jnp.float32) * (fan_in ** -0.5)

    emb = jax.random.normal(next(ks), (vocab, D), jnp.float32) * (D ** -0.5)
    emb = emb.at[0].set(0.0)                                       # padding_idx=0

    wqkv, wo, w1, w2 = [], [], [], []
    for _ in range(L):
        wq, wk, wv = dense((D, D), D), dense((D, D), D), dense((D, D), D)
        wqkv.append(jnp.concatenate([wq * scale_q, wk, wv], axis=1))   # fused (D, 3D)
        wo.append(dense((D, D), D))                                    # plain (D, D) out-proj
        w1.append(dense((D, 4 * D), D))
        w2.append(dense((4 * D, D), 4 * D))

    bqkv = jnp.zeros((L, 1, 3 * D))
    bqkv = bqkv.at[:, :, :D].multiply(scale_q)    # keep scale-folding exact if biases change

    layers = dict(
        ln1_g=jnp.ones((L, 1, D)), ln1_b=jnp.zeros((L, 1, D)),
        wqkv=jnp.stack(wqkv).astype(MXU_DTYPE), bqkv=bqkv,
        wo=jnp.stack(wo).astype(MXU_DTYPE), bo=jnp.zeros((L, 1, D)),
        ln2_g=jnp.ones((L, 1, D)), ln2_b=jnp.zeros((L, 1, D)),
        w1=jnp.stack(w1).astype(MXU_DTYPE), b1=jnp.zeros((L, 1, 4 * D)),
        w2=jnp.stack(w2).astype(MXU_DTYPE), b2=jnp.zeros((L, 1, D)),
    )
    head = dict(
        norm_g=jnp.ones((1, D)), norm_b=jnp.zeros((1, D)),
        fc1_w=dense((D, D), D).astype(MXU_DTYPE), fc1_b=jnp.zeros((1, D)),
        fc2_w=dense((D, D // 2), D).astype(MXU_DTYPE), fc2_b=jnp.zeros((1, D // 2)),
        fc3_w=dense((D // 2, 2), D // 2).astype(MXU_DTYPE), fc3_b=jnp.zeros((1, 2)),
    )
    return dict(node_embedding=emb,
                pos_encoding=positional_encoding(max_len, D),
                layers=layers, head=head, num_heads=H, num_layers=L)


def sann_forward(subtrees, params):
    B, T, N = subtrees.shape
    H, L = params['num_heads'], params['num_layers']
    emb_tab = params['node_embedding']
    D = emb_tab.shape[1]

    # ---- batch blocking: B_BLK items per grid step, >=2 steps when B >= 2 (v7x 2 TCs) ----
    B_BLK = max(1, min(16, -(-B // 2)))
    n_blk = -(-B // B_BLK)
    B_pad = n_blk * B_BLK
    if B_pad != B:           # pad with all-padding subtrees (token 0); sliced off below
        subtrees = jnp.pad(subtrees, ((0, B_pad - B), (0, 0), (0, 0)))

    # ---- glue (XLA): embedding gather + mean-over-nodes pooling + positional encoding ----
    subtree_emb = emb_tab[subtrees].mean(axis=2) + params['pos_encoding'][:, :T, :]
    subtree_emb = subtree_emb.astype(jnp.float32)                  # (B_pad, T, D)
    pad_mask = (jnp.sum(subtrees, axis=-1) == 0).astype(jnp.float32).reshape(B_pad, 1, T)

    lp, hp = params['layers'], params['head']
    args = (subtree_emb, pad_mask,
            lp['ln1_g'], lp['ln1_b'], lp['wqkv'], lp['bqkv'], lp['wo'], lp['bo'],
            lp['ln2_g'], lp['ln2_b'], lp['w1'], lp['b1'], lp['w2'], lp['b2'],
            hp['norm_g'], hp['norm_b'], hp['fc1_w'], hp['fc1_b'],
            hp['fc2_w'], hp['fc2_b'], hp['fc3_w'], hp['fc3_b'])

    def batch_spec(shape):                 # blocked (size B_BLK) over batch, full otherwise
        nd = len(shape)
        return pl.BlockSpec((B_BLK,) + tuple(shape[1:]),
                            lambda b, _n=nd: (b,) + (0,) * (_n - 1))

    def shared_spec(shape):                # full-array block, constant index -> DMA'd once
        nd = len(shape)
        return pl.BlockSpec(tuple(shape), lambda b, _n=nd: (0,) * _n)

    in_specs = ([batch_spec(subtree_emb.shape), batch_spec(pad_mask.shape)]
                + [shared_spec(a.shape) for a in args[2:]])

    # explicit scoped-VMEM budget: resident weights + double-buffered activation blocks,
    # clamped to the v7x 64 MiB physical ceiling (v5e default scoped limit is only 16 MiB)
    weight_bytes = sum(int(a.size) * a.dtype.itemsize for a in args[2:])
    act_bytes = B_BLK * T * (D + 1) * 4
    vmem_limit = int(min(64 << 20, max(16 << 20, 2 * weight_bytes + 8 * act_bytes + (4 << 20))))

    out = pl.pallas_call(
        partial(sann_kernel, num_heads=H, num_layers=L),
        grid=(n_blk,),
        in_specs=in_specs,
        out_specs=pl.BlockSpec((1, B_BLK, 2), lambda b: (b, 0, 0)),
        out_shape=jax.ShapeDtypeStruct((n_blk, B_BLK, 2), jnp.float32),
        compiler_params=pltpu.CompilerParams(
            dimension_semantics=("parallel",),
            vmem_limit_bytes=vmem_limit),
    )(*args)
    return out.reshape(B_pad, 2)[:B]


# ----------------------------------------------------------------------------- main
if __name__ == "__main__":
    B, T, N = 2, 8, 6          # batch, num_subtrees (seq), nodes per subtree
    VOCAB, D, H, L = 50, 32, 4, 2

    key = jax.random.PRNGKey(0)
    k_tok, k_par = jax.random.split(key)

    subtrees = jax.random.randint(k_tok, (B, T, N), 1, VOCAB, dtype=jnp.int32)
    # make the last two subtrees of batch 0 all-padding to exercise the key-padding mask
    subtrees = subtrees.at[0, -2:, :].set(0)

    params = init_params(k_par, vocab=VOCAB, D=D, H=H, L=L)

    logits = sann_forward(subtrees, params)
    jax.block_until_ready(logits)

    assert logits.shape == (B, 2), logits.shape
    assert bool(jnp.all(jnp.isfinite(logits)))
    print("KERNEL_OK")
</pallas_src>

<mosaic_0001>
module attributes {stable_mosaic.version = 11 : i64} {
  func.func @sann_kernel(%arg0: i32, %arg1: memref<1x8x32xf32, #tpu.memory_space<vmem>>, %arg2: memref<1x1x8xf32, #tpu.memory_space<vmem>>, %arg3: memref<2x1x32xf32, #tpu.memory_space<vmem>>, %arg4: memref<2x1x32xf32, #tpu.memory_space<vmem>>, %arg5: memref<2x32x96xbf16, #tpu.memory_space<vmem>>, %arg6: memref<2x1x96xf32, #tpu.memory_space<vmem>>, %arg7: memref<2x32x32xbf16, #tpu.memory_space<vmem>>, %arg8: memref<2x1x32xf32, #tpu.memory_space<vmem>>, %arg9: memref<2x1x32xf32, #tpu.memory_space<vmem>>, %arg10: memref<2x1x32xf32, #tpu.memory_space<vmem>>, %arg11: memref<2x32x128xbf16, #tpu.memory_space<vmem>>, %arg12: memref<2x1x128xf32, #tpu.memory_space<vmem>>, %arg13: memref<2x128x32xbf16, #tpu.memory_space<vmem>>, %arg14: memref<2x1x32xf32, #tpu.memory_space<vmem>>, %arg15: memref<1x32xf32, #tpu.memory_space<vmem>>, %arg16: memref<1x32xf32, #tpu.memory_space<vmem>>, %arg17: memref<32x32xbf16, #tpu.memory_space<vmem>>, %arg18: memref<1x32xf32, #tpu.memory_space<vmem>>, %arg19: memref<32x16xbf16, #tpu.memory_space<vmem>>, %arg20: memref<1x16xf32, #tpu.memory_space<vmem>>, %arg21: memref<16x2xbf16, #tpu.memory_space<vmem>>, %arg22: memref<1x2xf32, #tpu.memory_space<vmem>>, %arg23: memref<1x1x2xf32, #tpu.memory_space<vmem>>) attributes {dimension_semantics = [#tpu.dimension_semantics<parallel>], iteration_bounds = array<i64: 2>, scalar_prefetch = 0 : i64, scratch_operands = 0 : i64, tpu.core_type = #tpu.core_type<tc>, window_params = [{transform_indices = @transform_0, window_bounds = array<i64: 1, 8, 32>}, {transform_indices = @transform_1, window_bounds = array<i64: 1, 1, 8>}, {pipeline_mode = #tpu.pipeline_mode<synchronous>, transform_indices = @transform_2, window_bounds = array<i64: 2, 1, 32>}, {pipeline_mode = #tpu.pipeline_mode<synchronous>, transform_indices = @transform_3, window_bounds = array<i64: 2, 1, 32>}, {pipeline_mode = #tpu.pipeline_mode<synchronous>, transform_indices = @transform_4, window_bounds = array<i64: 2, 32, 96>}, {pipeline_mode = #tpu.pipeline_mode<synchronous>, transform_indices = @transform_5, window_bounds = array<i64: 2, 1, 96>}, {pipeline_mode = #tpu.pipeline_mode<synchronous>, transform_indices = @transform_6, window_bounds = array<i64: 2, 32, 32>}, {pipeline_mode = #tpu.pipeline_mode<synchronous>, transform_indices = @transform_7, window_bounds = array<i64: 2, 1, 32>}, {pipeline_mode = #tpu.pipeline_mode<synchronous>, transform_indices = @transform_8, window_bounds = array<i64: 2, 1, 32>}, {pipeline_mode = #tpu.pipeline_mode<synchronous>, transform_indices = @transform_9, window_bounds = array<i64: 2, 1, 32>}, {pipeline_mode = #tpu.pipeline_mode<synchronous>, transform_indices = @transform_10, window_bounds = array<i64: 2, 32, 128>}, {pipeline_mode = #tpu.pipeline_mode<synchronous>, transform_indices = @transform_11, window_bounds = array<i64: 2, 1, 128>}, {pipeline_mode = #tpu.pipeline_mode<synchronous>, transform_indices = @transform_12, window_bounds = array<i64: 2, 128, 32>}, {pipeline_mode = #tpu.pipeline_mode<synchronous>, transform_indices = @transform_13, window_bounds = array<i64: 2, 1, 32>}, {pipeline_mode = #tpu.pipeline_mode<synchronous>, transform_indices = @transform_14, window_bounds = array<i64: 1, 32>}, {pipeline_mode = #tpu.pipeline_mode<synchronous>, transform_indices = @transform_15, window_bounds = array<i64: 1, 32>}, {pipeline_mode = #tpu.pipeline_mode<synchronous>, transform_indices = @transform_16, window_bounds = array<i64: 32, 32>}, {pipeline_mode = #tpu.pipeline_mode<synchronous>, transform_indices = @transform_17, window_bounds = array<i64: 1, 32>}, {pipeline_mode = #tpu.pipeline_mode<synchronous>, transform_indices = @transform_18, window_bounds = array<i64: 32, 16>}, {pipeline_mode = #tpu.pipeline_mode<synchronous>, transform_indices = @transform_19, window_bounds = array<i64: 1, 16>}, {pipeline_mode = #tpu.pipeline_mode<synchronous>, transform_indices = @transform_20, window_bounds = array<i64: 16, 2>}, {pipeline_mode = #tpu.pipeline_mode<synchronous>, transform_indices = @transform_21, window_bounds = array<i64: 1, 2>}, {transform_indices = @transform_22, window_bounds = array<i64: 1, 1, 2>}]} {
    %c0 = arith.constant 0 : index
    %c0_0 = arith.constant 0 : index
    %c0_1 = arith.constant 0 : index
    %0 = vector.load %arg1[%c0, %c0_0, %c0_1] : memref<1x8x32xf32, #tpu.memory_space<vmem>>, vector<1x8x32xf32>
    %1 = vector.shape_cast %0 : vector<1x8x32xf32> to vector<8x32xf32>
    %c0_2 = arith.constant 0 : index
    %c0_3 = arith.constant 0 : index
    %c0_4 = arith.constant 0 : index
    %2 = vector.load %arg2[%c0_2, %c0_3, %c0_4] : memref<1x1x8xf32, #tpu.memory_space<vmem>>, vector<1x1x8xf32>
    %3 = vector.shape_cast %2 : vector<1x1x8xf32> to vector<1x1x1x8xf32>
    %cst = arith.constant -1.000000e+30 : f32
    %4 = vector.broadcast %cst : f32 to vector<1x1x1x8xf32>
    %5 = arith.mulf %3, %4 : vector<1x1x1x8xf32>
    %6 = vector.shape_cast %5 : vector<1x1x1x8xf32> to vector<1x1x1x8xf32>
    %7 = vector.broadcast %6 : vector<1x1x1x8xf32> to vector<4x1x1x8xf32>
    %8 = vector.shape_cast %7 : vector<4x1x1x8xf32> to vector<4x1x8xf32>
    %c0_5 = arith.constant 0 : index
    %c0_6 = arith.constant 0 : index
    %c0_7 = arith.constant 0 : index
    %9 = vector.load %arg3[%c0_5, %c0_6, %c0_7] : memref<2x1x32xf32, #tpu.memory_space<vmem>>, vector<1x1x32xf32>
    %10 = vector.shape_cast %9 : vector<1x1x32xf32> to vector<1x32xf32>
    %c0_8 = arith.constant 0 : index
    %c0_9 = arith.constant 0 : index
    %c0_10 = arith.constant 0 : index
    %11 = vector.load %arg4[%c0_8, %c0_9, %c0_10] : memref<2x1x32xf32, #tpu.memory_space<vmem>>, vector<1x1x32xf32>
    %12 = vector.shape_cast %11 : vector<1x1x32xf32> to vector<1x32xf32>
    %cst_11 = arith.constant dense<0.000000e+00> : vector<8xf32>
    %13 = vector.multi_reduction <add>, %1, %cst_11 [1] : vector<8x32xf32> to vector<8xf32>
    %14 = vector.shape_cast %13 : vector<8xf32> to vector<8x1xf32>
    %cst_12 = arith.constant 3.200000e+01 : f32
    %15 = vector.broadcast %cst_12 : f32 to vector<8x1xf32>
    %16 = arith.divf %14, %15 : vector<8x1xf32>
    %17 = vector.broadcast %16 : vector<8x1xf32> to vector<8x32xf32>
    %18 = arith.subf %1, %17 : vector<8x32xf32>
    %19 = arith.mulf %18, %18 : vector<8x32xf32>
    %cst_13 = arith.constant dense<0.000000e+00> : vector<8xf32>
    %20 = vector.multi_reduction <add>, %19, %cst_13 [1] : vector<8x32xf32> to vector<8xf32>
    %21 = vector.shape_cast %20 : vector<8xf32> to vector<8x1xf32>
    %cst_14 = arith.constant 3.200000e+01 : f32
    %22 = vector.broadcast %cst_14 : f32 to vector<8x1xf32>
    %23 = arith.divf %21, %22 : vector<8x1xf32>
    %24 = vector.broadcast %16 : vector<8x1xf32> to vector<8x32xf32>
    %25 = arith.subf %1, %24 : vector<8x32xf32>
    %26 = vector.broadcast %10 : vector<1x32xf32> to vector<8x32xf32>
    %27 = arith.mulf %26, %25 : vector<8x32xf32>
    %cst_15 = arith.constant 9.99999974E-6 : f32
    %28 = vector.broadcast %cst_15 : f32 to vector<8x1xf32>
    %29 = arith.addf %23, %28 : vector<8x1xf32>
    %30 = math.rsqrt %29 : vector<8x1xf32>
    %31 = vector.broadcast %30 : vector<8x1xf32> to vector<8x32xf32>
    %32 = arith.mulf %27, %31 : vector<8x32xf32>
    %33 = vector.broadcast %12 : vector<1x32xf32> to vector<8x32xf32>
    %34 = arith.addf %32, %33 : vector<8x32xf32>
    %35 = arith.truncf %34 : vector<8x32xf32> to vector<8x32xbf16>
    %c0_16 = arith.constant 0 : index
    %c0_17 = arith.constant 0 : index
    %c0_18 = arith.constant 0 : index
    %36 = vector.load %arg5[%c0_16, %c0_17, %c0_18] : memref<2x32x96xbf16, #tpu.memory_space<vmem>>, vector<1x32x96xbf16>
    %37 = vector.shape_cast %36 : vector<1x32x96xbf16> to vector<32x96xbf16>
    %cst_19 = arith.constant dense<0.000000e+00> : vector<8x96xf32>
    %38 = tpu.matmul %35, %37, %cst_19 {dimension_numbers = #tpu.dot_dimension_numbers<[1], [0], [0], [1], [0, 0, 1, 1], [], []>} : vector<8x32xbf16>, vector<32x96xbf16>, vector<8x96xf32> -> vector<8x96xf32>
    %c0_20 = arith.constant 0 : index
    %c0_21 = arith.constant 0 : index
    %c0_22 = arith.constant 0 : index
    %39 = vector.load %arg6[%c0_20, %c0_21, %c0_22] : memref<2x1x96xf32, #tpu.memory_space<vmem>>, vector<1x1x96xf32>
    %40 = vector.shape_cast %39 : vector<1x1x96xf32> to vector<1x96xf32>
    %41 = vector.broadcast %40 : vector<1x96xf32> to vector<8x96xf32>
    %42 = arith.addf %38, %41 : vector<8x96xf32>
    %43 = vector.shape_cast %42 : vector<8x96xf32> to vector<1x8x96xf32>
    %44 = vector.extract_strided_slice %43 {offsets = [0, 0, 0], sizes = [1, 8, 8], strides = [1, 1, 1]} : vector<1x8x96xf32> to vector<1x8x8xf32>
    %45 = vector.extract_strided_slice %43 {offsets = [0, 0, 8], sizes = [1, 8, 8], strides = [1, 1, 1]} : vector<1x8x96xf32> to vector<1x8x8xf32>
    %46 = vector.extract_strided_slice %43 {offsets = [0, 0, 16], sizes = [1, 8, 8], strides = [1, 1, 1]} : vector<1x8x96xf32> to vector<1x8x8xf32>
    %47 = vector.extract_strided_slice %43 {offsets = [0, 0, 24], sizes = [1, 8, 8], strides = [1, 1, 1]} : vector<1x8x96xf32> to vector<1x8x8xf32>
    %48 = vector.shape_cast %44 : vector<1x8x8xf32> to vector<1x1x8x8xf32>
    %49 = vector.shape_cast %45 : vector<1x8x8xf32> to vector<1x1x8x8xf32>
    %50 = vector.shape_cast %46 : vector<1x8x8xf32> to vector<1x1x8x8xf32>
    %51 = vector.shape_cast %47 : vector<1x8x8xf32> to vector<1x1x8x8xf32>
    %52 = tpu.concatenate %48, %49, %50, %51 in 0 : vector<1x1x8x8xf32>, vector<1x1x8x8xf32>, vector<1x1x8x8xf32>, vector<1x1x8x8xf32> -> vector<4x1x8x8xf32>
    %53 = vector.shape_cast %52 : vector<4x1x8x8xf32> to vector<4x8x8xf32>
    %54 = vector.extract_strided_slice %43 {offsets = [0, 0, 32], sizes = [1, 8, 8], strides = [1, 1, 1]} : vector<1x8x96xf32> to vector<1x8x8xf32>
    %55 = vector.extract_strided_slice %43 {offsets = [0, 0, 40], sizes = [1, 8, 8], strides = [1, 1, 1]} : vector<1x8x96xf32> to vector<1x8x8xf32>
    %56 = vector.extract_strided_slice %43 {offsets = [0, 0, 48], sizes = [1, 8, 8], strides = [1, 1, 1]} : vector<1x8x96xf32> to vector<1x8x8xf32>
    %57 = vector.extract_strided_slice %43 {offsets = [0, 0, 56], sizes = [1, 8, 8], strides = [1, 1, 1]} : vector<1x8x96xf32> to vector<1x8x8xf32>
    %58 = vector.shape_cast %54 : vector<1x8x8xf32> to vector<1x1x8x8xf32>
    %59 = vector.shape_cast %55 : vector<1x8x8xf32> to vector<1x1x8x8xf32>
    %60 = vector.shape_cast %56 : vector<1x8x8xf32> to vector<1x1x8x8xf32>
    %61 = vector.shape_cast %57 : vector<1x8x8xf32> to vector<1x1x8x8xf32>
    %62 = tpu.concatenate %58, %59, %60, %61 in 0 : vector<1x1x8x8xf32>, vector<1x1x8x8xf32>, vector<1x1x8x8xf32>, vector<1x1x8x8xf32> -> vector<4x1x8x8xf32>
    %63 = vector.shape_cast %62 : vector<4x1x8x8xf32> to vector<4x8x8xf32>
    %64 = vector.extract_strided_slice %43 {offsets = [0, 0, 64], sizes = [1, 8, 8], strides = [1, 1, 1]} : vector<1x8x96xf32> to vector<1x8x8xf32>
    %65 = vector.extract_strided_slice %43 {offsets = [0, 0, 72], sizes = [1, 8, 8], strides = [1, 1, 1]} : vector<1x8x96xf32> to vector<1x8x8xf32>
    %66 = vector.extract_strided_slice %43 {offsets = [0, 0, 80], sizes = [1, 8, 8], strides = [1, 1, 1]} : vector<1x8x96xf32> to vector<1x8x8xf32>
    %67 = vector.extract_strided_slice %43 {offsets = [0, 0, 88], sizes = [1, 8, 8], strides = [1, 1, 1]} : vector<1x8x96xf32> to vector<1x8x8xf32>
    %68 = vector.shape_cast %64 : vector<1x8x8xf32> to vector<1x1x8x8xf32>
    %69 = vector.shape_cast %65 : vector<1x8x8xf32> to vector<1x1x8x8xf32>
    %70 = vector.shape_cast %66 : vector<1x8x8xf32> to vector<1x1x8x8xf32>
    %71 = vector.shape_cast %67 : vector<1x8x8xf32> to vector<1x1x8x8xf32>
    %72 = tpu.concatenate %68, %69, %70, %71 in 0 : vector<1x1x8x8xf32>, vector<1x1x8x8xf32>, vector<1x1x8x8xf32>, vector<1x1x8x8xf32> -> vector<4x1x8x8xf32>
    %73 = vector.shape_cast %72 : vector<4x1x8x8xf32> to vector<4x8x8xf32>
    %74 = arith.truncf %53 : vector<4x8x8xf32> to vector<4x8x8xbf16>
    %75 = arith.truncf %63 : vector<4x8x8xf32> to vector<4x8x8xbf16>
    "tpu.trace_start"() <{level = 10 : i32, message = "bqd,bkd->bqk"}> : () -> ()
    %cst_23 = arith.constant dense<0.000000e+00> : vector<4x8x8xf32>
    %76 = tpu.matmul %74, %75, %cst_23 {dimension_numbers = #tpu.dot_dimension_numbers<[2], [2], [1], [1], [0, 0, 0, 1, 1, 1], [0], [0]>} : vector<4x8x8xbf16>, vector<4x8x8xbf16>, vector<4x8x8xf32> -> vector<4x8x8xf32>
    "tpu.trace_stop"() : () -> ()
    %77 = vector.broadcast %8 : vector<4x1x8xf32> to vector<4x8x8xf32>
    %78 = arith.addf %76, %77 : vector<4x8x8xf32>
    %cst_24 = arith.constant dense<0xFF800000> : vector<4x8xf32>
    %79 = vector.multi_reduction <maximumf>, %78, %cst_24 [2] : vector<4x8x8xf32> to vector<4x8xf32>
    %80 = vector.shape_cast %79 : vector<4x8xf32> to vector<4x8x1xf32>
    %81 = vector.broadcast %80 : vector<4x8x1xf32> to vector<4x8x8xf32>
    %82 = arith.subf %78, %81 : vector<4x8x8xf32>
    %83 = math.exp %82 : vector<4x8x8xf32>
    %cst_25 = arith.constant dense<0.000000e+00> : vector<4x8xf32>
    %84 = vector.multi_reduction <add>, %83, %cst_25 [2] : vector<4x8x8xf32> to vector<4x8xf32>
    %85 = vector.shape_cast %84 : vector<4x8xf32> to vector<4x8x1xf32>
    %86 = tpu.reciprocal %85 {approx = true} : vector<4x8x1xf32> -> vector<4x8x1xf32>
    %87 = vector.broadcast %86 : vector<4x8x1xf32> to vector<4x8x8xf32>
    %88 = arith.mulf %83, %87 : vector<4x8x8xf32>
    %89 = arith.truncf %88 : vector<4x8x8xf32> to vector<4x8x8xbf16>
    %90 = arith.truncf %73 : vector<4x8x8xf32> to vector<4x8x8xbf16>
    "tpu.trace_start"() <{level = 10 : i32, message = "bqk,bkd->bqd"}> : () -> ()
    %cst_26 = arith.constant dense<0.000000e+00> : vector<4x8x8xf32>
    %91 = tpu.matmul %89, %90, %cst_26 {dimension_numbers = #tpu.dot_dimension_numbers<[2], [1], [1], [2], [0, 0, 0, 1, 1, 2], [0], [0]>} : vector<4x8x8xbf16>, vector<4x8x8xbf16>, vector<4x8x8xf32> -> vector<4x8x8xf32>
    "tpu.trace_stop"() : () -> ()
    %92 = vector.shape_cast %91 : vector<4x8x8xf32> to vector<4x1x8x8xf32>
    %93 = vector.extract_strided_slice %92 {offsets = [0, 0, 0, 0], sizes = [1, 1, 8, 8], strides = [1, 1, 1, 1]} : vector<4x1x8x8xf32> to vector<1x1x8x8xf32>
    %94 = vector.shape_cast %93 : vector<1x1x8x8xf32> to vector<1x8x8xf32>
    %95 = vector.extract_strided_slice %92 {offsets = [1, 0, 0, 0], sizes = [1, 1, 8, 8], strides = [1, 1, 1, 1]} : vector<4x1x8x8xf32> to vector<1x1x8x8xf32>
    %96 = vector.shape_cast %95 : vector<1x1x8x8xf32> to vector<1x8x8xf32>
    %97 = vector.extract_strided_slice %92 {offsets = [2, 0, 0, 0], sizes = [1, 1, 8, 8], strides = [1, 1, 1, 1]} : vector<4x1x8x8xf32> to vector<1x1x8x8xf32>
    %98 = vector.shape_cast %97 : vector<1x1x8x8xf32> to vector<1x8x8xf32>
    %99 = vector.extract_strided_slice %92 {offsets = [3, 0, 0, 0], sizes = [1, 1, 8, 8], strides = [1, 1, 1, 1]} : vector<4x1x8x8xf32> to vector<1x1x8x8xf32>
    %100 = vector.shape_cast %99 : vector<1x1x8x8xf32> to vector<1x8x8xf32>
    %101 = tpu.concatenate %94, %96, %98, %100 in 2 : vector<1x8x8xf32>, vector<1x8x8xf32>, vector<1x8x8xf32>, vector<1x8x8xf32> -> vector<1x8x32xf32>
    %102 = vector.shape_cast %101 : vector<1x8x32xf32> to vector<8x32xf32>
    %103 = arith.truncf %102 : vector<8x32xf32> to vector<8x32xbf16>
    %c0_27 = arith.constant 0 : index
    %c0_28 = arith.constant 0 : index
    %c0_29 = arith.constant 0 : index
    %104 = vector.load %arg7[%c0_27, %c0_28, %c0_29] : memref<2x32x32xbf16, #tpu.memory_space<vmem>>, vector<1x32x32xbf16>
    %105 = vector.shape_cast %104 : vector<1x32x32xbf16> to vector<32x32xbf16>
    %cst_30 = arith.constant dense<0.000000e+00> : vector<8x32xf32>
    %106 = tpu.matmul %103, %105, %cst_30 {dimension_numbers = #tpu.dot_dimension_numbers<[1], [0], [0], [1], [0, 0, 1, 1], [], []>} : vector<8x32xbf16>, vector<32x32xbf16>, vector<8x32xf32> -> vector<8x32xf32>
    %c0_31 = arith.constant 0 : index
    %c0_32 = arith.constant 0 : index
    %c0_33 = arith.constant 0 : index
    %107 = vector.load %arg8[%c0_31, %c0_32, %c0_33] : memref<2x1x32xf32, #tpu.memory_space<vmem>>, vector<1x1x32xf32>
    %108 = vector.shape_cast %107 : vector<1x1x32xf32> to vector<1x32xf32>
    %109 = vector.broadcast %108 : vector<1x32xf32> to vector<8x32xf32>
    %110 = arith.addf %106, %109 : vector<8x32xf32>
    %111 = arith.addf %1, %110 : vector<8x32xf32>
    %c0_34 = arith.constant 0 : index
    %c0_35 = arith.constant 0 : index
    %c0_36 = arith.constant 0 : index
    %112 = vector.load %arg9[%c0_34, %c0_35, %c0_36] : memref<2x1x32xf32, #tpu.memory_space<vmem>>, vector<1x1x32xf32>
    %113 = vector.shape_cast %112 : vector<1x1x32xf32> to vector<1x32xf32>
    %c0_37 = arith.constant 0 : index
    %c0_38 = arith.constant 0 : index
    %c0_39 = arith.constant 0 : index
    %114 = vector.load %arg10[%c0_37, %c0_38, %c0_39] : memref<2x1x32xf32, #tpu.memory_space<vmem>>, vector<1x1x32xf32>
    %115 = vector.shape_cast %114 : vector<1x1x32xf32> to vector<1x32xf32>
    %cst_40 = arith.constant dense<0.000000e+00> : vector<8xf32>
    %116 = vector.multi_reduction <add>, %111, %cst_40 [1] : vector<8x32xf32> to vector<8xf32>
    %117 = vector.shape_cast %116 : vector<8xf32> to vector<8x1xf32>
    %cst_41 = arith.constant 3.200000e+01 : f32
    %118 = vector.broadcast %cst_41 : f32 to vector<8x1xf32>
    %119 = arith.divf %117, %118 : vector<8x1xf32>
    %120 = vector.broadcast %119 : vector<8x1xf32> to vector<8x32xf32>
    %121 = arith.subf %111, %120 : vector<8x32xf32>
    %122 = arith.mulf %121, %121 : vector<8x32xf32>
    %cst_42 = arith.constant dense<0.000000e+00> : vector<8xf32>
    %123 = vector.multi_reduction <add>, %122, %cst_42 [1] : vector<8x32xf32> to vector<8xf32>
    %124 = vector.shape_cast %123 : vector<8xf32> to vector<8x1xf32>
    %cst_43 = arith.constant 3.200000e+01 : f32
    %125 = vector.broadcast %cst_43 : f32 to vector<8x1xf32>
    %126 = arith.divf %124, %125 : vector<8x1xf32>
    %127 = vector.broadcast %119 : vector<8x1xf32> to vector<8x32xf32>
    %128 = arith.subf %111, %127 : vector<8x32xf32>
    %129 = vector.broadcast %113 : vector<1x32xf32> to vector<8x32xf32>
    %130 = arith.mulf %129, %128 : vector<8x32xf32>
    %cst_44 = arith.constant 9.99999974E-6 : f32
    %131 = vector.broadcast %cst_44 : f32 to vector<8x1xf32>
    %132 = arith.addf %126, %131 : vector<8x1xf32>
    %133 = math.rsqrt %132 : vector<8x1xf32>
    %134 = vector.broadcast %133 : vector<8x1xf32> to vector<8x32xf32>
    %135 = arith.mulf %130, %134 : vector<8x32xf32>
    %136 = vector.broadcast %115 : vector<1x32xf32> to vector<8x32xf32>
    %137 = arith.addf %135, %136 : vector<8x32xf32>
    %138 = arith.truncf %137 : vector<8x32xf32> to vector<8x32xbf16>
    %c0_45 = arith.constant 0 : index
    %c0_46 = arith.constant 0 : index
    %c0_47 = arith.constant 0 : index
    %139 = vector.load %arg11[%c0_45, %c0_46, %c0_47] : memref<2x32x128xbf16, #tpu.memory_space<vmem>>, vector<1x32x128xbf16>
    %140 = vector.shape_cast %139 : vector<1x32x128xbf16> to vector<32x128xbf16>
    %cst_48 = arith.constant dense<0.000000e+00> : vector<8x128xf32>
    %141 = tpu.matmul %138, %140, %cst_48 {dimension_numbers = #tpu.dot_dimension_numbers<[1], [0], [0], [1], [0, 0, 1, 1], [], []>} : vector<8x32xbf16>, vector<32x128xbf16>, vector<8x128xf32> -> vector<8x128xf32>
    %c0_49 = arith.constant 0 : index
    %c0_50 = arith.constant 0 : index
    %c0_51 = arith.constant 0 : index
    %142 = vector.load %arg12[%c0_49, %c0_50, %c0_51] : memref<2x1x128xf32, #tpu.memory_space<vmem>>, vector<1x1x128xf32>
    %143 = vector.shape_cast %142 : vector<1x1x128xf32> to vector<1x128xf32>
    %144 = vector.broadcast %143 : vector<1x128xf32> to vector<8x128xf32>
    %145 = arith.addf %141, %144 : vector<8x128xf32>
    %cst_52 = arith.constant 0.000000e+00 : f32
    %146 = vector.broadcast %cst_52 : f32 to vector<8x128xf32>
    %147 = arith.maximumf %145, %146 : vector<8x128xf32>
    %148 = arith.truncf %147 : vector<8x128xf32> to vector<8x128xbf16>
    %c0_53 = arith.constant 0 : index
    %c0_54 = arith.constant 0 : index
    %c0_55 = arith.constant 0 : index
    %149 = vector.load %arg13[%c0_53, %c0_54, %c0_55] : memref<2x128x32xbf16, #tpu.memory_space<vmem>>, vector<1x128x32xbf16>
    %150 = vector.shape_cast %149 : vector<1x128x32xbf16> to vector<128x32xbf16>
    %cst_56 = arith.constant dense<0.000000e+00> : vector<8x32xf32>
    %151 = tpu.matmul %148, %150, %cst_56 {dimension_numbers = #tpu.dot_dimension_numbers<[1], [0], [0], [1], [0, 0, 1, 1], [], []>} : vector<8x128xbf16>, vector<128x32xbf16>, vector<8x32xf32> -> vector<8x32xf32>
    %c0_57 = arith.constant 0 : index
    %c0_58 = arith.constant 0 : index
    %c0_59 = arith.constant 0 : index
    %152 = vector.load %arg14[%c0_57, %c0_58, %c0_59] : memref<2x1x32xf32, #tpu.memory_space<vmem>>, vector<1x1x32xf32>
    %153 = vector.shape_cast %152 : vector<1x1x32xf32> to vector<1x32xf32>
    %154 = vector.broadcast %153 : vector<1x32xf32> to vector<8x32xf32>
    %155 = arith.addf %151, %154 : vector<8x32xf32>
    %156 = arith.addf %111, %155 : vector<8x32xf32>
    %c1 = arith.constant 1 : index
    %c0_60 = arith.constant 0 : index
    %c0_61 = arith.constant 0 : index
    %157 = vector.load %arg3[%c1, %c0_60, %c0_61] : memref<2x1x32xf32, #tpu.memory_space<vmem>>, vector<1x1x32xf32>
    %158 = vector.shape_cast %157 : vector<1x1x32xf32> to vector<1x32xf32>
    %c1_62 = arith.constant 1 : index
    %c0_63 = arith.constant 0 : index
    %c0_64 = arith.constant 0 : index
    %159 = vector.load %arg4[%c1_62, %c0_63, %c0_64] : memref<2x1x32xf32, #tpu.memory_space<vmem>>, vector<1x1x32xf32>
    %160 = vector.shape_cast %159 : vector<1x1x32xf32> to vector<1x32xf32>
    %cst_65 = arith.constant dense<0.000000e+00> : vector<8xf32>
    %161 = vector.multi_reduction <add>, %156, %cst_65 [1] : vector<8x32xf32> to vector<8xf32>
    %162 = vector.shape_cast %161 : vector<8xf32> to vector<8x1xf32>
    %cst_66 = arith.constant 3.200000e+01 : f32
    %163 = vector.broadcast %cst_66 : f32 to vector<8x1xf32>
    %164 = arith.divf %162, %163 : vector<8x1xf32>
    %165 = vector.broadcast %164 : vector<8x1xf32> to vector<8x32xf32>
    %166 = arith.subf %156, %165 : vector<8x32xf32>
    %167 = arith.mulf %166, %166 : vector<8x32xf32>
    %cst_67 = arith.constant dense<0.000000e+00> : vector<8xf32>
    %168 = vector.multi_reduction <add>, %167, %cst_67 [1] : vector<8x32xf32> to vector<8xf32>
    %169 = vector.shape_cast %168 : vector<8xf32> to vector<8x1xf32>
    %cst_68 = arith.constant 3.200000e+01 : f32
    %170 = vector.broadcast %cst_68 : f32 to vector<8x1xf32>
    %171 = arith.divf %169, %170 : vector<8x1xf32>
    %172 = vector.broadcast %164 : vector<8x1xf32> to vector<8x32xf32>
    %173 = arith.subf %156, %172 : vector<8x32xf32>
    %174 = vector.broadcast %158 : vector<1x32xf32> to vector<8x32xf32>
    %175 = arith.mulf %174, %173 : vector<8x32xf32>
    %cst_69 = arith.constant 9.99999974E-6 : f32
    %176 = vector.broadcast %cst_69 : f32 to vector<8x1xf32>
    %177 = arith.addf %171, %176 : vector<8x1xf32>
    %178 = math.rsqrt %177 : vector<8x1xf32>
    %179 = vector.broadcast %178 : vector<8x1xf32> to vector<8x32xf32>
    %180 = arith.mulf %175, %179 : vector<8x32xf32>
    %181 = vector.broadcast %160 : vector<1x32xf32> to vector<8x32xf32>
    %182 = arith.addf %180, %181 : vector<8x32xf32>
    %183 = arith.truncf %182 : vector<8x32xf32> to vector<8x32xbf16>
    %c1_70 = arith.constant 1 : index
    %c0_71 = arith.constant 0 : index
    %c0_72 = arith.constant 0 : index
    %184 = vector.load %arg5[%c1_70, %c0_71, %c0_72] : memref<2x32x96xbf16, #tpu.memory_space<vmem>>, vector<1x32x96xbf16>
    %185 = vector.shape_cast %184 : vector<1x32x96xbf16> to vector<32x96xbf16>
    %cst_73 = arith.constant dense<0.000000e+00> : vector<8x96xf32>
    %186 = tpu.matmul %183, %185, %cst_73 {dimension_numbers = #tpu.dot_dimension_numbers<[1], [0], [0], [1], [0, 0, 1, 1], [], []>} : vector<8x32xbf16>, vector<32x96xbf16>, vector<8x96xf32> -> vector<8x96xf32>
    %c1_74 = arith.constant 1 : index
    %c0_75 = arith.constant 0 : index
    %c0_76 = arith.constant 0 : index
    %187 = vector.load %arg6[%c1_74, %c0_75, %c0_76] : memref<2x1x96xf32, #tpu.memory_space<vmem>>, vector<1x1x96xf32>
    %188 = vector.shape_cast %187 : vector<1x1x96xf32> to vector<1x96xf32>
    %189 = vector.broadcast %188 : vector<1x96xf32> to vector<8x96xf32>
    %190 = arith.addf %186, %189 : vector<8x96xf32>
    %191 = vector.shape_cast %190 : vector<8x96xf32> to vector<1x8x96xf32>
    %192 = vector.extract_strided_slice %191 {offsets = [0, 0, 0], sizes = [1, 8, 8], strides = [1, 1, 1]} : vector<1x8x96xf32> to vector<1x8x8xf32>
    %193 = vector.extract_strided_slice %191 {offsets = [0, 0, 8], sizes = [1, 8, 8], strides = [1, 1, 1]} : vector<1x8x96xf32> to vector<1x8x8xf32>
    %194 = vector.extract_strided_slice %191 {offsets = [0, 0, 16], sizes = [1, 8, 8], strides = [1, 1, 1]} : vector<1x8x96xf32> to vector<1x8x8xf32>
    %195 = vector.extract_strided_slice %191 {offsets = [0, 0, 24], sizes = [1, 8, 8], strides = [1, 1, 1]} : vector<1x8x96xf32> to vector<1x8x8xf32>
    %196 = vector.shape_cast %192 : vector<1x8x8xf32> to vector<1x1x8x8xf32>
    %197 = vector.shape_cast %193 : vector<1x8x8xf32> to vector<1x1x8x8xf32>
    %198 = vector.shape_cast %194 : vector<1x8x8xf32> to vector<1x1x8x8xf32>
    %199 = vector.shape_cast %195 : vector<1x8x8xf32> to vector<1x1x8x8xf32>
    %200 = tpu.concatenate %196, %197, %198, %199 in 0 : vector<1x1x8x8xf32>, vector<1x1x8x8xf32>, vector<1x1x8x8xf32>, vector<1x1x8x8xf32> -> vector<4x1x8x8xf32>
    %201 = vector.shape_cast %200 : vector<4x1x8x8xf32> to vector<4x8x8xf32>
    %202 = vector.extract_strided_slice %191 {offsets = [0, 0, 32], sizes = [1, 8, 8], strides = [1, 1, 1]} : vector<1x8x96xf32> to vector<1x8x8xf32>
    %203 = vector.extract_strided_slice %191 {offsets = [0, 0, 40], sizes = [1, 8, 8], strides = [1, 1, 1]} : vector<1x8x96xf32> to vector<1x8x8xf32>
    %204 = vector.extract_strided_slice %191 {offsets = [0, 0, 48], sizes = [1, 8, 8], strides = [1, 1, 1]} : vector<1x8x96xf32> to vector<1x8x8xf32>
    %205 = vector.extract_strided_slice %191 {offsets = [0, 0, 56], sizes = [1, 8, 8], strides = [1, 1, 1]} : vector<1x8x96xf32> to vector<1x8x8xf32>
    %206 = vector.shape_cast %202 : vector<1x8x8xf32> to vector<1x1x8x8xf32>
    %207 = vector.shape_cast %203 : vector<1x8x8xf32> to vector<1x1x8x8xf32>
    %208 = vector.shape_cast %204 : vector<1x8x8xf32> to vector<1x1x8x8xf32>
    %209 = vector.shape_cast %205 : vector<1x8x8xf32> to vector<1x1x8x8xf32>
    %210 = tpu.concatenate %206, %207, %208, %209 in 0 : vector<1x1x8x8xf32>, vector<1x1x8x8xf32>, vector<1x1x8x8xf32>, vector<1x1x8x8xf32> -> vector<4x1x8x8xf32>
    %211 = vector.shape_cast %210 : vector<4x1x8x8xf32> to vector<4x8x8xf32>
    %212 = vector.extract_strided_slice %191 {offsets = [0, 0, 64], sizes = [1, 8, 8], strides = [1, 1, 1]} : vector<1x8x96xf32> to vector<1x8x8xf32>
    %213 = vector.extract_strided_slice %191 {offsets = [0, 0, 72], sizes = [1, 8, 8], strides = [1, 1, 1]} : vector<1x8x96xf32> to vector<1x8x8xf32>
    %214 = vector.extract_strided_slice %191 {offsets = [0, 0, 80], sizes = [1, 8, 8], strides = [1, 1, 1]} : vector<1x8x96xf32> to vector<1x8x8xf32>
    %215 = vector.extract_strided_slice %191 {offsets = [0, 0, 88], sizes = [1, 8, 8], strides = [1, 1, 1]} : vector<1x8x96xf32> to vector<1x8x8xf32>
    %216 = vector.shape_cast %212 : vector<1x8x8xf32> to vector<1x1x8x8xf32>
    %217 = vector.shape_cast %213 : vector<1x8x8xf32> to vector<1x1x8x8xf32>
    %218 = vector.shape_cast %214 : vector<1x8x8xf32> to vector<1x1x8x8xf32>
    %219 = vector.shape_cast %215 : vector<1x8x8xf32> to vector<1x1x8x8xf32>
    %220 = tpu.concatenate %216, %217, %218, %219 in 0 : vector<1x1x8x8xf32>, vector<1x1x8x8xf32>, vector<1x1x8x8xf32>, vector<1x1x8x8xf32> -> vector<4x1x8x8xf32>
    %221 = vector.shape_cast %220 : vector<4x1x8x8xf32> to vector<4x8x8xf32>
    %222 = arith.truncf %201 : vector<4x8x8xf32> to vector<4x8x8xbf16>
    %223 = arith.truncf %211 : vector<4x8x8xf32> to vector<4x8x8xbf16>
    "tpu.trace_start"() <{level = 10 : i32, message = "bqd,bkd->bqk"}> : () -> ()
    %cst_77 = arith.constant dense<0.000000e+00> : vector<4x8x8xf32>
    %224 = tpu.matmul %222, %223, %cst_77 {dimension_numbers = #tpu.dot_dimension_numbers<[2], [2], [1], [1], [0, 0, 0, 1, 1, 1], [0], [0]>} : vector<4x8x8xbf16>, vector<4x8x8xbf16>, vector<4x8x8xf32> -> vector<4x8x8xf32>
    "tpu.trace_stop"() : () -> ()
    %225 = vector.broadcast %8 : vector<4x1x8xf32> to vector<4x8x8xf32>
    %226 = arith.addf %224, %225 : vector<4x8x8xf32>
    %cst_78 = arith.constant dense<0xFF800000> : vector<4x8xf32>
    %227 = vector.multi_reduction <maximumf>, %226, %cst_78 [2] : vector<4x8x8xf32> to vector<4x8xf32>
    %228 = vector.shape_cast %227 : vector<4x8xf32> to vector<4x8x1xf32>
    %229 = vector.broadcast %228 : vector<4x8x1xf32> to vector<4x8x8xf32>
    %230 = arith.subf %226, %229 : vector<4x8x8xf32>
    %231 = math.exp %230 : vector<4x8x8xf32>
    %cst_79 = arith.constant dense<0.000000e+00> : vector<4x8xf32>
    %232 = vector.multi_reduction <add>, %231, %cst_79 [2] : vector<4x8x8xf32> to vector<4x8xf32>
    %233 = vector.shape_cast %232 : vector<4x8xf32> to vector<4x8x1xf32>
    %234 = tpu.reciprocal %233 {approx = true} : vector<4x8x1xf32> -> vector<4x8x1xf32>
    %235 = vector.broadcast %234 : vector<4x8x1xf32> to vector<4x8x8xf32>
    %236 = arith.mulf %231, %235 : vector<4x8x8xf32>
    %237 = arith.truncf %236 : vector<4x8x8xf32> to vector<4x8x8xbf16>
    %238 = arith.truncf %221 : vector<4x8x8xf32> to vector<4x8x8xbf16>
    "tpu.trace_start"() <{level = 10 : i32, message = "bqk,bkd->bqd"}> : () -> ()
    %cst_80 = arith.constant dense<0.000000e+00> : vector<4x8x8xf32>
    %239 = tpu.matmul %237, %238, %cst_80 {dimension_numbers = #tpu.dot_dimension_numbers<[2], [1], [1], [2], [0, 0, 0, 1, 1, 2], [0], [0]>} : vector<4x8x8xbf16>, vector<4x8x8xbf16>, vector<4x8x8xf32> -> vector<4x8x8xf32>
    "tpu.trace_stop"() : () -> ()
    %240 = vector.shape_cast %239 : vector<4x8x8xf32> to vector<4x1x8x8xf32>
    %241 = vector.extract_strided_slice %240 {offsets = [0, 0, 0, 0], sizes = [1, 1, 8, 8], strides = [1, 1, 1, 1]} : vector<4x1x8x8xf32> to vector<1x1x8x8xf32>
    %242 = vector.shape_cast %241 : vector<1x1x8x8xf32> to vector<1x8x8xf32>
    %243 = vector.extract_strided_slice %240 {offsets = [1, 0, 0, 0], sizes = [1, 1, 8, 8], strides = [1, 1, 1, 1]} : vector<4x1x8x8xf32> to vector<1x1x8x8xf32>
    %244 = vector.shape_cast %243 : vector<1x1x8x8xf32> to vector<1x8x8xf32>
    %245 = vector.extract_strided_slice %240 {offsets = [2, 0, 0, 0], sizes = [1, 1, 8, 8], strides = [1, 1, 1, 1]} : vector<4x1x8x8xf32> to vector<1x1x8x8xf32>
    %246 = vector.shape_cast %245 : vector<1x1x8x8xf32> to vector<1x8x8xf32>
    %247 = vector.extract_strided_slice %240 {offsets = [3, 0, 0, 0], sizes = [1, 1, 8, 8], strides = [1, 1, 1, 1]} : vector<4x1x8x8xf32> to vector<1x1x8x8xf32>
    %248 = vector.shape_cast %247 : vector<1x1x8x8xf32> to vector<1x8x8xf32>
    %249 = tpu.concatenate %242, %244, %246, %248 in 2 : vector<1x8x8xf32>, vector<1x8x8xf32>, vector<1x8x8xf32>, vector<1x8x8xf32> -> vector<1x8x32xf32>
    %250 = vector.shape_cast %249 : vector<1x8x32xf32> to vector<8x32xf32>
    %251 = arith.truncf %250 : vector<8x32xf32> to vector<8x32xbf16>
    %c1_81 = arith.constant 1 : index
    %c0_82 = arith.constant 0 : index
    %c0_83 = arith.constant 0 : index
    %252 = vector.load %arg7[%c1_81, %c0_82, %c0_83] : memref<2x32x32xbf16, #tpu.memory_space<vmem>>, vector<1x32x32xbf16>
    %253 = vector.shape_cast %252 : vector<1x32x32xbf16> to vector<32x32xbf16>
    %cst_84 = arith.constant dense<0.000000e+00> : vector<8x32xf32>
    %254 = tpu.matmul %251, %253, %cst_84 {dimension_numbers = #tpu.dot_dimension_numbers<[1], [0], [0], [1], [0, 0, 1, 1], [], []>} : vector<8x32xbf16>, vector<32x32xbf16>, vector<8x32xf32> -> vector<8x32xf32>
    %c1_85 = arith.constant 1 : index
    %c0_86 = arith.constant 0 : index
    %c0_87 = arith.constant 0 : index
    %255 = vector.load %arg8[%c1_85, %c0_86, %c0_87] : memref<2x1x32xf32, #tpu.memory_space<vmem>>, vector<1x1x32xf32>
    %256 = vector.shape_cast %255 : vector<1x1x32xf32> to vector<1x32xf32>
    %257 = vector.broadcast %256 : vector<1x32xf32> to vector<8x32xf32>
    %258 = arith.addf %254, %257 : vector<8x32xf32>
    %259 = arith.addf %156, %258 : vector<8x32xf32>
    %c1_88 = arith.constant 1 : index
    %c0_89 = arith.constant 0 : index
    %c0_90 = arith.constant 0 : index
    %260 = vector.load %arg9[%c1_88, %c0_89, %c0_90] : memref<2x1x32xf32, #tpu.memory_space<vmem>>, vector<1x1x32xf32>
    %261 = vector.shape_cast %260 : vector<1x1x32xf32> to vector<1x32xf32>
    %c1_91 = arith.constant 1 : index
    %c0_92 = arith.constant 0 : index
    %c0_93 = arith.constant 0 : index
    %262 = vector.load %arg10[%c1_91, %c0_92, %c0_93] : memref<2x1x32xf32, #tpu.memory_space<vmem>>, vector<1x1x32xf32>
    %263 = vector.shape_cast %262 : vector<1x1x32xf32> to vector<1x32xf32>
    %cst_94 = arith.constant dense<0.000000e+00> : vector<8xf32>
    %264 = vector.multi_reduction <add>, %259, %cst_94 [1] : vector<8x32xf32> to vector<8xf32>
    %265 = vector.shape_cast %264 : vector<8xf32> to vector<8x1xf32>
    %cst_95 = arith.constant 3.200000e+01 : f32
    %266 = vector.broadcast %cst_95 : f32 to vector<8x1xf32>
    %267 = arith.divf %265, %266 : vector<8x1xf32>
    %268 = vector.broadcast %267 : vector<8x1xf32> to vector<8x32xf32>
    %269 = arith.subf %259, %268 : vector<8x32xf32>
    %270 = arith.mulf %269, %269 : vector<8x32xf32>
    %cst_96 = arith.constant dense<0.000000e+00> : vector<8xf32>
    %271 = vector.multi_reduction <add>, %270, %cst_96 [1] : vector<8x32xf32> to vector<8xf32>
    %272 = vector.shape_cast %271 : vector<8xf32> to vector<8x1xf32>
    %cst_97 = arith.constant 3.200000e+01 : f32
    %273 = vector.broadcast %cst_97 : f32 to vector<8x1xf32>
    %274 = arith.divf %272, %273 : vector<8x1xf32>
    %275 = vector.broadcast %267 : vector<8x1xf32> to vector<8x32xf32>
    %276 = arith.subf %259, %275 : vector<8x32xf32>
    %277 = vector.broadcast %261 : vector<1x32xf32> to vector<8x32xf32>
    %278 = arith.mulf %277, %276 : vector<8x32xf32>
    %cst_98 = arith.constant 9.99999974E-6 : f32
    %279 = vector.broadcast %cst_98 : f32 to vector<8x1xf32>
    %280 = arith.addf %274, %279 : vector<8x1xf32>
    %281 = math.rsqrt %280 : vector<8x1xf32>
    %282 = vector.broadcast %281 : vector<8x1xf32> to vector<8x32xf32>
    %283 = arith.mulf %278, %282 : vector<8x32xf32>
    %284 = vector.broadcast %263 : vector<1x32xf32> to vector<8x32xf32>
    %285 = arith.addf %283, %284 : vector<8x32xf32>
    %286 = arith.truncf %285 : vector<8x32xf32> to vector<8x32xbf16>
    %c1_99 = arith.constant 1 : index
    %c0_100 = arith.constant 0 : index
    %c0_101 = arith.constant 0 : index
    %287 = vector.load %arg11[%c1_99, %c0_100, %c0_101] : memref<2x32x128xbf16, #tpu.memory_space<vmem>>, vector<1x32x128xbf16>
    %288 = vector.shape_cast %287 : vector<1x32x128xbf16> to vector<32x128xbf16>
    %cst_102 = arith.constant dense<0.000000e+00> : vector<8x128xf32>
    %289 = tpu.matmul %286, %288, %cst_102 {dimension_numbers = #tpu.dot_dimension_numbers<[1], [0], [0], [1], [0, 0, 1, 1], [], []>} : vector<8x32xbf16>, vector<32x128xbf16>, vector<8x128xf32> -> vector<8x128xf32>
    %c1_103 = arith.constant 1 : index
    %c0_104 = arith.constant 0 : index
    %c0_105 = arith.constant 0 : index
    %290 = vector.load %arg12[%c1_103, %c0_104, %c0_105] : memref<2x1x128xf32, #tpu.memory_space<vmem>>, vector<1x1x128xf32>
    %291 = vector.shape_cast %290 : vector<1x1x128xf32> to vector<1x128xf32>
    %292 = vector.broadcast %291 : vector<1x128xf32> to vector<8x128xf32>
    %293 = arith.addf %289, %292 : vector<8x128xf32>
    %cst_106 = arith.constant 0.000000e+00 : f32
    %294 = vector.broadcast %cst_106 : f32 to vector<8x128xf32>
    %295 = arith.maximumf %293, %294 : vector<8x128xf32>
    %296 = arith.truncf %295 : vector<8x128xf32> to vector<8x128xbf16>
    %c1_107 = arith.constant 1 : index
    %c0_108 = arith.constant 0 : index
    %c0_109 = arith.constant 0 : index
    %297 = vector.load %arg13[%c1_107, %c0_108, %c0_109] : memref<2x128x32xbf16, #tpu.memory_space<vmem>>, vector<1x128x32xbf16>
    %298 = vector.shape_cast %297 : vector<1x128x32xbf16> to vector<128x32xbf16>
    %cst_110 = arith.constant dense<0.000000e+00> : vector<8x32xf32>
    %299 = tpu.matmul %296, %298, %cst_110 {dimension_numbers = #tpu.dot_dimension_numbers<[1], [0], [0], [1], [0, 0, 1, 1], [], []>} : vector<8x128xbf16>, vector<128x32xbf16>, vector<8x32xf32> -> vector<8x32xf32>
    %c1_111 = arith.constant 1 : index
    %c0_112 = arith.constant 0 : index
    %c0_113 = arith.constant 0 : index
    %300 = vector.load %arg14[%c1_111, %c0_112, %c0_113] : memref<2x1x32xf32, #tpu.memory_space<vmem>>, vector<1x1x32xf32>
    %301 = vector.shape_cast %300 : vector<1x1x32xf32> to vector<1x32xf32>
    %302 = vector.broadcast %301 : vector<1x32xf32> to vector<8x32xf32>
    %303 = arith.addf %299, %302 : vector<8x32xf32>
    %304 = arith.addf %259, %303 : vector<8x32xf32>
    %c0_114 = arith.constant 0 : index
    %c0_115 = arith.constant 0 : index
    %305 = vector.load %arg15[%c0_114, %c0_115] : memref<1x32xf32, #tpu.memory_space<vmem>>, vector<1x32xf32>
    %c0_116 = arith.constant 0 : index
    %c0_117 = arith.constant 0 : index
    %306 = vector.load %arg16[%c0_116, %c0_117] : memref<1x32xf32, #tpu.memory_space<vmem>>, vector<1x32xf32>
    %cst_118 = arith.constant dense<0.000000e+00> : vector<8xf32>
    %307 = vector.multi_reduction <add>, %304, %cst_118 [1] : vector<8x32xf32> to vector<8xf32>
    %308 = vector.shape_cast %307 : vector<8xf32> to vector<8x1xf32>
    %cst_119 = arith.constant 3.200000e+01 : f32
    %309 = vector.broadcast %cst_119 : f32 to vector<8x1xf32>
    %310 = arith.divf %308, %309 : vector<8x1xf32>
    %311 = vector.broadcast %310 : vector<8x1xf32> to vector<8x32xf32>
    %312 = arith.subf %304, %311 : vector<8x32xf32>
    %313 = arith.mulf %312, %312 : vector<8x32xf32>
    %cst_120 = arith.constant dense<0.000000e+00> : vector<8xf32>
    %314 = vector.multi_reduction <add>, %313, %cst_120 [1] : vector<8x32xf32> to vector<8xf32>
    %315 = vector.shape_cast %314 : vector<8xf32> to vector<8x1xf32>
    %cst_121 = arith.constant 3.200000e+01 : f32
    %316 = vector.broadcast %cst_121 : f32 to vector<8x1xf32>
    %317 = arith.divf %315, %316 : vector<8x1xf32>
    %318 = vector.broadcast %310 : vector<8x1xf32> to vector<8x32xf32>
    %319 = arith.subf %304, %318 : vector<8x32xf32>
    %320 = vector.broadcast %305 : vector<1x32xf32> to vector<8x32xf32>
    %321 = arith.mulf %320, %319 : vector<8x32xf32>
    %cst_122 = arith.constant 9.99999996E-13 : f32
    %322 = vector.broadcast %cst_122 : f32 to vector<8x1xf32>
    %323 = arith.addf %317, %322 : vector<8x1xf32>
    %324 = math.rsqrt %323 : vector<8x1xf32>
    %325 = vector.broadcast %324 : vector<8x1xf32> to vector<8x32xf32>
    %326 = arith.mulf %321, %325 : vector<8x32xf32>
    %327 = vector.broadcast %306 : vector<1x32xf32> to vector<8x32xf32>
    %328 = arith.addf %326, %327 : vector<8x32xf32>
    %329 = vector.shape_cast %328 : vector<8x32xf32> to vector<1x8x32xf32>
    %cst_123 = arith.constant dense<0.000000e+00> : vector<1x32xf32>
    %330 = vector.multi_reduction <add>, %329, %cst_123 [1] : vector<1x8x32xf32> to vector<1x32xf32>
    %cst_124 = arith.constant 8.000000e+00 : f32
    %331 = vector.broadcast %cst_124 : f32 to vector<1x32xf32>
    %332 = arith.divf %330, %331 : vector<1x32xf32>
    %333 = arith.truncf %332 : vector<1x32xf32> to vector<1x32xbf16>
    %c0_125 = arith.constant 0 : index
    %c0_126 = arith.constant 0 : index
    %334 = vector.load %arg17[%c0_125, %c0_126] : memref<32x32xbf16, #tpu.memory_space<vmem>>, vector<32x32xbf16>
    %cst_127 = arith.constant dense<0.000000e+00> : vector<1x32xf32>
    %335 = tpu.matmul %333, %334, %cst_127 {dimension_numbers = #tpu.dot_dimension_numbers<[1], [0], [0], [1], [0, 0, 1, 1], [], []>} : vector<1x32xbf16>, vector<32x32xbf16>, vector<1x32xf32> -> vector<1x32xf32>
    %c0_128 = arith.constant 0 : index
    %c0_129 = arith.constant 0 : index
    %336 = vector.load %arg18[%c0_128, %c0_129] : memref<1x32xf32, #tpu.memory_space<vmem>>, vector<1x32xf32>
    %337 = arith.addf %335, %336 : vector<1x32xf32>
    %cst_130 = arith.constant 5.000000e-01 : f32
    %338 = vector.broadcast %cst_130 : f32 to vector<1x32xf32>
    %339 = arith.mulf %338, %337 : vector<1x32xf32>
    %cst_131 = arith.constant 1.41421354 : f32
    %340 = vector.broadcast %cst_131 : f32 to vector<1x32xf32>
    %341 = arith.divf %337, %340 : vector<1x32xf32>
    %342 = math.erf %341 : vector<1x32xf32>
    %cst_132 = arith.constant 1.000000e+00 : f32
    %343 = vector.broadcast %cst_132 : f32 to vector<1x32xf32>
    %344 = arith.addf %343, %342 : vector<1x32xf32>
    %345 = arith.mulf %339, %344 : vector<1x32xf32>
    %346 = arith.addf %345, %332 : vector<1x32xf32>
    %347 = arith.truncf %346 : vector<1x32xf32> to vector<1x32xbf16>
    %c0_133 = arith.constant 0 : index
    %c0_134 = arith.constant 0 : index
    %348 = vector.load %arg19[%c0_133, %c0_134] : memref<32x16xbf16, #tpu.memory_space<vmem>>, vector<32x16xbf16>
    %cst_135 = arith.constant dense<0.000000e+00> : vector<1x16xf32>
    %349 = tpu.matmul %347, %348, %cst_135 {dimension_numbers = #tpu.dot_dimension_numbers<[1], [0], [0], [1], [0, 0, 1, 1], [], []>} : vector<1x32xbf16>, vector<32x16xbf16>, vector<1x16xf32> -> vector<1x16xf32>
    %c0_136 = arith.constant 0 : index
    %c0_137 = arith.constant 0 : index
    %350 = vector.load %arg20[%c0_136, %c0_137] : memref<1x16xf32, #tpu.memory_space<vmem>>, vector<1x16xf32>
    %351 = arith.addf %349, %350 : vector<1x16xf32>
    %cst_138 = arith.constant 5.000000e-01 : f32
    %352 = vector.broadcast %cst_138 : f32 to vector<1x16xf32>
    %353 = arith.mulf %352, %351 : vector<1x16xf32>
    %cst_139 = arith.constant 1.41421354 : f32
    %354 = vector.broadcast %cst_139 : f32 to vector<1x16xf32>
    %355 = arith.divf %351, %354 : vector<1x16xf32>
    %356 = math.erf %355 : vector<1x16xf32>
    %cst_140 = arith.constant 1.000000e+00 : f32
    %357 = vector.broadcast %cst_140 : f32 to vector<1x16xf32>
    %358 = arith.addf %357, %356 : vector<1x16xf32>
    %359 = arith.mulf %353, %358 : vector<1x16xf32>
    %360 = arith.truncf %359 : vector<1x16xf32> to vector<1x16xbf16>
    %c0_141 = arith.constant 0 : index
    %c0_142 = arith.constant 0 : index
    %361 = vector.load %arg21[%c0_141, %c0_142] : memref<16x2xbf16, #tpu.memory_space<vmem>>, vector<16x2xbf16>
    %cst_143 = arith.constant dense<0.000000e+00> : vector<1x2xf32>
    %362 = tpu.matmul %360, %361, %cst_143 {dimension_numbers = #tpu.dot_dimension_numbers<[1], [0], [0], [1], [0, 0, 1, 1], [], []>} : vector<1x16xbf16>, vector<16x2xbf16>, vector<1x2xf32> -> vector<1x2xf32>
    %c0_144 = arith.constant 0 : index
    %c0_145 = arith.constant 0 : index
    %363 = vector.load %arg22[%c0_144, %c0_145] : memref<1x2xf32, #tpu.memory_space<vmem>>, vector<1x2xf32>
    %364 = arith.addf %362, %363 : vector<1x2xf32>
    %c0_146 = arith.constant 0 : index
    %c0_147 = arith.constant 0 : index
    %c0_148 = arith.constant 0 : index
    %365 = vector.load %arg23[%c0_146, %c0_147, %c0_148] : memref<1x1x2xf32, #tpu.memory_space<vmem>>, vector<1x1x2xf32>
    %366 = vector.shape_cast %365 : vector<1x1x2xf32> to vector<1x2xf32>
    %367 = vector.shape_cast %364 : vector<1x2xf32> to vector<1x1x2xf32>
    tpu.vector_store %arg23[%c0_146, %c0_147, %c0_148], %367 {strides = array<i32>} : memref<1x1x2xf32, #tpu.memory_space<vmem>>, vector<1x1x2xf32>,
    return
  }
  func.func @transform_0(%arg0: i32) -> (i32, i32, i32) {
    %c0_i32 = arith.constant 0 : i32
    %c0_i32_0 = arith.constant 0 : i32
    %c0_i32_1 = arith.constant 0 : i32
    return %arg0, %c0_i32, %c0_i32_0 : i32, i32, i32
  }
  func.func @transform_1(%arg0: i32) -> (i32, i32, i32) {
    %c0_i32 = arith.constant 0 : i32
    %c0_i32_0 = arith.constant 0 : i32
    %c0_i32_1 = arith.constant 0 : i32
    return %arg0, %c0_i32, %c0_i32_0 : i32, i32, i32
  }
  func.func @transform_2(%arg0: i32) -> (i32, i32, i32) {
    %c0_i32 = arith.constant 0 : i32
    %c0_i32_0 = arith.constant 0 : i32
    %c0_i32_1 = arith.constant 0 : i32
    %c0_i32_2 = arith.constant 0 : i32
    return %c0_i32, %c0_i32_0, %c0_i32_1 : i32, i32, i32
  }
  func.func @transform_3(%arg0: i32) -> (i32, i32, i32) {
    %c0_i32 = arith.constant 0 : i32
    %c0_i32_0 = arith.constant 0 : i32
    %c0_i32_1 = arith.constant 0 : i32
    %c0_i32_2 = arith.constant 0 : i32
    return %c0_i32, %c0_i32_0, %c0_i32_1 : i32, i32, i32
  }
  func.func @transform_4(%arg0: i32) -> (i32, i32, i32) {
    %c0_i32 = arith.constant 0 : i32
    %c0_i32_0 = arith.constant 0 : i32
    %c0_i32_1 = arith.constant 0 : i32
    %c0_i32_2 = arith.constant 0 : i32
    return %c0_i32, %c0_i32_0, %c0_i32_1 : i32, i32, i32
  }
  func.func @transform_5(%arg0: i32) -> (i32, i32, i32) {
    %c0_i32 = arith.constant 0 : i32
    %c0_i32_0 = arith.constant 0 : i32
    %c0_i32_1 = arith.constant 0 : i32
    %c0_i32_2 = arith.constant 0 : i32
    return %c0_i32, %c0_i32_0, %c0_i32_1 : i32, i32, i32
  }
  func.func @transform_6(%arg0: i32) -> (i32, i32, i32) {
    %c0_i32 = arith.constant 0 : i32
    %c0_i32_0 = arith.constant 0 : i32
    %c0_i32_1 = arith.constant 0 : i32
    %c0_i32_2 = arith.constant 0 : i32
    return %c0_i32, %c0_i32_0, %c0_i32_1 : i32, i32, i32
  }
  func.func @transform_7(%arg0: i32) -> (i32, i32, i32) {
    %c0_i32 = arith.constant 0 : i32
    %c0_i32_0 = arith.constant 0 : i32
    %c0_i32_1 = arith.constant 0 : i32
    %c0_i32_2 = arith.constant 0 : i32
    return %c0_i32, %c0_i32_0, %c0_i32_1 : i32, i32, i32
  }
  func.func @transform_8(%arg0: i32) -> (i32, i32, i32) {
    %c0_i32 = arith.constant 0 : i32
    %c0_i32_0 = arith.constant 0 : i32
    %c0_i32_1 = arith.constant 0 : i32
    %c0_i32_2 = arith.constant 0 : i32
    return %c0_i32, %c0_i32_0, %c0_i32_1 : i32, i32, i32
  }
  func.func @transform_9(%arg0: i32) -> (i32, i32, i32) {
    %c0_i32 = arith.constant 0 : i32
    %c0_i32_0 = arith.constant 0 : i32
    %c0_i32_1 = arith.constant 0 : i32
    %c0_i32_2 = arith.constant 0 : i32
    return %c0_i32, %c0_i32_0, %c0_i32_1 : i32, i32, i32
  }
  func.func @transform_10(%arg0: i32) -> (i32, i32, i32) {
    %c0_i32 = arith.constant 0 : i32
    %c0_i32_0 = arith.constant 0 : i32
    %c0_i32_1 = arith.constant 0 : i32
    %c0_i32_2 = arith.constant 0 : i32
    return %c0_i32, %c0_i32_0, %c0_i32_1 : i32, i32, i32
  }
  func.func @transform_11(%arg0: i32) -> (i32, i32, i32) {
    %c0_i32 = arith.constant 0 : i32
    %c0_i32_0 = arith.constant 0 : i32
    %c0_i32_1 = arith.constant 0 : i32
    %c0_i32_2 = arith.constant 0 : i32
    return %c0_i32, %c0_i32_0, %c0_i32_1 : i32, i32, i32
  }
  func.func @transform_12(%arg0: i32) -> (i32, i32, i32) {
    %c0_i32 = arith.constant 0 : i32
    %c0_i32_0 = arith.constant 0 : i32
    %c0_i32_1 = arith.constant 0 : i32
    %c0_i32_2 = arith.constant 0 : i32
    return %c0_i32, %c0_i32_0, %c0_i32_1 : i32, i32, i32
  }
  func.func @transform_13(%arg0: i32) -> (i32, i32, i32) {
    %c0_i32 = arith.constant 0 : i32
    %c0_i32_0 = arith.constant 0 : i32
    %c0_i32_1 = arith.constant 0 : i32
    %c0_i32_2 = arith.constant 0 : i32
    return %c0_i32, %c0_i32_0, %c0_i32_1 : i32, i32, i32
  }
  func.func @transform_14(%arg0: i32) -> (i32, i32) {
    %c0_i32 = arith.constant 0 : i32
    %c0_i32_0 = arith.constant 0 : i32
    %c0_i32_1 = arith.constant 0 : i32
    return %c0_i32, %c0_i32_0 : i32, i32
  }
  func.func @transform_15(%arg0: i32) -> (i32, i32) {
    %c0_i32 = arith.constant 0 : i32
    %c0_i32_0 = arith.constant 0 : i32
    %c0_i32_1 = arith.constant 0 : i32
    return %c0_i32, %c0_i32_0 : i32, i32
  }
  func.func @transform_16(%arg0: i32) -> (i32, i32) {
    %c0_i32 = arith.constant 0 : i32
    %c0_i32_0 = arith.constant 0 : i32
    %c0_i32_1 = arith.constant 0 : i32
    return %c0_i32, %c0_i32_0 : i32, i32
  }
  func.func @transform_17(%arg0: i32) -> (i32, i32) {
    %c0_i32 = arith.constant 0 : i32
    %c0_i32_0 = arith.constant 0 : i32
    %c0_i32_1 = arith.constant 0 : i32
    return %c0_i32, %c0_i32_0 : i32, i32
  }
  func.func @transform_18(%arg0: i32) -> (i32, i32) {
    %c0_i32 = arith.constant 0 : i32
    %c0_i32_0 = arith.constant 0 : i32
    %c0_i32_1 = arith.constant 0 : i32
    return %c0_i32, %c0_i32_0 : i32, i32
  }
  func.func @transform_19(%arg0: i32) -> (i32, i32) {
    %c0_i32 = arith.constant 0 : i32
    %c0_i32_0 = arith.constant 0 : i32
    %c0_i32_1 = arith.constant 0 : i32
    return %c0_i32, %c0_i32_0 : i32, i32
  }
  func.func @transform_20(%arg0: i32) -> (i32, i32) {
    %c0_i32 = arith.constant 0 : i32
    %c0_i32_0 = arith.constant 0 : i32
    %c0_i32_1 = arith.constant 0 : i32
    return %c0_i32, %c0_i32_0 : i32, i32
  }
  func.func @transform_21(%arg0: i32) -> (i32, i32) {
    %c0_i32 = arith.constant 0 : i32
    %c0_i32_0 = arith.constant 0 : i32
    %c0_i32_1 = arith.constant 0 : i32
    return %c0_i32, %c0_i32_0 : i32, i32
  }
  func.func @transform_22(%arg0: i32) -> (i32, i32, i32) {
    %c0_i32 = arith.constant 0 : i32
    %c0_i32_0 = arith.constant 0 : i32
    %c0_i32_1 = arith.constant 0 : i32
    return %arg0, %c0_i32, %c0_i32_0 : i32, i32, i32
  }
}

</mosaic_0001>

<llo_original>
// kernel: tpu_custom_call.1
$region0: #{tpu_custom_call.1}
  #allocation0 [shape = 'u32[]', space=smem, size = 0x4, offset = 0x4, fixed_abs, tag = 'smem constant byte address 0x4 - core index']
  #allocation1 [shape = 'u32[144,128]{1,0:T(1,128)}', space=vmem, size = 0x12000, scoped, tag = 'internal scratch']
  %s0 = inlined_call_operand.vmem [shape: f32[2,8,32], index: 0, kind: input, shape index: {}]
  %s1 = inlined_call_operand.vmem [shape: f32[2,1,8], index: 1, kind: input, shape index: {}]
  %s2 = inlined_call_operand.vmem [shape: f32[2,1,32], index: 2, kind: input, shape index: {}]
  %s3 = inlined_call_operand.vmem [shape: f32[2,1,32], index: 3, kind: input, shape index: {}]
  %s4 = inlined_call_operand.vmem [shape: bf16[2,32,96], index: 4, kind: input, shape index: {}]
  %s5 = inlined_call_operand.vmem [shape: f32[2,1,96], index: 5, kind: input, shape index: {}]
  %s6 = inlined_call_operand.vmem [shape: bf16[2,32,32], index: 6, kind: input, shape index: {}]
  %s7 = inlined_call_operand.vmem [shape: f32[2,1,32], index: 7, kind: input, shape index: {}]
  %s8 = inlined_call_operand.vmem [shape: f32[2,1,32], index: 8, kind: input, shape index: {}]
  %s9 = inlined_call_operand.vmem [shape: f32[2,1,32], index: 9, kind: input, shape index: {}]
  %s10 = inlined_call_operand.vmem [shape: bf16[2,32,128], index: 10, kind: input, shape index: {}]
  %s11 = inlined_call_operand.vmem [shape: f32[2,1,128], index: 11, kind: input, shape index: {}]
  %s12 = inlined_call_operand.vmem [shape: bf16[2,128,32], index: 12, kind: input, shape index: {}]
  %s13 = inlined_call_operand.vmem [shape: f32[2,1,32], index: 13, kind: input, shape index: {}]
  %s14 = inlined_call_operand.vmem [shape: f32[1,32], index: 14, kind: input, shape index: {}]
  %s15 = inlined_call_operand.vmem [shape: f32[1,32], index: 15, kind: input, shape index: {}]
  %s16 = inlined_call_operand.vmem [shape: bf16[32,32], index: 16, kind: input, shape index: {}]
  %s17 = inlined_call_operand.vmem [shape: f32[1,32], index: 17, kind: input, shape index: {}]
  %s18 = inlined_call_operand.vmem [shape: bf16[32,16], index: 18, kind: input, shape index: {}]
  %s19 = inlined_call_operand.vmem [shape: f32[1,16], index: 19, kind: input, shape index: {}]
  %s20 = inlined_call_operand.vmem [shape: bf16[16,2], index: 20, kind: input, shape index: {}]
  %s21 = inlined_call_operand.vmem [shape: f32[1,2], index: 21, kind: input, shape index: {}]
  %s22 = inlined_call_operand.hbm [shape: f32[2,1,2], index: 22, kind: output, shape index: {}]
  %s23 = sld [smem:[#allocation0]]
  $region121: #{tpu_custom_call.1} parent=0
    _
  %s25 = ssub.s32 1, %s23
  %s26 = scalar_select 0, %s25, %s23
  $region1: #{tpu_custom_call.1} parent=0
    #allocation2 [shape = 'u8[1024]{0}', space=vmem, size = 0x400, scoped, tag = 'output window, operand 0']
    #allocation3 [shape = 's32[2]{0}', space=sflag, size = 0x8, scoped, tag = 'scoped memory for tpu_custom_call.1']
    %27 = vsyncpa [#allocation3], 0
    %s28 = scalar_lea.sflag [#allocation3], 1
    %29 = vsyncpa %s28, 0
    loop: start=0, step=1, limit=4
    $region2: #{tpu_custom_call.1} parent=1 // loop_pre_header
      _
    $region3: #{tpu_custom_call.1} parent=1 // loop_header
      %s31 = sphi 0, %s35
      %p32 = scmp.ge.s32.totalorder %s31, 4
      %s41 = sphi 0, %s43
      %s44 = sphi 0, %s41
      %s45 = sphi 0, %s44
      %s61 = sphi 0, %s45
      %s67 = sphi 0, %s69
      %s70 = sphi 0, %s67
      %s71 = sphi 0, %s70
      %s87 = sphi 0, %s71
      %s91 = sphi 0, %s91
      %s93 = sphi 0, %s91
      %s94 = sphi 0, %s93
      %s108 = sphi 0, %s94
      %s112 = sphi 0, %s112
      %s114 = sphi 0, %s112
      %s115 = sphi 0, %s114
      %s129 = sphi 0, %s115
      %s133 = sphi 0, %s133
      %s135 = sphi 0, %s133
      %s136 = sphi 0, %s135
      %s150 = sphi 0, %s136
      %s154 = sphi 0, %s154
      %s156 = sphi 0, %s154
      %s157 = sphi 0, %s156
      %s171 = sphi 0, %s157
      %s175 = sphi 0, %s175
      %s177 = sphi 0, %s175
      %s178 = sphi 0, %s177
      %s192 = sphi 0, %s178
      %s196 = sphi 0, %s196
      %s198 = sphi 0, %s196
      %s199 = sphi 0, %s198
      %s213 = sphi 0, %s199
      %s217 = sphi 0, %s217
      %s219 = sphi 0, %s217
      %s220 = sphi 0, %s219
      %s234 = sphi 0, %s220
      %s238 = sphi 0, %s238
      %s240 = sphi 0, %s238
      %s241 = sphi 0, %s240
      %s255 = sphi 0, %s241
      %s259 = sphi 0, %s259
      %s261 = sphi 0, %s259
      %s262 = sphi 0, %s261
      %s276 = sphi 0, %s262
      %s280 = sphi 0, %s280
      %s282 = sphi 0, %s280
      %s283 = sphi 0, %s282
      %s297 = sphi 0, %s283
      %s301 = sphi 0, %s301
      %s303 = sphi 0, %s301
      %s304 = sphi 0, %s303
      %s318 = sphi 0, %s304
      %s322 = sphi 0, %s322
      %s324 = sphi 0, %s322
      %s325 = sphi 0, %s324
      %s339 = sphi 0, %s325
      %s343 = sphi 0, %s343
      %s345 = sphi 0, %s343
      %s346 = sphi 0, %s345
      %s360 = sphi 0, %s346
      %s364 = sphi 0, %s364
      %s366 = sphi 0, %s364
      %s367 = sphi 0, %s366
      %s381 = sphi 0, %s367
      %s385 = sphi 0, %s385
      %s387 = sphi 0, %s385
      %s388 = sphi 0, %s387
      %s402 = sphi 0, %s388
      %s406 = sphi 0, %s406
      %s408 = sphi 0, %s406
      %s409 = sphi 0, %s408
      %s423 = sphi 0, %s409
      %s427 = sphi 0, %s427
      %s429 = sphi 0, %s427
      %s430 = sphi 0, %s429
      %s444 = sphi 0, %s430
      %s448 = sphi 0, %s448
      %s450 = sphi 0, %s448
      %s451 = sphi 0, %s450
      %s465 = sphi 0, %s451
      %s469 = sphi 0, %s469
      %s471 = sphi 0, %s469
      %s472 = sphi 0, %s471
      %s486 = sphi 0, %s472
      %s490 = sphi 0, %s490
      %s492 = sphi 0, %s490
      %s493 = sphi 0, %s492
      %s507 = sphi 0, %s493
      %s513 = sphi 0, %s515
      %s516 = sphi 0, %s513
      %s517 = sphi 0, %s516
      %s533 = sphi 0, %s517
    $region4: #{tpu_custom_call.1} parent=1 // loop_header_branch
      %34 = sbr.rel (%p32) target = $region8
    $region5: #{tpu_custom_call.1} parent=1 // loop_body
      %s36 = ssub.s32 %s31, 1
      %s37 = ssub.s32 %s31, 2
      %s38 = sadd.s32 %s31, 1
      %s39 = ssub.s32 %s31, %s38
      %p40 = scmp.eq.s32.totalorder %s39, 0
      %s42 = sadd.s32 %s41, 1
      %s43 = scalar_select %p40, %s41, %s42
      %p46 = pneg %p40
      %p47 = scmp.eq.s32.totalorder %s31, 1
      %p48 = por %p46, %p47
      %p49 = scmp.ne.s32.totalorder %s41, %s44
      %p50 = scmp.eq.s32.totalorder %s31, 0
      %p51 = por %p49, %p50
      %p52 = scmp.ne.s32.totalorder %s41, %s44
      %p53 = scmp.eq.s32.totalorder %s36, 1
      %p54 = por %p52, %p53
      %p55 = scmp.ne.s32.totalorder %s44, %s45
      %p56 = scmp.eq.s32.totalorder %s36, 0
      %p57 = por %p55, %p56
      %p58 = scmp.ne.s32.totalorder %s44, %s45
      %p59 = scmp.eq.s32.totalorder %s37, 1
      %p60 = por %p58, %p59
      %p62 = scmp.ne.s32.totalorder %s45, %s61
      %p63 = scmp.eq.s32.totalorder %s37, 0
      %p64 = por %p62, %p63
      %s65 = ssub.s32 %s31, %s38
      %p66 = scmp.eq.s32.totalorder %s65, 0
      %s68 = sadd.s32 %s67, 1
      %s69 = scalar_select %p66, %s67, %s68
      %p72 = pneg %p66
      %p73 = scmp.eq.s32.totalorder %s31, 1
      %p74 = por %p72, %p73
      %p75 = scmp.ne.s32.totalorder %s67, %s70
      %p76 = scmp.eq.s32.totalorder %s31, 0
      %p77 = por %p75, %p76
      %p78 = scmp.ne.s32.totalorder %s67, %s70
      %p79 = scmp.eq.s32.totalorder %s36, 1
      %p80 = por %p78, %p79
      %p81 = scmp.ne.s32.totalorder %s70, %s71
      %p82 = scmp.eq.s32.totalorder %s36, 0
      %p83 = por %p81, %p82
      %p84 = scmp.ne.s32.totalorder %s70, %s71
      %p85 = scmp.eq.s32.totalorder %s37, 1
      %p86 = por %p84, %p85
      %p88 = scmp.ne.s32.totalorder %s71, %s87
      %p89 = scmp.eq.s32.totalorder %s37, 0
      %p90 = por %p88, %p89
      %s92 = sadd.s32 %s91, 1
      %p95 = scmp.eq.s32.totalorder %s31, 1
      %p96 = scmp.ne.s32.totalorder %s91, %s93
      %p97 = scmp.eq.s32.totalorder %s31, 0
      %p98 = por %p96, %p97
      %p99 = scmp.ne.s32.totalorder %s91, %s93
      %p100 = scmp.eq.s32.totalorder %s36, 1
      %p101 = por %p99, %p100
      %p102 = scmp.ne.s32.totalorder %s93, %s94
      %p103 = scmp.eq.s32.totalorder %s36, 0
      %p104 = por %p102, %p103
      %p105 = scmp.ne.s32.totalorder %s93, %s94
      %p106 = scmp.eq.s32.totalorder %s37, 1
      %p107 = por %p105, %p106
      %p109 = scmp.ne.s32.totalorder %s94, %s108
      %p110 = scmp.eq.s32.totalorder %s37, 0
      %p111 = por %p109, %p110
      %s113 = sadd.s32 %s112, 1
      %p116 = scmp.eq.s32.totalorder %s31, 1
      %p117 = scmp.ne.s32.totalorder %s112, %s114
      %p118 = scmp.eq.s32.totalorder %s31, 0
      %p119 = por %p117, %p118
      %p120 = scmp.ne.s32.totalorder %s112, %s114
      %p121 = scmp.eq.s32.totalorder %s36, 1
      %p122 = por %p120, %p121
      %p123 = scmp.ne.s32.totalorder %s114, %s115
      %p124 = scmp.eq.s32.totalorder %s36, 0
      %p125 = por %p123, %p124
      %p126 = scmp.ne.s32.totalorder %s114, %s115
      %p127 = scmp.eq.s32.totalorder %s37, 1
      %p128 = por %p126, %p127
      %p130 = scmp.ne.s32.totalorder %s115, %s129
      %p131 = scmp.eq.s32.totalorder %s37, 0
      %p132 = por %p130, %p131
      %s134 = sadd.s32 %s133, 1
      %p137 = scmp.eq.s32.totalorder %s31, 1
      %p138 = scmp.ne.s32.totalorder %s133, %s135
      %p139 = scmp.eq.s32.totalorder %s31, 0
      %p140 = por %p138, %p139
      %p141 = scmp.ne.s32.totalorder %s133, %s135
      %p142 = scmp.eq.s32.totalorder %s36, 1
      %p143 = por %p141, %p142
      %p144 = scmp.ne.s32.totalorder %s135, %s136
      %p145 = scmp.eq.s32.totalorder %s36, 0
      %p146 = por %p144, %p145
      %p147 = scmp.ne.s32.totalorder %s135, %s136
      %p148 = scmp.eq.s32.totalorder %s37, 1
      %p149 = por %p147, %p148
      %p151 = scmp.ne.s32.totalorder %s136, %s150
      %p152 = scmp.eq.s32.totalorder %s37, 0
      %p153 = por %p151, %p152
      %s155 = sadd.s32 %s154, 1
      %p158 = scmp.eq.s32.totalorder %s31, 1
      %p159 = scmp.ne.s32.totalorder %s154, %s156
      %p160 = scmp.eq.s32.totalorder %s31, 0
      %p161 = por %p159, %p160
      %p162 = scmp.ne.s32.totalorder %s154, %s156
      %p163 = scmp.eq.s32.totalorder %s36, 1
      %p164 = por %p162, %p163
      %p165 = scmp.ne.s32.totalorder %s156, %s157
      %p166 = scmp.eq.s32.totalorder %s36, 0
      %p167 = por %p165, %p166
      %p168 = scmp.ne.s32.totalorder %s156, %s157
      %p169 = scmp.eq.s32.totalorder %s37, 1
      %p170 = por %p168, %p169
      %p172 = scmp.ne.s32.totalorder %s157, %s171
      %p173 = scmp.eq.s32.totalorder %s37, 0
      %p174 = por %p172, %p173
      %s176 = sadd.s32 %s175, 1
      %p179 = scmp.eq.s32.totalorder %s31, 1
      %p180 = scmp.ne.s32.totalorder %s175, %s177
      %p181 = scmp.eq.s32.totalorder %s31, 0
      %p182 = por %p180, %p181
      %p183 = scmp.ne.s32.totalorder %s175, %s177
      %p184 = scmp.eq.s32.totalorder %s36, 1
      %p185 = por %p183, %p184
      %p186 = scmp.ne.s32.totalorder %s177, %s178
      %p187 = scmp.eq.s32.totalorder %s36, 0
      %p188 = por %p186, %p187
      %p189 = scmp.ne.s32.totalorder %s177, %s178
      %p190 = scmp.eq.s32.totalorder %s37, 1
      %p191 = por %p189, %p190
      %p193 = scmp.ne.s32.totalorder %s178, %s192
      %p194 = scmp.eq.s32.totalorder %s37, 0
      %p195 = por %p193, %p194
      %s197 = sadd.s32 %s196, 1
      %p200 = scmp.eq.s32.totalorder %s31, 1
      %p201 = scmp.ne.s32.totalorder %s196, %s198
      %p202 = scmp.eq.s32.totalorder %s31, 0
      %p203 = por %p201, %p202
      %p204 = scmp.ne.s32.totalorder %s196, %s198
      %p205 = scmp.eq.s32.totalorder %s36, 1
      %p206 = por %p204, %p205
      %p207 = scmp.ne.s32.totalorder %s198, %s199
      %p208 = scmp.eq.s32.totalorder %s36, 0
      %p209 = por %p207, %p208
      %p210 = scmp.ne.s32.totalorder %s198, %s199
      %p211 = scmp.eq.s32.totalorder %s37, 1
      %p212 = por %p210, %p211
      %p214 = scmp.ne.s32.totalorder %s199, %s213
      %p215 = scmp.eq.s32.totalorder %s37, 0
      %p216 = por %p214, %p215
      %s218 = sadd.s32 %s217, 1
      %p221 = scmp.eq.s32.totalorder %s31, 1
      %p222 = scmp.ne.s32.totalorder %s217, %s219
      %p223 = scmp.eq.s32.totalorder %s31, 0
      %p224 = por %p222, %p223
      %p225 = scmp.ne.s32.totalorder %s217, %s219
      %p226 = scmp.eq.s32.totalorder %s36, 1
      %p227 = por %p225, %p226
      %p228 = scmp.ne.s32.totalorder %s219, %s220
      %p229 = scmp.eq.s32.totalorder %s36, 0
      %p230 = por %p228, %p229
      %p231 = scmp.ne.s32.totalorder %s219, %s220
      %p232 = scmp.eq.s32.totalorder %s37, 1
      %p233 = por %p231, %p232
      %p235 = scmp.ne.s32.totalorder %s220, %s234
      %p236 = scmp.eq.s32.totalorder %s37, 0
      %p237 = por %p235, %p236
      %s239 = sadd.s32 %s238, 1
      %p242 = scmp.eq.s32.totalorder %s31, 1
      %p243 = scmp.ne.s32.totalorder %s238, %s240
      %p244 = scmp.eq.s32.totalorder %s31, 0
      %p245 = por %p243, %p244
      %p246 = scmp.ne.s32.totalorder %s238, %s240
      %p247 = scmp.eq.s32.totalorder %s36, 1
      %p248 = por %p246, %p247
      %p249 = scmp.ne.s32.totalorder %s240, %s241
      %p250 = scmp.eq.s32.totalorder %s36, 0
      %p251 = por %p249, %p250
      %p252 = scmp.ne.s32.totalorder %s240, %s241
      %p253 = scmp.eq.s32.totalorder %s37, 1
      %p254 = por %p252, %p253
      %p256 = scmp.ne.s32.totalorder %s241, %s255
      %p257 = scmp.eq.s32.totalorder %s37, 0
      %p258 = por %p256, %p257
      %s260 = sadd.s32 %s259, 1
      %p263 = scmp.eq.s32.totalorder %s31, 1
      %p264 = scmp.ne.s32.totalorder %s259, %s261
      %p265 = scmp.eq.s32.totalorder %s31, 0
      %p266 = por %p264, %p265
      %p267 = scmp.ne.s32.totalorder %s259, %s261
      %p268 = scmp.eq.s32.totalorder %s36, 1
      %p269 = por %p267, %p268
      %p270 = scmp.ne.s32.totalorder %s261, %s262
      %p271 = scmp.eq.s32.totalorder %s36, 0
      %p272 = por %p270, %p271
      %p273 = scmp.ne.s32.totalorder %s261, %s262
      %p274 = scmp.eq.s32.totalorder %s37, 1
      %p275 = por %p273, %p274
      %p277 = scmp.ne.s32.totalorder %s262, %s276
      %p278 = scmp.eq.s32.totalorder %s37, 0
      %p279 = por %p277, %p278
      %s281 = sadd.s32 %s280, 1
      %p284 = scmp.eq.s32.totalorder %s31, 1
      %p285 = scmp.ne.s32.totalorder %s280, %s282
      %p286 = scmp.eq.s32.totalorder %s31, 0
      %p287 = por %p285, %p286
      %p288 = scmp.ne.s32.totalorder %s280, %s282
      %p289 = scmp.eq.s32.totalorder %s36, 1
      %p290 = por %p288, %p289
      %p291 = scmp.ne.s32.totalorder %s282, %s283
      %p292 = scmp.eq.s32.totalorder %s36, 0
      %p293 = por %p291, %p292
      %p294 = scmp.ne.s32.totalorder %s282, %s283
      %p295 = scmp.eq.s32.totalorder %s37, 1
      %p296 = por %p294, %p295
      %p298 = scmp.ne.s32.totalorder %s283, %s297
      %p299 = scmp.eq.s32.totalorder %s37, 0
      %p300 = por %p298, %p299
      %s302 = sadd.s32 %s301, 1
      %p305 = scmp.eq.s32.totalorder %s31, 1
      %p306 = scmp.ne.s32.totalorder %s301, %s303
      %p307 = scmp.eq.s32.totalorder %s31, 0
      %p308 = por %p306, %p307
      %p309 = scmp.ne.s32.totalorder %s301, %s303
      %p310 = scmp.eq.s32.totalorder %s36, 1
      %p311 = por %p309, %p310
      %p312 = scmp.ne.s32.totalorder %s303, %s304
      %p313 = scmp.eq.s32.totalorder %s36, 0
      %p314 = por %p312, %p313
      %p315 = scmp.ne.s32.totalorder %s303, %s304
      %p316 = scmp.eq.s32.totalorder %s37, 1
      %p317 = por %p315, %p316
      %p319 = scmp.ne.s32.totalorder %s304, %s318
      %p320 = scmp.eq.s32.totalorder %s37, 0
      %p321 = por %p319, %p320
      %s323 = sadd.s32 %s322, 1
      %p326 = scmp.eq.s32.totalorder %s31, 1
      %p327 = scmp.ne.s32.totalorder %s322, %s324
      %p328 = scmp.eq.s32.totalorder %s31, 0
      %p329 = por %p327, %p328
      %p330 = scmp.ne.s32.totalorder %s322, %s324
      %p331 = scmp.eq.s32.totalorder %s36, 1
      %p332 = por %p330, %p331
      %p333 = scmp.ne.s32.totalorder %s324, %s325
      %p334 = scmp.eq.s32.totalorder %s36, 0
      %p335 = por %p333, %p334
      %p336 = scmp.ne.s32.totalorder %s324, %s325
      %p337 = scmp.eq.s32.totalorder %s37, 1
      %p338 = por %p336, %p337
      %p340 = scmp.ne.s32.totalorder %s325, %s339
      %p341 = scmp.eq.s32.totalorder %s37, 0
      %p342 = por %p340, %p341
      %s344 = sadd.s32 %s343, 1
      %p347 = scmp.eq.s32.totalorder %s31, 1
      %p348 = scmp.ne.s32.totalorder %s343, %s345
      %p349 = scmp.eq.s32.totalorder %s31, 0
      %p350 = por %p348, %p349
      %p351 = scmp.ne.s32.totalorder %s343, %s345
      %p352 = scmp.eq.s32.totalorder %s36, 1
      %p353 = por %p351, %p352
      %p354 = scmp.ne.s32.totalorder %s345, %s346
      %p355 = scmp.eq.s32.totalorder %s36, 0
      %p356 = por %p354, %p355
      %p357 = scmp.ne.s32.totalorder %s345, %s346
      %p358 = scmp.eq.s32.totalorder %s37, 1
      %p359 = por %p357, %p358
      %p361 = scmp.ne.s32.totalorder %s346, %s360
      %p362 = scmp.eq.s32.totalorder %s37, 0
      %p363 = por %p361, %p362
      %s365 = sadd.s32 %s364, 1
      %p368 = scmp.eq.s32.totalorder %s31, 1
      %p369 = scmp.ne.s32.totalorder %s364, %s366
      %p370 = scmp.eq.s32.totalorder %s31, 0
      %p371 = por %p369, %p370
      %p372 = scmp.ne.s32.totalorder %s364, %s366
      %p373 = scmp.eq.s32.totalorder %s36, 1
      %p374 = por %p372, %p373
      %p375 = scmp.ne.s32.totalorder %s366, %s367
      %p376 = scmp.eq.s32.totalorder %s36, 0
      %p377 = por %p375, %p376
      %p378 = scmp.ne.s32.totalorder %s366, %s367
      %p379 = scmp.eq.s32.totalorder %s37, 1
      %p380 = por %p378, %p379
      %p382 = scmp.ne.s32.totalorder %s367, %s381
      %p383 = scmp.eq.s32.totalorder %s37, 0
      %p384 = por %p382, %p383
      %s386 = sadd.s32 %s385, 1
      %p389 = scmp.eq.s32.totalorder %s31, 1
      %p390 = scmp.ne.s32.totalorder %s385, %s387
      %p391 = scmp.eq.s32.totalorder %s31, 0
      %p392 = por %p390, %p391
      %p393 = scmp.ne.s32.totalorder %s385, %s387
      %p394 = scmp.eq.s32.totalorder %s36, 1
      %p395 = por %p393, %p394
      %p396 = scmp.ne.s32.totalorder %s387, %s388
      %p397 = scmp.eq.s32.totalorder %s36, 0
      %p398 = por %p396, %p397
      %p399 = scmp.ne.s32.totalorder %s387, %s388
      %p400 = scmp.eq.s32.totalorder %s37, 1
      %p401 = por %p399, %p400
      %p403 = scmp.ne.s32.totalorder %s388, %s402
      %p404 = scmp.eq.s32.totalorder %s37, 0
      %p405 = por %p403, %p404
      %s407 = sadd.s32 %s406, 1
      %p410 = scmp.eq.s32.totalorder %s31, 1
      %p411 = scmp.ne.s32.totalorder %s406, %s408
      %p412 = scmp.eq.s32.totalorder %s31, 0
      %p413 = por %p411, %p412
      %p414 = scmp.ne.s32.totalorder %s406, %s408
      %p415 = scmp.eq.s32.totalorder %s36, 1
      %p416 = por %p414, %p415
      %p417 = scmp.ne.s32.totalorder %s408, %s409
      %p418 = scmp.eq.s32.totalorder %s36, 0
      %p419 = por %p417, %p418
      %p420 = scmp.ne.s32.totalorder %s408, %s409
      %p421 = scmp.eq.s32.totalorder %s37, 1
      %p422 = por %p420, %p421
      %p424 = scmp.ne.s32.totalorder %s409, %s423
      %p425 = scmp.eq.s32.totalorder %s37, 0
      %p426 = por %p424, %p425
      %s428 = sadd.s32 %s427, 1
      %p431 = scmp.eq.s32.totalorder %s31, 1
      %p432 = scmp.ne.s32.totalorder %s427, %s429
      %p433 = scmp.eq.s32.totalorder %s31, 0
      %p434 = por %p432, %p433
      %p435 = scmp.ne.s32.totalorder %s427, %s429
      %p436 = scmp.eq.s32.totalorder %s36, 1
      %p437 = por %p435, %p436
      %p438 = scmp.ne.s32.totalorder %s429, %s430
      %p439 = scmp.eq.s32.totalorder %s36, 0
      %p440 = por %p438, %p439
      %p441 = scmp.ne.s32.totalorder %s429, %s430
      %p442 = scmp.eq.s32.totalorder %s37, 1
      %p443 = por %p441, %p442
      %p445 = scmp.ne.s32.totalorder %s430, %s444
      %p446 = scmp.eq.s32.totalorder %s37, 0
      %p447 = por %p445, %p446
      %s449 = sadd.s32 %s448, 1
      %p452 = scmp.eq.s32.totalorder %s31, 1
      %p453 = scmp.ne.s32.totalorder %s448, %s450
      %p454 = scmp.eq.s32.totalorder %s31, 0
      %p455 = por %p453, %p454
      %p456 = scmp.ne.s32.totalorder %s448, %s450
      %p457 = scmp.eq.s32.totalorder %s36, 1
      %p458 = por %p456, %p457
      %p459 = scmp.ne.s32.totalorder %s450, %s451
      %p460 = scmp.eq.s32.totalorder %s36, 0
      %p461 = por %p459, %p460
      %p462 = scmp.ne.s32.totalorder %s450, %s451
      %p463 = scmp.eq.s32.totalorder %s37, 1
      %p464 = por %p462, %p463
      %p466 = scmp.ne.s32.totalorder %s451, %s465
      %p467 = scmp.eq.s32.totalorder %s37, 0
      %p468 = por %p466, %p467
      %s470 = sadd.s32 %s469, 1
      %p473 = scmp.eq.s32.totalorder %s31, 1
      %p474 = scmp.ne.s32.totalorder %s469, %s471
      %p475 = scmp.eq.s32.totalorder %s31, 0
      %p476 = por %p474, %p475
      %p477 = scmp.ne.s32.totalorder %s469, %s471
      %p478 = scmp.eq.s32.totalorder %s36, 1
      %p479 = por %p477, %p478
      %p480 = scmp.ne.s32.totalorder %s471, %s472
      %p481 = scmp.eq.s32.totalorder %s36, 0
      %p482 = por %p480, %p481
      %p483 = scmp.ne.s32.totalorder %s471, %s472
      %p484 = scmp.eq.s32.totalorder %s37, 1
      %p485 = por %p483, %p484
      %p487 = scmp.ne.s32.totalorder %s472, %s486
      %p488 = scmp.eq.s32.totalorder %s37, 0
      %p489 = por %p487, %p488
      %s491 = sadd.s32 %s490, 1
      %p494 = scmp.eq.s32.totalorder %s31, 1
      %p495 = scmp.ne.s32.totalorder %s490, %s492
      %p496 = scmp.eq.s32.totalorder %s31, 0
      %p497 = por %p495, %p496
      %p498 = scmp.ne.s32.totalorder %s490, %s492
      %p499 = scmp.eq.s32.totalorder %s36, 1
      %p500 = por %p498, %p499
      %p501 = scmp.ne.s32.totalorder %s492, %s493
      %p502 = scmp.eq.s32.totalorder %s36, 0
      %p503 = por %p501, %p502
      %p504 = scmp.ne.s32.totalorder %s492, %s493
      %p505 = scmp.eq.s32.totalorder %s37, 1
      %p506 = por %p504, %p505
      %p508 = scmp.ne.s32.totalorder %s493, %s507
      %p509 = scmp.eq.s32.totalorder %s37, 0
      %p510 = por %p508, %p509
      %s511 = ssub.s32 %s31, %s38
      %p512 = scmp.eq.s32.totalorder %s511, 0
      %s514 = sadd.s32 %s513, 1
      %s515 = scalar_select %p512, %s513, %s514
      %p518 = pneg %p512
      %p519 = scmp.eq.s32.totalorder %s31, 1
      %p520 = por %p518, %p519
      %p521 = scmp.ne.s32.totalorder %s513, %s516
      %p522 = scmp.eq.s32.totalorder %s31, 0
      %p523 = por %p521, %p522
      %p524 = scmp.ne.s32.totalorder %s513, %s516
      %p525 = scmp.eq.s32.totalorder %s36, 1
      %p526 = por %p524, %p525
      %p527 = scmp.ne.s32.totalorder %s516, %s517
      %p528 = scmp.eq.s32.totalorder %s36, 0
      %p529 = por %p527, %p528
      %p530 = scmp.ne.s32.totalorder %s516, %s517
      %p531 = scmp.eq.s32.totalorder %s37, 1
      %p532 = por %p530, %p531
      %p534 = scmp.ne.s32.totalorder %s517, %s533
      %p535 = scmp.eq.s32.totalorder %s37, 0
      %p536 = por %p534, %p535
      %p537 = scmp.le.s32.totalorder 1, %s31
      %p538 = scmp.lt.s32.totalorder %s31, 3
      %p539 = pnand %p537, %p538
      %p540 = pneg %p539
      // Predicated region
      $region9: #{tpu_custom_call.1} parent=5 // pred_check
        _
      $region10: #{tpu_custom_call.1} parent=5 // pred_check_branch
        %542 = sbr.rel (%p539) target = $region12
      $region11: #{tpu_custom_call.1} parent=5 // pred_region
        %s543 = ssub.s32 %s31, 1
        // Predicated region
        $region13: #{tpu_custom_call.1} parent=11 // pred_check
          %p544 = pneg %p104
        $region14: #{tpu_custom_call.1} parent=11 // pred_check_branch
          %546 = sbr.rel (%p544) target = $region16
        $region15: #{tpu_custom_call.1} parent=11 // pred_region
          _
        $region16: #{tpu_custom_call.1} parent=11 // pred_fallthru
          _
        // Predicated region
        $region17: #{tpu_custom_call.1} parent=11 // pred_check
          %p547 = pneg %p125
        $region18: #{tpu_custom_call.1} parent=11 // pred_check_branch
          %549 = sbr.rel (%p547) target = $region20
        $region19: #{tpu_custom_call.1} parent=11 // pred_region
          _
        $region20: #{tpu_custom_call.1} parent=11 // pred_fallthru
          _
        // Predicated region
        $region21: #{tpu_custom_call.1} parent=11 // pred_check
          %p550 = pneg %p146
        $region22: #{tpu_custom_call.1} parent=11 // pred_check_branch
          %552 = sbr.rel (%p550) target = $region24
        $region23: #{tpu_custom_call.1} parent=11 // pred_region
          _
        $region24: #{tpu_custom_call.1} parent=11 // pred_fallthru
          _
        // Predicated region
        $region25: #{tpu_custom_call.1} parent=11 // pred_check
          %p553 = pneg %p167
        $region26: #{tpu_custom_call.1} parent=11 // pred_check_branch
          %555 = sbr.rel (%p553) target = $region28
        $region27: #{tpu_custom_call.1} parent=11 // pred_region
          _
        $region28: #{tpu_custom_call.1} parent=11 // pred_fallthru
          _
        // Predicated region
        $region29: #{tpu_custom_call.1} parent=11 // pred_check
          %p556 = pneg %p188
        $region30: #{tpu_custom_call.1} parent=11 // pred_check_branch
          %558 = sbr.rel (%p556) target = $region32
        $region31: #{tpu_custom_call.1} parent=11 // pred_region
          _
        $region32: #{tpu_custom_call.1} parent=11 // pred_fallthru
          _
        // Predicated region
        $region33: #{tpu_custom_call.1} parent=11 // pred_check
          %p559 = pneg %p209
        $region34: #{tpu_custom_call.1} parent=11 // pred_check_branch
          %561 = sbr.rel (%p559) target = $region36
        $region35: #{tpu_custom_call.1} parent=11 // pred_region
          _
        $region36: #{tpu_custom_call.1} parent=11 // pred_fallthru
          _
        // Predicated region
        $region37: #{tpu_custom_call.1} parent=11 // pred_check
          %p562 = pneg %p230
        $region38: #{tpu_custom_call.1} parent=11 // pred_check_branch
          %564 = sbr.rel (%p562) target = $region40
        $region39: #{tpu_custom_call.1} parent=11 // pred_region
          _
        $region40: #{tpu_custom_call.1} parent=11 // pred_fallthru
          _
        // Predicated region
        $region41: #{tpu_custom_call.1} parent=11 // pred_check
          %p565 = pneg %p251
        $region42: #{tpu_custom_call.1} parent=11 // pred_check_branch
          %567 = sbr.rel (%p565) target = $region44
        $region43: #{tpu_custom_call.1} parent=11 // pred_region
          _
        $region44: #{tpu_custom_call.1} parent=11 // pred_fallthru
          _
        // Predicated region
        $region45: #{tpu_custom_call.1} parent=11 // pred_check
          %p568 = pneg %p272
        $region46: #{tpu_custom_call.1} parent=11 // pred_check_branch
          %570 = sbr.rel (%p568) target = $region48
        $region47: #{tpu_custom_call.1} parent=11 // pred_region
          _
        $region48: #{tpu_custom_call.1} parent=11 // pred_fallthru
          _
        // Predicated region
        $region49: #{tpu_custom_call.1} parent=11 // pred_check
          %p571 = pneg %p293
        $region50: #{tpu_custom_call.1} parent=11 // pred_check_branch
          %573 = sbr.rel (%p571) target = $region52
        $region51: #{tpu_custom_call.1} parent=11 // pred_region
          _
        $region52: #{tpu_custom_call.1} parent=11 // pred_fallthru
          _
        // Predicated region
        $region53: #{tpu_custom_call.1} parent=11 // pred_check
          %p574 = pneg %p314
        $region54: #{tpu_custom_call.1} parent=11 // pred_check_branch
          %576 = sbr.rel (%p574) target = $region56
        $region55: #{tpu_custom_call.1} parent=11 // pred_region
          _
        $region56: #{tpu_custom_call.1} parent=11 // pred_fallthru
          _
        // Predicated region
        $region57: #{tpu_custom_call.1} parent=11 // pred_check
          %p577 = pneg %p335
        $region58: #{tpu_custom_call.1} parent=11 // pred_check_branch
          %579 = sbr.rel (%p577) target = $region60
        $region59: #{tpu_custom_call.1} parent=11 // pred_region
          _
        $region60: #{tpu_custom_call.1} parent=11 // pred_fallthru
          _
        // Predicated region
        $region61: #{tpu_custom_call.1} parent=11 // pred_check
          %p580 = pneg %p356
        $region62: #{tpu_custom_call.1} parent=11 // pred_check_branch
          %582 = sbr.rel (%p580) target = $region64
        $region63: #{tpu_custom_call.1} parent=11 // pred_region
          _
        $region64: #{tpu_custom_call.1} parent=11 // pred_fallthru
          _
        // Predicated region
        $region65: #{tpu_custom_call.1} parent=11 // pred_check
          %p583 = pneg %p377
        $region66: #{tpu_custom_call.1} parent=11 // pred_check_branch
          %585 = sbr.rel (%p583) target = $region68
        $region67: #{tpu_custom_call.1} parent=11 // pred_region
          _
        $region68: #{tpu_custom_call.1} parent=11 // pred_fallthru
          _
        // Predicated region
        $region69: #{tpu_custom_call.1} parent=11 // pred_check
          %p586 = pneg %p398
        $region70: #{tpu_custom_call.1} parent=11 // pred_check_branch
          %588 = sbr.rel (%p586) target = $region72
        $region71: #{tpu_custom_call.1} parent=11 // pred_region
          _
        $region72: #{tpu_custom_call.1} parent=11 // pred_fallthru
          _
        // Predicated region
        $region73: #{tpu_custom_call.1} parent=11 // pred_check
          %p589 = pneg %p419
        $region74: #{tpu_custom_call.1} parent=11 // pred_check_branch
          %591 = sbr.rel (%p589) target = $region76
        $region75: #{tpu_custom_call.1} parent=11 // pred_region
          _
        $region76: #{tpu_custom_call.1} parent=11 // pred_fallthru
          _
        // Predicated region
        $region77: #{tpu_custom_call.1} parent=11 // pred_check
          %p592 = pneg %p440
        $region78: #{tpu_custom_call.1} parent=11 // pred_check_branch
          %594 = sbr.rel (%p592) target = $region80
        $region79: #{tpu_custom_call.1} parent=11 // pred_region
          _
        $region80: #{tpu_custom_call.1} parent=11 // pred_fallthru
          _
        // Predicated region
        $region81: #{tpu_custom_call.1} parent=11 // pred_check
          %p595 = pneg %p461
        $region82: #{tpu_custom_call.1} parent=11 // pred_check_branch
          %597 = sbr.rel (%p595) target = $region84
        $region83: #{tpu_custom_call.1} parent=11 // pred_region
          _
        $region84: #{tpu_custom_call.1} parent=11 // pred_fallthru
          _
        // Predicated region
        $region85: #{tpu_custom_call.1} parent=11 // pred_check
          %p598 = pneg %p482
        $region86: #{tpu_custom_call.1} parent=11 // pred_check_branch
          %600 = sbr.rel (%p598) target = $region88
        $region87: #{tpu_custom_call.1} parent=11 // pred_region
          _
        $region88: #{tpu_custom_call.1} parent=11 // pred_fallthru
          _
        // Predicated region
        $region89: #{tpu_custom_call.1} parent=11 // pred_check
          %p601 = pneg %p503
        $region90: #{tpu_custom_call.1} parent=11 // pred_check_branch
          %603 = sbr.rel (%p601) target = $region92
        $region91: #{tpu_custom_call.1} parent=11 // pred_region
          _
        $region92: #{tpu_custom_call.1} parent=11 // pred_fallthru
          _
      $region12: #{tpu_custom_call.1} parent=5 // pred_fallthru
        _
      %p604 = scmp.lt.s32.totalorder %s31, 2
      // Predicated region
      $region93: #{tpu_custom_call.1} parent=5 // pred_check
        %p605 = pneg %p604
      $region94: #{tpu_custom_call.1} parent=5 // pred_check_branch
        %607 = sbr.rel (%p605) target = $region96
      $region95: #{tpu_custom_call.1} parent=5 // pred_region
        // Predicated region
        $region97: #{tpu_custom_call.1} parent=95 // pred_check
          %p608 = pneg %p51
        $region98: #{tpu_custom_call.1} parent=95 // pred_check_branch
          %610 = sbr.rel (%p608) target = $region100
        $region99: #{tpu_custom_call.1} parent=95 // pred_region
          %p611 = scmp.lt.s32.totalorder %s31, 1
          %s612 = scalar_select %p611, %s31, 1
          %s613 = smul.addr %s612, 8
          %s614 = scalar_lea.vmem %s0, %s613
        $region100: #{tpu_custom_call.1} parent=95 // pred_fallthru
          _
        // Predicated region
        $region101: #{tpu_custom_call.1} parent=95 // pred_check
          %p615 = pneg %p77
        $region102: #{tpu_custom_call.1} parent=95 // pred_check_branch
          %617 = sbr.rel (%p615) target = $region104
        $region103: #{tpu_custom_call.1} parent=95 // pred_region
          %p618 = scmp.lt.s32.totalorder %s31, 1
          %s619 = scalar_select %p618, %s31, 1
          %s620 = scalar_lea.vmem %s1, %s619
        $region104: #{tpu_custom_call.1} parent=95 // pred_fallthru
          _
      $region96: #{tpu_custom_call.1} parent=5 // pred_fallthru
        _
      %p621 = scmp.le.s32.totalorder 1, %s31
      %p622 = scmp.lt.s32.totalorder %s31, 3
      %p623 = pnand %p621, %p622
      %p624 = pneg %p623
      // Predicated region
      $region105: #{tpu_custom_call.1} parent=5 // pred_check
        _
      $region106: #{tpu_custom_call.1} parent=5 // pred_check_branch
        %626 = sbr.rel (%p623) target = $region108
      $region107: #{tpu_custom_call.1} parent=5 // pred_region
        %s627 = ssub.s32 %s31, 1
        %p628 = scmp.lt.s32.totalorder %s36, 1
        %s629 = scalar_select %p628, %s36, 1
        %s630 = smul.addr %s629, 8
        %s631 = scalar_lea.vmem %s0, %s630
        %p632 = pneg %p57
        %p633 = pneg %p54
        %p634 = scmp.lt.s32.totalorder %s36, 1
        %s635 = scalar_select %p634, %s36, 1
        %s636 = scalar_lea.vmem %s1, %s635
        %p637 = pneg %p83
        %p638 = pneg %p80
        %p639 = pneg %p104
        %p640 = pneg %p101
        %p641 = pneg %p125
        %p642 = pneg %p122
        %p643 = pneg %p146
        %p644 = pneg %p143
        %p645 = pneg %p167
        %p646 = pneg %p164
        %p647 = pneg %p188
        %p648 = pneg %p185
        %p649 = pneg %p209
        %p650 = pneg %p206
        %p651 = pneg %p230
        %p652 = pneg %p227
        %p653 = pneg %p251
        %p654 = pneg %p248
        %p655 = pneg %p272
        %p656 = pneg %p269
        %p657 = pneg %p293
        %p658 = pneg %p290
        %p659 = pneg %p314
        %p660 = pneg %p311
        %p661 = pneg %p335
        %p662 = pneg %p332
        %p663 = pneg %p356
        %p664 = pneg %p353
        %p665 = pneg %p377
        %p666 = pneg %p374
        %p667 = pneg %p398
        %p668 = pneg %p395
        %p669 = pneg %p419
        %p670 = pneg %p416
        %p671 = pneg %p440
        %p672 = pneg %p437
        %p673 = pneg %p461
        %p674 = pneg %p458
        %p675 = pneg %p482
        %p676 = pneg %p479
        %p677 = pneg %p503
        %p678 = pneg %p500
        %p679 = pneg %p529
        %p680 = pneg %p526
        %s681 = sand.u32 %s516, 1
        %s682 = scalar_lea.sflag [#allocation3], %s681
        %s683 = sand.u32 %s516, 1
        %s684 = scalar_lea.vmem [#allocation2], %s683
        %p685 = scmp.lt.s32.totalorder %s36, 1
        %s686 = scalar_select %p685, %s36, 1
        %s687 = smul.addr %s686, 8
        %s688 = scalar_lea.vmem %s0, %s687
        %p689 = scmp.lt.s32.totalorder %s36, 1
        %s690 = scalar_select %p689, %s36, 1
        %s691 = scalar_lea.vmem %s1, %s690
        %v693 = vld [vmem:[%s688] sm:$0xff]
        %v694 = vld [vmem:[%s691] sm:$0x1]
        %v695 = vmul.f32 %v694, -1e+30
        %v696 = vld [vmem:[%s2] sm:$0x1]
        %v697 = vld [vmem:[%s3] sm:$0x1]
        %vm698 = vcmask 261120
        %v699 = vsel %vm698, %v693, 0.0
        %700 = vadd.xlane.f32.xlu0 %v699
        %v701 = vpop.xlane.xlu0 %700
        %v702 = vrcp.pop 32.0
        %v703 = vmul.f32 %v701, %v702
        %v704 = vsub.f32 %v693, %v703
        %v705 = vmul.f32 %v704, %v704
        %v706 = vsel %vm698, %v705, 0.0
        %707 = vadd.xlane.f32.xlu0 %v706
        %v708 = vpop.xlane.xlu0 %707
        %v709 = vmul.f32 %v708, %v702
        %v711 = vlaneseq
        %v712 = vshrl.u32 %v711, 7
        %v713 = vsub.s32 0, %v712
        %v714 = vrot.slane %v696, %v713
        %v716 = vmul.f32 %v714, %v704
        %v717 = vadd.f32 %v709, 1e-05
        %v718 = vrsqrt.pop %v717
        %v719 = vmul.f32 %v716, %v718
        %v721 = vlaneseq
        %v722 = vshrl.u32 %v721, 7
        %v723 = vsub.s32 0, %v722
        %v724 = vrot.slane %v697, %v723
        %v726 = vadd.f32 %v719, %v724
        %v727 = vpack.c.bf16 %v726, %v726
        %v728 = vld [vmem:[%s4] sm:$0xf]
        %v729 = vld [vmem:[%s4 + $0x4] sm:$0xf]
        %v730 = vld [vmem:[%s4 + $0x8] sm:$0xf]
        %v731 = vld [vmem:[%s4 + $0xc] sm:$0xf]
        %v732 = vld [vmem:[%s5] sm:$0x1]
        %v734 = vlaneseq
        %v735 = vshrl.u32 %v734, 7
        %v736 = vsub.s32 0, %v735
        %v737 = vrot.slane %v732, %v736
        %v743 = vunpack.c.l.b16 %v728
        %v744 = vunpack.c.l.b16 %v729
        %v745 = vunpack.c.l.b16 %v730
        %v746 = vunpack.c.l.b16 %v731
        %v747 = vpack.c.b16 %v744, %v743
        %v748 = vpack.c.b16 %v746, %v745
        %v752 = vsel %vm698, %v727, 0
        %754 = vmatprep.subr.bf16.mxu0 0
        %755 = vmatpush1.bf16.msra.mxu0 0
        %756 = vmatprep.subr.bf16.mxu0 0
        %757 = vmatpush1.bf16.msra.mxu0 0
        %758 = vmatprep.subr.bf16.mxu0 0
        %759 = vmatpush1.bf16.msra.mxu0 0
        %760 = vmatprep.subr.bf16.mxu0 0
        %761 = vmatpush1.bf16.msra.mxu0 0
        %762 = vmatprep.subr.bf16.mxu0 0
        %763 = vmatpush1.bf16.msra.mxu0 0
        %764 = vmatprep.subr.bf16.mxu0 0
        %765 = vmatpush1.bf16.msra.mxu0 0
        %766 = vmatprep.subr.bf16.mxu0 0
        %767 = vmatpush1.bf16.msra.mxu0 %v748
        %768 = vmatprep.subr.bf16.mxu0 0
        %769 = vmatpush1.bf16.msra.mxu0 %v747
        %770 = vmatprep.subr.bf16.mxu0 0
        %771 = vmatpush2.bf16.msra.mxu0 0
        %772 = vmatprep.subr.bf16.mxu0 0
        %773 = vmatpush2.bf16.msra.mxu0 0
        %774 = vmatprep.subr.bf16.mxu0 0
        %775 = vmatpush2.bf16.msra.mxu0 0
        %776 = vmatprep.subr.bf16.mxu0 0
        %777 = vmatpush2.bf16.msra.mxu0 0
        %778 = vmatprep.subr.bf16.mxu0 0
        %779 = vmatpush2.bf16.msra.mxu0 0
        %780 = vmatprep.subr.bf16.mxu0 0
        %781 = vmatpush2.bf16.msra.mxu0 0
        %782 = vmatprep.subr.bf16.mxu0 0
        %783 = vmatpush2.bf16.msra.mxu0 0
        %784 = vmatprep.subr.bf16.mxu0 0
        %785 = vmatpush2.bf16.msra.mxu0 0
        %786 = vmatprep.mubr.bf16.mxu0 0
        %787 = vmatmul.mubr.bf16.gmra.mxu0 %v752
        %v788 = vpop.f32.mrf.mxu0
        %v789 = vadd.f32 %v737, %v788
        %v790 = vpop.f32.mrf.mxu0
        %v791 = vpop.f32.mrf.mxu0
        %v792 = vpop.f32.mrf.mxu0
        %793 = vdwg.mxu0
        %795 = vrot.lane.b32.xlu0 %v789, 120
        %v796 = vpop.permute.xlu0 %795
        %798 = vrot.lane.b32.xlu0 %v789, 112
        %v799 = vpop.permute.xlu0 %798
        %801 = vrot.lane.b32.xlu0 %v789, 104
        %v802 = vpop.permute.xlu0 %801
        %v804 = vpack.c.bf16 %v789, %v789
        %v805 = vpack.c.bf16 %v796, %v796
        %v806 = vpack.c.bf16 %v799, %v799
        %v807 = vpack.c.bf16 %v802, %v802
        %v809 = vlaneseq
        %v810 = vshrl.u32 %v809, 7
        %v811 = vsub.s32 0, %v810
        %v812 = vrot.slane %v695, %v811
        %815 = vrot.lane.b32.xlu0 %v804, 96
        %v816 = vpop.permute.xlu0 %815
        %vm817 = vcmask 64512
        %v819 = vsel %vm817, %v804, 0
        %v822 = vsel %vm817, %v816, 0
        %824 = vmatprep.subr.bf16.mxu0 0
        %825 = vmatpush1.bf16.xpose.msra.mxu0 0
        %826 = vmatprep.subr.bf16.mxu0 0
        %827 = vmatpush1.bf16.xpose.msra.mxu0 0
        %828 = vmatprep.subr.bf16.mxu0 0
        %829 = vmatpush1.bf16.xpose.msra.mxu0 0
        %830 = vmatprep.subr.bf16.mxu0 0
        %831 = vmatpush1.bf16.xpose.msra.mxu0 0
        %832 = vmatprep.subr.bf16.mxu0 0
        %833 = vmatpush1.bf16.xpose.msra.mxu0 0
        %834 = vmatprep.subr.bf16.mxu0 0
        %835 = vmatpush1.bf16.xpose.msra.mxu0 0
        %836 = vmatprep.subr.bf16.mxu0 0
        %837 = vmatpush1.bf16.xpose.msra.mxu0 0
        %838 = vmatprep.subr.bf16.mxu0 0
        %839 = vmatpush1.bf16.xpose.msra.mxu0 %v822
        %840 = vmatprep.subr.bf16.mxu0 0
        %841 = vmatpush2.bf16.xpose.msra.mxu0 0
        %842 = vmatprep.subr.bf16.mxu0 0
        %843 = vmatpush2.bf16.xpose.msra.mxu0 0
        %844 = vmatprep.subr.bf16.mxu0 0
        %845 = vmatpush2.bf16.xpose.msra.mxu0 0
        %846 = vmatprep.subr.bf16.mxu0 0
        %847 = vmatpush2.bf16.xpose.msra.mxu0 0
        %848 = vmatprep.subr.bf16.mxu0 0
        %849 = vmatpush2.bf16.xpose.msra.mxu0 0
        %850 = vmatprep.subr.bf16.mxu0 0
        %851 = vmatpush2.bf16.xpose.msra.mxu0 0
        %852 = vmatprep.subr.bf16.mxu0 0
        %853 = vmatpush2.bf16.xpose.msra.mxu0 0
        %854 = vmatprep.subr.bf16.mxu0 0
        %855 = vmatpush2.bf16.xpose.msra.mxu0 0
        %856 = vmatprep.mubr.bf16.mxu0 0
        %857 = vmatmul.mubr.bf16.gmra.mxu0 %v819
        %v858 = vpop.f32.mrf.mxu0
        %v859 = vadd.f32 %v812, %v858
        %v860 = vpop.f32.mrf.mxu0
        %v861 = vpop.f32.mrf.mxu0
        %v862 = vpop.f32.mrf.mxu0
        %863 = vdwg.mxu0
        %865 = vrot.lane.b32.xlu0 %v805, 96
        %v866 = vpop.permute.xlu0 %865
        %v868 = vsel %vm817, %v805, 0
        %v871 = vsel %vm817, %v866, 0
        %873 = vmatprep.subr.bf16.mxu0 0
        %874 = vmatpush1.bf16.xpose.msra.mxu0 0
        %875 = vmatprep.subr.bf16.mxu0 0
        %876 = vmatpush1.bf16.xpose.msra.mxu0 0
        %877 = vmatprep.subr.bf16.mxu0 0
        %878 = vmatpush1.bf16.xpose.msra.mxu0 0
        %879 = vmatprep.subr.bf16.mxu0 0
        %880 = vmatpush1.bf16.xpose.msra.mxu0 0
        %881 = vmatprep.subr.bf16.mxu0 0
        %882 = vmatpush1.bf16.xpose.msra.mxu0 0
        %883 = vmatprep.subr.bf16.mxu0 0
        %884 = vmatpush1.bf16.xpose.msra.mxu0 0
        %885 = vmatprep.subr.bf16.mxu0 0
        %886 = vmatpush1.bf16.xpose.msra.mxu0 0
        %887 = vmatprep.subr.bf16.mxu0 0
        %888 = vmatpush1.bf16.xpose.msra.mxu0 %v871
        %889 = vmatprep.subr.bf16.mxu0 0
        %890 = vmatpush2.bf16.xpose.msra.mxu0 0
        %891 = vmatprep.subr.bf16.mxu0 0
        %892 = vmatpush2.bf16.xpose.msra.mxu0 0
        %893 = vmatprep.subr.bf16.mxu0 0
        %894 = vmatpush2.bf16.xpose.msra.mxu0 0
        %895 = vmatprep.subr.bf16.mxu0 0
        %896 = vmatpush2.bf16.xpose.msra.mxu0 0
        %897 = vmatprep.subr.bf16.mxu0 0
        %898 = vmatpush2.bf16.xpose.msra.mxu0 0
        %899 = vmatprep.subr.bf16.mxu0 0
        %900 = vmatpush2.bf16.xpose.msra.mxu0 0
        %901 = vmatprep.subr.bf16.mxu0 0
        %902 = vmatpush2.bf16.xpose.msra.mxu0 0
        %903 = vmatprep.subr.bf16.mxu0 0
        %904 = vmatpush2.bf16.xpose.msra.mxu0 0
        %905 = vmatprep.mubr.bf16.mxu0 0
        %906 = vmatmul.mubr.bf16.gmra.mxu0 %v868
        %v907 = vpop.f32.mrf.mxu0
        %v908 = vadd.f32 %v812, %v907
        %v909 = vpop.f32.mrf.mxu0
        %v910 = vpop.f32.mrf.mxu0
        %v911 = vpop.f32.mrf.mxu0
        %912 = vdwg.mxu0
        %914 = vrot.lane.b32.xlu0 %v806, 96
        %v915 = vpop.permute.xlu0 %914
        %v917 = vsel %vm817, %v806, 0
        %v920 = vsel %vm817, %v915, 0
        %922 = vmatprep.subr.bf16.mxu0 0
        %923 = vmatpush1.bf16.xpose.msra.mxu0 0
        %924 = vmatprep.subr.bf16.mxu0 0
        %925 = vmatpush1.bf16.xpose.msra.mxu0 0
        %926 = vmatprep.subr.bf16.mxu0 0
        %927 = vmatpush1.bf16.xpose.msra.mxu0 0
        %928 = vmatprep.subr.bf16.mxu0 0
        %929 = vmatpush1.bf16.xpose.msra.mxu0 0
        %930 = vmatprep.subr.bf16.mxu0 0
        %931 = vmatpush1.bf16.xpose.msra.mxu0 0
        %932 = vmatprep.subr.bf16.mxu0 0
        %933 = vmatpush1.bf16.xpose.msra.mxu0 0
        %934 = vmatprep.subr.bf16.mxu0 0
        %935 = vmatpush1.bf16.xpose.msra.mxu0 0
        %936 = vmatprep.subr.bf16.mxu0 0
        %937 = vmatpush1.bf16.xpose.msra.mxu0 %v920
        %938 = vmatprep.subr.bf16.mxu0 0
        %939 = vmatpush2.bf16.xpose.msra.mxu0 0
        %940 = vmatprep.subr.bf16.mxu0 0
        %941 = vmatpush2.bf16.xpose.msra.mxu0 0
        %942 = vmatprep.subr.bf16.mxu0 0
        %943 = vmatpush2.bf16.xpose.msra.mxu0 0
        %944 = vmatprep.subr.bf16.mxu0 0
        %945 = vmatpush2.bf16.xpose.msra.mxu0 0
        %946 = vmatprep.subr.bf16.mxu0 0
        %947 = vmatpush2.bf16.xpose.msra.mxu0 0
        %948 = vmatprep.subr.bf16.mxu0 0
        %949 = vmatpush2.bf16.xpose.msra.mxu0 0
        %950 = vmatprep.subr.bf16.mxu0 0
        %951 = vmatpush2.bf16.xpose.msra.mxu0 0
        %952 = vmatprep.subr.bf16.mxu0 0
        %953 = vmatpush2.bf16.xpose.msra.mxu0 0
        %954 = vmatprep.mubr.bf16.mxu0 0
        %955 = vmatmul.mubr.bf16.gmra.mxu0 %v917
        %v956 = vpop.f32.mrf.mxu0
        %v957 = vadd.f32 %v812, %v956
        %v958 = vpop.f32.mrf.mxu0
        %v959 = vpop.f32.mrf.mxu0
        %v960 = vpop.f32.mrf.mxu0
        %961 = vdwg.mxu0
        %963 = vrot.lane.b32.xlu0 %v807, 96
        %v964 = vpop.permute.xlu0 %963
        %v966 = vsel %vm817, %v807, 0
        %v969 = vsel %vm817, %v964, 0
        %971 = vmatprep.subr.bf16.mxu0 0
        %972 = vmatpush1.bf16.xpose.msra.mxu0 0
        %973 = vmatprep.subr.bf16.mxu0 0
        %974 = vmatpush1.bf16.xpose.msra.mxu0 0
        %975 = vmatprep.subr.bf16.mxu0 0
        %976 = vmatpush1.bf16.xpose.msra.mxu0 0
        %977 = vmatprep.subr.bf16.mxu0 0
        %978 = vmatpush1.bf16.xpose.msra.mxu0 0
        %979 = vmatprep.subr.bf16.mxu0 0
        %980 = vmatpush1.bf16.xpose.msra.mxu0 0
        %981 = vmatprep.subr.bf16.mxu0 0
        %982 = vmatpush1.bf16.xpose.msra.mxu0 0
        %983 = vmatprep.subr.bf16.mxu0 0
        %984 = vmatpush1.bf16.xpose.msra.mxu0 0
        %985 = vmatprep.subr.bf16.mxu0 0
        %986 = vmatpush1.bf16.xpose.msra.mxu0 %v969
        %987 = vmatprep.subr.bf16.mxu0 0
        %988 = vmatpush2.bf16.xpose.msra.mxu0 0
        %989 = vmatprep.subr.bf16.mxu0 0
        %990 = vmatpush2.bf16.xpose.msra.mxu0 0
        %991 = vmatprep.subr.bf16.mxu0 0
        %992 = vmatpush2.bf16.xpose.msra.mxu0 0
        %993 = vmatprep.subr.bf16.mxu0 0
        %994 = vmatpush2.bf16.xpose.msra.mxu0 0
        %995 = vmatprep.subr.bf16.mxu0 0
        %996 = vmatpush2.bf16.xpose.msra.mxu0 0
        %997 = vmatprep.subr.bf16.mxu0 0
        %998 = vmatpush2.bf16.xpose.msra.mxu0 0
        %999 = vmatprep.subr.bf16.mxu0 0
        %1000 = vmatpush2.bf16.xpose.msra.mxu0 0
        %1001 = vmatprep.subr.bf16.mxu0 0
        %1002 = vmatpush2.bf16.xpose.msra.mxu0 0
        %1003 = vmatprep.mubr.bf16.mxu0 0
        %1004 = vmatmul.mubr.bf16.gmra.mxu0 %v966
        %v1005 = vpop.f32.mrf.mxu0
        %v1006 = vadd.f32 %v812, %v1005
        %v1007 = vpop.f32.mrf.mxu0
        %v1008 = vpop.f32.mrf.mxu0
        %v1009 = vpop.f32.mrf.mxu0
        %1010 = vdwg.mxu0
        %v1011 = vsel %vm817, %v859, -inf
        %1012 = vmax.xlane.f32.xlu0 %v1011
        %v1013 = vpop.xlane.xlu0 %1012
        %v1014 = vsel %vm817, %v908, -inf
        %1015 = vmax.xlane.f32.xlu0 %v1014
        %v1016 = vpop.xlane.xlu0 %1015
        %v1017 = vsel %vm817, %v957, -inf
        %1018 = vmax.xlane.f32.xlu0 %v1017
        %v1019 = vpop.xlane.xlu0 %1018
        %v1020 = vsel %vm817, %v1006, -inf
        %1021 = vmax.xlane.f32.xlu0 %v1020
        %v1022 = vpop.xlane.xlu0 %1021
        %v1023 = vsub.f32 %v859, %v1013
        %v1024 = vsub.f32 %v908, %v1016
        %v1025 = vsub.f32 %v957, %v1019
        %v1026 = vsub.f32 %v1006, %v1022
        %v1027 = vmul.f32 %v1023, 1.442695
        %v1028 = vpow.pop %v1027
        %v1029 = vmul.f32 %v1024, 1.442695
        %v1030 = vpow.pop %v1029
        %v1031 = vmul.f32 %v1025, 1.442695
        %v1032 = vpow.pop %v1031
        %v1033 = vmul.f32 %v1026, 1.442695
        %v1034 = vpow.pop %v1033
        %v1035 = vsel %vm817, %v1028, 0.0
        %1036 = vadd.xlane.f32.xlu0 %v1035
        %v1037 = vpop.xlane.xlu0 %1036
        %v1038 = vsel %vm817, %v1030, 0.0
        %1039 = vadd.xlane.f32.xlu0 %v1038
        %v1040 = vpop.xlane.xlu0 %1039
        %v1041 = vsel %vm817, %v1032, 0.0
        %1042 = vadd.xlane.f32.xlu0 %v1041
        %v1043 = vpop.xlane.xlu0 %1042
        %v1044 = vsel %vm817, %v1034, 0.0
        %1045 = vadd.xlane.f32.xlu0 %v1044
        %v1046 = vpop.xlane.xlu0 %1045
        %v1047 = vrcp.pop %v1037
        %v1048 = vrcp.pop %v1040
        %v1049 = vrcp.pop %v1043
        %v1050 = vrcp.pop %v1046
        %v1051 = vmul.f32 %v1028, %v1047
        %v1052 = vmul.f32 %v1030, %v1048
        %v1053 = vmul.f32 %v1032, %v1049
        %v1054 = vmul.f32 %v1034, %v1050
        %v1055 = vpack.c.bf16 %v1051, %v1051
        %v1056 = vpack.c.bf16 %v1052, %v1052
        %v1057 = vpack.c.bf16 %v1053, %v1053
        %v1058 = vpack.c.bf16 %v1054, %v1054
        %1059 = vrot.lane.b32.xlu0 %v804, 64
        %v1060 = vpop.permute.xlu0 %1059
        %v1062 = vsel %vm817, %v1055, 0
        %vm1064 = vcmask 1043456
        %v1066 = vsel %vm1064, %v1060, 0
        %1068 = vmatprep.subr.bf16.mxu0 0
        %1069 = vmatpush1.bf16.msra.mxu0 0
        %1070 = vmatprep.subr.bf16.mxu0 0
        %1071 = vmatpush1.bf16.msra.mxu0 0
        %1072 = vmatprep.subr.bf16.mxu0 0
        %1073 = vmatpush1.bf16.msra.mxu0 0
        %1074 = vmatprep.subr.bf16.mxu0 0
        %1075 = vmatpush1.bf16.msra.mxu0 0
        %1076 = vmatprep.subr.bf16.mxu0 0
        %1077 = vmatpush1.bf16.msra.mxu0 0
        %1078 = vmatprep.subr.bf16.mxu0 0
        %1079 = vmatpush1.bf16.msra.mxu0 0
        %1080 = vmatprep.subr.bf16.mxu0 0
        %1081 = vmatpush1.bf16.msra.mxu0 0
        %1082 = vmatprep.subr.bf16.mxu0 0
        %1083 = vmatpush1.bf16.msra.mxu0 %v1066
        %1084 = vmatprep.subr.bf16.mxu0 0
        %1085 = vmatpush2.bf16.msra.mxu0 0
        %1086 = vmatprep.subr.bf16.mxu0 0
        %1087 = vmatpush2.bf16.msra.mxu0 0
        %1088 = vmatprep.subr.bf16.mxu0 0
        %1089 = vmatpush2.bf16.msra.mxu0 0
        %1090 = vmatprep.subr.bf16.mxu0 0
        %1091 = vmatpush2.bf16.msra.mxu0 0
        %1092 = vmatprep.subr.bf16.mxu0 0
        %1093 = vmatpush2.bf16.msra.mxu0 0
        %1094 = vmatprep.subr.bf16.mxu0 0
        %1095 = vmatpush2.bf16.msra.mxu0 0
        %1096 = vmatprep.subr.bf16.mxu0 0
        %1097 = vmatpush2.bf16.msra.mxu0 0
        %1098 = vmatprep.subr.bf16.mxu0 0
        %1099 = vmatpush2.bf16.msra.mxu0 0
        %1100 = vmatprep.mubr.bf16.mxu0 0
        %1101 = vmatmul.mubr.bf16.gmra.mxu0 %v1062
        %v1102 = vpop.f32.mrf.mxu0
        %v1103 = vadd.f32 0.0, %v1102
        %v1104 = vpop.f32.mrf.mxu0
        %v1105 = vpop.f32.mrf.mxu0
        %v1106 = vpop.f32.mrf.mxu0
        %1107 = vdwg.mxu0
        %1108 = vrot.lane.b32.xlu0 %v805, 64
        %v1109 = vpop.permute.xlu0 %1108
        %v1111 = vsel %vm817, %v1056, 0
        %v1114 = vsel %vm1064, %v1109, 0
        %1116 = vmatprep.subr.bf16.mxu0 0
        %1117 = vmatpush1.bf16.msra.mxu0 0
        %1118 = vmatprep.subr.bf16.mxu0 0
        %1119 = vmatpush1.bf16.msra.mxu0 0
        %1120 = vmatprep.subr.bf16.mxu0 0
        %1121 = vmatpush1.bf16.msra.mxu0 0
        %1122 = vmatprep.subr.bf16.mxu0 0
        %1123 = vmatpush1.bf16.msra.mxu0 0
        %1124 = vmatprep.subr.bf16.mxu0 0
        %1125 = vmatpush1.bf16.msra.mxu0 0
        %1126 = vmatprep.subr.bf16.mxu0 0
        %1127 = vmatpush1.bf16.msra.mxu0 0
        %1128 = vmatprep.subr.bf16.mxu0 0
        %1129 = vmatpush1.bf16.msra.mxu0 0
        %1130 = vmatprep.subr.bf16.mxu0 0
        %1131 = vmatpush1.bf16.msra.mxu0 %v1114
        %1132 = vmatprep.subr.bf16.mxu0 0
        %1133 = vmatpush2.bf16.msra.mxu0 0
        %1134 = vmatprep.subr.bf16.mxu0 0
        %1135 = vmatpush2.bf16.msra.mxu0 0
        %1136 = vmatprep.subr.bf16.mxu0 0
        %1137 = vmatpush2.bf16.msra.mxu0 0
        %1138 = vmatprep.subr.bf16.mxu0 0
        %1139 = vmatpush2.bf16.msra.mxu0 0
        %1140 = vmatprep.subr.bf16.mxu0 0
        %1141 = vmatpush2.bf16.msra.mxu0 0
        %1142 = vmatprep.subr.bf16.mxu0 0
        %1143 = vmatpush2.bf16.msra.mxu0 0
        %1144 = vmatprep.subr.bf16.mxu0 0
        %1145 = vmatpush2.bf16.msra.mxu0 0
        %1146 = vmatprep.subr.bf16.mxu0 0
        %1147 = vmatpush2.bf16.msra.mxu0 0
        %1148 = vmatprep.mubr.bf16.mxu0 0
        %1149 = vmatmul.mubr.bf16.gmra.mxu0 %v1111
        %v1150 = vpop.f32.mrf.mxu0
        %v1151 = vadd.f32 0.0, %v1150
        %v1152 = vpop.f32.mrf.mxu0
        %v1153 = vpop.f32.mrf.mxu0
        %v1154 = vpop.f32.mrf.mxu0
        %1155 = vdwg.mxu0
        %1156 = vrot.lane.b32.xlu0 %v806, 64
        %v1157 = vpop.permute.xlu0 %1156
        %v1159 = vsel %vm817, %v1057, 0
        %v1162 = vsel %vm1064, %v1157, 0
        %1164 = vmatprep.subr.bf16.mxu0 0
        %1165 = vmatpush1.bf16.msra.mxu0 0
        %1166 = vmatprep.subr.bf16.mxu0 0
        %1167 = vmatpush1.bf16.msra.mxu0 0
        %1168 = vmatprep.subr.bf16.mxu0 0
        %1169 = vmatpush1.bf16.msra.mxu0 0
        %1170 = vmatprep.subr.bf16.mxu0 0
        %1171 = vmatpush1.bf16.msra.mxu0 0
        %1172 = vmatprep.subr.bf16.mxu0 0
        %1173 = vmatpush1.bf16.msra.mxu0 0
        %1174 = vmatprep.subr.bf16.mxu0 0
        %1175 = vmatpush1.bf16.msra.mxu0 0
        %1176 = vmatprep.subr.bf16.mxu0 0
        %1177 = vmatpush1.bf16.msra.mxu0 0
        %1178 = vmatprep.subr.bf16.mxu0 0
        %1179 = vmatpush1.bf16.msra.mxu0 %v1162
        %1180 = vmatprep.subr.bf16.mxu0 0
        %1181 = vmatpush2.bf16.msra.mxu0 0
        %1182 = vmatprep.subr.bf16.mxu0 0
        %1183 = vmatpush2.bf16.msra.mxu0 0
        %1184 = vmatprep.subr.bf16.mxu0 0
        %1185 = vmatpush2.bf16.msra.mxu0 0
        %1186 = vmatprep.subr.bf16.mxu0 0
        %1187 = vmatpush2.bf16.msra.mxu0 0
        %1188 = vmatprep.subr.bf16.mxu0 0
        %1189 = vmatpush2.bf16.msra.mxu0 0
        %1190 = vmatprep.subr.bf16.mxu0 0
        %1191 = vmatpush2.bf16.msra.mxu0 0
        %1192 = vmatprep.subr.bf16.mxu0 0
        %1193 = vmatpush2.bf16.msra.mxu0 0
        %1194 = vmatprep.subr.bf16.mxu0 0
        %1195 = vmatpush2.bf16.msra.mxu0 0
        %1196 = vmatprep.mubr.bf16.mxu0 0
        %1197 = vmatmul.mubr.bf16.gmra.mxu0 %v1159
        %v1198 = vpop.f32.mrf.mxu0
        %v1199 = vadd.f32 0.0, %v1198
        %v1200 = vpop.f32.mrf.mxu0
        %v1201 = vpop.f32.mrf.mxu0
        %v1202 = vpop.f32.mrf.mxu0
        %1203 = vdwg.mxu0
        %1204 = vrot.lane.b32.xlu0 %v807, 64
        %v1205 = vpop.permute.xlu0 %1204
        %v1207 = vsel %vm817, %v1058, 0
        %v1210 = vsel %vm1064, %v1205, 0
        %1212 = vmatprep.subr.bf16.mxu0 0
        %1213 = vmatpush1.bf16.msra.mxu0 0
        %1214 = vmatprep.subr.bf16.mxu0 0
        %1215 = vmatpush1.bf16.msra.mxu0 0
        %1216 = vmatprep.subr.bf16.mxu0 0
        %1217 = vmatpush1.bf16.msra.mxu0 0
        %1218 = vmatprep.subr.bf16.mxu0 0
        %1219 = vmatpush1.bf16.msra.mxu0 0
        %1220 = vmatprep.subr.bf16.mxu0 0
        %1221 = vmatpush1.bf16.msra.mxu0 0
        %1222 = vmatprep.subr.bf16.mxu0 0
        %1223 = vmatpush1.bf16.msra.mxu0 0
        %1224 = vmatprep.subr.bf16.mxu0 0
        %1225 = vmatpush1.bf16.msra.mxu0 0
        %1226 = vmatprep.subr.bf16.mxu0 0
        %1227 = vmatpush1.bf16.msra.mxu0 %v1210
        %1228 = vmatprep.subr.bf16.mxu0 0
        %1229 = vmatpush2.bf16.msra.mxu0 0
        %1230 = vmatprep.subr.bf16.mxu0 0
        %1231 = vmatpush2.bf16.msra.mxu0 0
        %1232 = vmatprep.subr.bf16.mxu0 0
        %1233 = vmatpush2.bf16.msra.mxu0 0
        %1234 = vmatprep.subr.bf16.mxu0 0
        %1235 = vmatpush2.bf16.msra.mxu0 0
        %1236 = vmatprep.subr.bf16.mxu0 0
        %1237 = vmatpush2.bf16.msra.mxu0 0
        %1238 = vmatprep.subr.bf16.mxu0 0
        %1239 = vmatpush2.bf16.msra.mxu0 0
        %1240 = vmatprep.subr.bf16.mxu0 0
        %1241 = vmatpush2.bf16.msra.mxu0 0
        %1242 = vmatprep.subr.bf16.mxu0 0
        %1243 = vmatpush2.bf16.msra.mxu0 0
        %1244 = vmatprep.mubr.bf16.mxu0 0
        %1245 = vmatmul.mubr.bf16.gmra.mxu0 %v1207
        %v1246 = vpop.f32.mrf.mxu0
        %v1247 = vadd.f32 0.0, %v1246
        %v1248 = vpop.f32.mrf.mxu0
        %v1249 = vpop.f32.mrf.mxu0
        %v1250 = vpop.f32.mrf.mxu0
        %1251 = vdwg.mxu0
        %1253 = vrot.lane.b32.xlu0 %v1151, 8
        %v1254 = vpop.permute.xlu0 %1253
        %1257 = vrot.lane.b32.xlu0 %v1199, 16
        %v1258 = vpop.permute.xlu0 %1257
        %1261 = vrot.lane.b32.xlu0 %v1247, 24
        %v1262 = vpop.permute.xlu0 %1261
        %v1264 = vsel %vm817, %v1103, %v1254
        %vm1265 = vcmask 130048
        %v1266 = vsel %vm1265, %v1264, %v1258
        %vm1267 = vcmask 195584
        %v1268 = vsel %vm1267, %v1266, %v1262
        %v1269 = vpack.c.bf16 %v1268, %v1268
        %v1270 = vld [vmem:[%s6] sm:$0xf]
        %v1271 = vld [vmem:[%s6 + $0x4] sm:$0xf]
        %v1272 = vld [vmem:[%s6 + $0x8] sm:$0xf]
        %v1273 = vld [vmem:[%s6 + $0xc] sm:$0xf]
        %v1274 = vld [vmem:[%s7] sm:$0x1]
        %v1276 = vlaneseq
        %v1277 = vshrl.u32 %v1276, 7
        %v1278 = vsub.s32 0, %v1277
        %v1279 = vrot.slane %v1274, %v1278
        %v1285 = vunpack.c.l.b16 %v1270
        %v1286 = vunpack.c.l.b16 %v1271
        %v1287 = vunpack.c.l.b16 %v1272
        %v1288 = vunpack.c.l.b16 %v1273
        %v1289 = vpack.c.b16 %v1286, %v1285
        %v1290 = vpack.c.b16 %v1288, %v1287
        %v1294 = vsel %vm698, %v1269, 0
        %1296 = vmatprep.subr.bf16.mxu0 0
        %1297 = vmatpush1.bf16.msra.mxu0 0
        %1298 = vmatprep.subr.bf16.mxu0 0
        %1299 = vmatpush1.bf16.msra.mxu0 0
        %1300 = vmatprep.subr.bf16.mxu0 0
        %1301 = vmatpush1.bf16.msra.mxu0 0
        %1302 = vmatprep.subr.bf16.mxu0 0
        %1303 = vmatpush1.bf16.msra.mxu0 0
        %1304 = vmatprep.subr.bf16.mxu0 0
        %1305 = vmatpush1.bf16.msra.mxu0 0
        %1306 = vmatprep.subr.bf16.mxu0 0
        %1307 = vmatpush1.bf16.msra.mxu0 0
        %1308 = vmatprep.subr.bf16.mxu0 0
        %1309 = vmatpush1.bf16.msra.mxu0 %v1290
        %1310 = vmatprep.subr.bf16.mxu0 0
        %1311 = vmatpush1.bf16.msra.mxu0 %v1289
        %1312 = vmatprep.subr.bf16.mxu0 0
        %1313 = vmatpush2.bf16.msra.mxu0 0
        %1314 = vmatprep.subr.bf16.mxu0 0
        %1315 = vmatpush2.bf16.msra.mxu0 0
        %1316 = vmatprep.subr.bf16.mxu0 0
        %1317 = vmatpush2.bf16.msra.mxu0 0
        %1318 = vmatprep.subr.bf16.mxu0 0
        %1319 = vmatpush2.bf16.msra.mxu0 0
        %1320 = vmatprep.subr.bf16.mxu0 0
        %1321 = vmatpush2.bf16.msra.mxu0 0
        %1322 = vmatprep.subr.bf16.mxu0 0
        %1323 = vmatpush2.bf16.msra.mxu0 0
        %1324 = vmatprep.subr.bf16.mxu0 0
        %1325 = vmatpush2.bf16.msra.mxu0 0
        %1326 = vmatprep.subr.bf16.mxu0 0
        %1327 = vmatpush2.bf16.msra.mxu0 0
        %1328 = vmatprep.mubr.bf16.mxu0 0
        %1329 = vmatmul.mubr.bf16.gmra.mxu0 %v1294
        %v1330 = vpop.f32.mrf.mxu0
        %v1331 = vadd.f32 %v1279, %v1330
        %v1332 = vpop.f32.mrf.mxu0
        %v1333 = vpop.f32.mrf.mxu0
        %v1334 = vpop.f32.mrf.mxu0
        %1335 = vdwg.mxu0
        %v1336 = vadd.f32 %v693, %v1331
        %v1337 = vld [vmem:[%s8] sm:$0x1]
        %v1338 = vld [vmem:[%s9] sm:$0x1]
        %v1339 = vsel %vm698, %v1336, 0.0
        %1340 = vadd.xlane.f32.xlu0 %v1339
        %v1341 = vpop.xlane.xlu0 %1340
        %v1342 = vmul.f32 %v1341, %v702
        %v1343 = vsub.f32 %v1336, %v1342
        %v1344 = vmul.f32 %v1343, %v1343
        %v1345 = vsel %vm698, %v1344, 0.0
        %1346 = vadd.xlane.f32.xlu0 %v1345
        %v1347 = vpop.xlane.xlu0 %1346
        %v1348 = vmul.f32 %v1347, %v702
        %v1350 = vlaneseq
        %v1351 = vshrl.u32 %v1350, 7
        %v1352 = vsub.s32 0, %v1351
        %v1353 = vrot.slane %v1337, %v1352
        %v1355 = vmul.f32 %v1353, %v1343
        %v1356 = vadd.f32 %v1348, 1e-05
        %v1357 = vrsqrt.pop %v1356
        %v1358 = vmul.f32 %v1355, %v1357
        %v1360 = vlaneseq
        %v1361 = vshrl.u32 %v1360, 7
        %v1362 = vsub.s32 0, %v1361
        %v1363 = vrot.slane %v1338, %v1362
        %v1365 = vadd.f32 %v1358, %v1363
        %v1366 = vpack.c.bf16 %v1365, %v1365
        %v1367 = vld [vmem:[%s10] sm:$0xf]
        %v1368 = vld [vmem:[%s10 + $0x4] sm:$0xf]
        %v1369 = vld [vmem:[%s10 + $0x8] sm:$0xf]
        %v1370 = vld [vmem:[%s10 + $0xc] sm:$0xf]
        %v1371 = vld [vmem:[%s11] sm:$0x1]
        %v1373 = vlaneseq
        %v1374 = vshrl.u32 %v1373, 7
        %v1375 = vsub.s32 0, %v1374
        %v1376 = vrot.slane %v1371, %v1375
        %v1382 = vunpack.c.l.b16 %v1367
        %v1383 = vunpack.c.l.b16 %v1368
        %v1384 = vunpack.c.l.b16 %v1369
        %v1385 = vunpack.c.l.b16 %v1370
        %v1386 = vpack.c.b16 %v1383, %v1382
        %v1387 = vpack.c.b16 %v1385, %v1384
        %v1391 = vsel %vm698, %v1366, 0
        %1393 = vmatprep.subr.bf16.mxu0 0
        %1394 = vmatpush1.bf16.msra.mxu0 0
        %1395 = vmatprep.subr.bf16.mxu0 0
        %1396 = vmatpush1.bf16.msra.mxu0 0
        %1397 = vmatprep.subr.bf16.mxu0 0
        %1398 = vmatpush1.bf16.msra.mxu0 0
        %1399 = vmatprep.subr.bf16.mxu0 0
        %1400 = vmatpush1.bf16.msra.mxu0 0
        %1401 = vmatprep.subr.bf16.mxu0 0
        %1402 = vmatpush1.bf16.msra.mxu0 0
        %1403 = vmatprep.subr.bf16.mxu0 0
        %1404 = vmatpush1.bf16.msra.mxu0 0
        %1405 = vmatprep.subr.bf16.mxu0 0
        %1406 = vmatpush1.bf16.msra.mxu0 %v1387
        %1407 = vmatprep.subr.bf16.mxu0 0
        %1408 = vmatpush1.bf16.msra.mxu0 %v1386
        %1409 = vmatprep.subr.bf16.mxu0 0
        %1410 = vmatpush2.bf16.msra.mxu0 0
        %1411 = vmatprep.subr.bf16.mxu0 0
        %1412 = vmatpush2.bf16.msra.mxu0 0
        %1413 = vmatprep.subr.bf16.mxu0 0
        %1414 = vmatpush2.bf16.msra.mxu0 0
        %1415 = vmatprep.subr.bf16.mxu0 0
        %1416 = vmatpush2.bf16.msra.mxu0 0
        %1417 = vmatprep.subr.bf16.mxu0 0
        %1418 = vmatpush2.bf16.msra.mxu0 0
        %1419 = vmatprep.subr.bf16.mxu0 0
        %1420 = vmatpush2.bf16.msra.mxu0 0
        %1421 = vmatprep.subr.bf16.mxu0 0
        %1422 = vmatpush2.bf16.msra.mxu0 0
        %1423 = vmatprep.subr.bf16.mxu0 0
        %1424 = vmatpush2.bf16.msra.mxu0 0
        %1425 = vmatprep.mubr.bf16.mxu0 0
        %1426 = vmatmul.mubr.bf16.gmra.mxu0 %v1391
        %v1427 = vpop.f32.mrf.mxu0
        %v1428 = vadd.f32 %v1376, %v1427
        %v1429 = vpop.f32.mrf.mxu0
        %v1430 = vpop.f32.mrf.mxu0
        %v1431 = vpop.f32.mrf.mxu0
        %1432 = vdwg.mxu0
        %v1433 = vmax.f32 %v1428, 0.0
        %v1434 = vpack.c.bf16 %v1433, %v1433
        %v1435 = vld [vmem:[%s12] sm:$0xf]
        %v1436 = vld [vmem:[%s12 + $0x4] sm:$0xf]
        %v1437 = vld [vmem:[%s12 + $0x8] sm:$0xf]
        %v1438 = vld [vmem:[%s12 + $0xc] sm:$0xf]
        %v1439 = vld [vmem:[%s12 + $0x10] sm:$0xf]
        %v1440 = vld [vmem:[%s12 + $0x14] sm:$0xf]
        %v1441 = vld [vmem:[%s12 + $0x18] sm:$0xf]
        %v1442 = vld [vmem:[%s12 + $0x1c] sm:$0xf]
        %v1443 = vld [vmem:[%s12 + $0x20] sm:$0xf]
        %v1444 = vld [vmem:[%s12 + $0x24] sm:$0xf]
        %v1445 = vld [vmem:[%s12 + $0x28] sm:$0xf]
        %v1446 = vld [vmem:[%s12 + $0x2c] sm:$0xf]
        %v1447 = vld [vmem:[%s12 + $0x30] sm:$0xf]
        %v1448 = vld [vmem:[%s12 + $0x34] sm:$0xf]
        %v1449 = vld [vmem:[%s12 + $0x38] sm:$0xf]
        %v1450 = vld [vmem:[%s12 + $0x3c] sm:$0xf]
        %v1451 = vld [vmem:[%s13] sm:$0x1]
        %v1453 = vlaneseq
        %v1454 = vshrl.u32 %v1453, 7
        %v1455 = vsub.s32 0, %v1454
        %v1456 = vrot.slane %v1451, %v1455
        %v1474 = vunpack.c.l.b16 %v1435
        %v1475 = vunpack.c.l.b16 %v1436
        %v1476 = vunpack.c.l.b16 %v1437
        %v1477 = vunpack.c.l.b16 %v1438
        %v1478 = vunpack.c.l.b16 %v1439
        %v1479 = vunpack.c.l.b16 %v1440
        %v1480 = vunpack.c.l.b16 %v1441
        %v1481 = vunpack.c.l.b16 %v1442
        %v1482 = vunpack.c.l.b16 %v1443
        %v1483 = vunpack.c.l.b16 %v1444
        %v1484 = vunpack.c.l.b16 %v1445
        %v1485 = vunpack.c.l.b16 %v1446
        %v1486 = vunpack.c.l.b16 %v1447
        %v1487 = vunpack.c.l.b16 %v1448
        %v1488 = vunpack.c.l.b16 %v1449
        %v1489 = vunpack.c.l.b16 %v1450
        %v1490 = vpack.c.b16 %v1475, %v1474
        %v1491 = vpack.c.b16 %v1477, %v1476
        %v1492 = vpack.c.b16 %v1479, %v1478
        %v1493 = vpack.c.b16 %v1481, %v1480
        %v1494 = vpack.c.b16 %v1483, %v1482
        %v1495 = vpack.c.b16 %v1485, %v1484
        %v1496 = vpack.c.b16 %v1487, %v1486
        %v1497 = vpack.c.b16 %v1489, %v1488
        %1506 = vmatprep.subr.bf16.mxu0 0
        %1507 = vmatpush1.bf16.msra.mxu0 %v1497
        %1508 = vmatprep.subr.bf16.mxu0 0
        %1509 = vmatpush1.bf16.msra.mxu0 %v1496
        %1510 = vmatprep.subr.bf16.mxu0 0
        %1511 = vmatpush1.bf16.msra.mxu0 %v1495
        %1512 = vmatprep.subr.bf16.mxu0 0
        %1513 = vmatpush1.bf16.msra.mxu0 %v1494
        %1514 = vmatprep.subr.bf16.mxu0 0
        %1515 = vmatpush1.bf16.msra.mxu0 %v1493
        %1516 = vmatprep.subr.bf16.mxu0 0
        %1517 = vmatpush1.bf16.msra.mxu0 %v1492
        %1518 = vmatprep.subr.bf16.mxu0 0
        %1519 = vmatpush1.bf16.msra.mxu0 %v1491
        %1520 = vmatprep.subr.bf16.mxu0 0
        %1521 = vmatpush1.bf16.msra.mxu0 %v1490
        %1522 = vmatprep.subr.bf16.mxu0 0
        %1523 = vmatpush2.bf16.msra.mxu0 0
        %1524 = vmatprep.subr.bf16.mxu0 0
        %1525 = vmatpush2.bf16.msra.mxu0 0
        %1526 = vmatprep.subr.bf16.mxu0 0
        %1527 = vmatpush2.bf16.msra.mxu0 0
        %1528 = vmatprep.subr.bf16.mxu0 0
        %1529 = vmatpush2.bf16.msra.mxu0 0
        %1530 = vmatprep.subr.bf16.mxu0 0
        %1531 = vmatpush2.bf16.msra.mxu0 0
        %1532 = vmatprep.subr.bf16.mxu0 0
        %1533 = vmatpush2.bf16.msra.mxu0 0
        %1534 = vmatprep.subr.bf16.mxu0 0
        %1535 = vmatpush2.bf16.msra.mxu0 0
        %1536 = vmatprep.subr.bf16.mxu0 0
        %1537 = vmatpush2.bf16.msra.mxu0 0
        %1538 = vmatprep.mubr.bf16.mxu0 0
        %1539 = vmatmul.mubr.bf16.gmra.mxu0 %v1434
        %v1540 = vpop.f32.mrf.mxu0
        %v1541 = vadd.f32 %v1456, %v1540
        %v1542 = vpop.f32.mrf.mxu0
        %v1543 = vpop.f32.mrf.mxu0
        %v1544 = vpop.f32.mrf.mxu0
        %1545 = vdwg.mxu0
        %v1546 = vadd.f32 %v1336, %v1541
        %s1547 = scalar_lea.vmem %s2, 1
        %v1548 = vld [vmem:[%s1547] sm:$0x1]
        %s1549 = scalar_lea.vmem %s3, 1
        %v1550 = vld [vmem:[%s1549] sm:$0x1]
        %v1551 = vsel %vm698, %v1546, 0.0
        %1552 = vadd.xlane.f32.xlu0 %v1551
        %v1553 = vpop.xlane.xlu0 %1552
        %v1554 = vmul.f32 %v1553, %v702
        %v1555 = vsub.f32 %v1546, %v1554
        %v1556 = vmul.f32 %v1555, %v1555
        %v1557 = vsel %vm698, %v1556, 0.0
        %1558 = vadd.xlane.f32.xlu0 %v1557
        %v1559 = vpop.xlane.xlu0 %1558
        %v1560 = vmul.f32 %v1559, %v702
        %v1562 = vlaneseq
        %v1563 = vshrl.u32 %v1562, 7
        %v1564 = vsub.s32 0, %v1563
        %v1565 = vrot.slane %v1548, %v1564
        %v1567 = vmul.f32 %v1565, %v1555
        %v1568 = vadd.f32 %v1560, 1e-05
        %v1569 = vrsqrt.pop %v1568
        %v1570 = vmul.f32 %v1567, %v1569
        %v1572 = vlaneseq
        %v1573 = vshrl.u32 %v1572, 7
        %v1574 = vsub.s32 0, %v1573
        %v1575 = vrot.slane %v1550, %v1574
        %v1577 = vadd.f32 %v1570, %v1575
        %v1578 = vpack.c.bf16 %v1577, %v1577
        %s1579 = scalar_lea.vmem %s4, 16
        %v1580 = vld [vmem:[%s1579] sm:$0xf]
        %v1581 = vld [vmem:[%s1579 + $0x4] sm:$0xf]
        %v1582 = vld [vmem:[%s1579 + $0x8] sm:$0xf]
        %v1583 = vld [vmem:[%s1579 + $0xc] sm:$0xf]
        %s1584 = scalar_lea.vmem %s5, 1
        %v1585 = vld [vmem:[%s1584] sm:$0x1]
        %v1587 = vlaneseq
        %v1588 = vshrl.u32 %v1587, 7
        %v1589 = vsub.s32 0, %v1588
        %v1590 = vrot.slane %v1585, %v1589
        %v1596 = vunpack.c.l.b16 %v1580
        %v1597 = vunpack.c.l.b16 %v1581
        %v1598 = vunpack.c.l.b16 %v1582
        %v1599 = vunpack.c.l.b16 %v1583
        %v1600 = vpack.c.b16 %v1597, %v1596
        %v1601 = vpack.c.b16 %v1599, %v1598
        %v1605 = vsel %vm698, %v1578, 0
        %1607 = vmatprep.subr.bf16.mxu0 0
        %1608 = vmatpush1.bf16.msra.mxu0 0
        %1609 = vmatprep.subr.bf16.mxu0 0
        %1610 = vmatpush1.bf16.msra.mxu0 0
        %1611 = vmatprep.subr.bf16.mxu0 0
        %1612 = vmatpush1.bf16.msra.mxu0 0
        %1613 = vmatprep.subr.bf16.mxu0 0
        %1614 = vmatpush1.bf16.msra.mxu0 0
        %1615 = vmatprep.subr.bf16.mxu0 0
        %1616 = vmatpush1.bf16.msra.mxu0 0
        %1617 = vmatprep.subr.bf16.mxu0 0
        %1618 = vmatpush1.bf16.msra.mxu0 0
        %1619 = vmatprep.subr.bf16.mxu0 0
        %1620 = vmatpush1.bf16.msra.mxu0 %v1601
        %1621 = vmatprep.subr.bf16.mxu0 0
        %1622 = vmatpush1.bf16.msra.mxu0 %v1600
        %1623 = vmatprep.subr.bf16.mxu0 0
        %1624 = vmatpush2.bf16.msra.mxu0 0
        %1625 = vmatprep.subr.bf16.mxu0 0
        %1626 = vmatpush2.bf16.msra.mxu0 0
        %1627 = vmatprep.subr.bf16.mxu0 0
        %1628 = vmatpush2.bf16.msra.mxu0 0
        %1629 = vmatprep.subr.bf16.mxu0 0
        %1630 = vmatpush2.bf16.msra.mxu0 0
        %1631 = vmatprep.subr.bf16.mxu0 0
        %1632 = vmatpush2.bf16.msra.mxu0 0
        %1633 = vmatprep.subr.bf16.mxu0 0
        %1634 = vmatpush2.bf16.msra.mxu0 0
        %1635 = vmatprep.subr.bf16.mxu0 0
        %1636 = vmatpush2.bf16.msra.mxu0 0
        %1637 = vmatprep.subr.bf16.mxu0 0
        %1638 = vmatpush2.bf16.msra.mxu0 0
        %1639 = vmatprep.mubr.bf16.mxu0 0
        %1640 = vmatmul.mubr.bf16.gmra.mxu0 %v1605
        %v1641 = vpop.f32.mrf.mxu0
        %v1642 = vadd.f32 %v1590, %v1641
        %v1643 = vpop.f32.mrf.mxu0
        %v1644 = vpop.f32.mrf.mxu0
        %v1645 = vpop.f32.mrf.mxu0
        %1646 = vdwg.mxu0
        %1648 = vrot.lane.b32.xlu0 %v1642, 120
        %v1649 = vpop.permute.xlu0 %1648
        %1651 = vrot.lane.b32.xlu0 %v1642, 112
        %v1652 = vpop.permute.xlu0 %1651
        %1654 = vrot.lane.b32.xlu0 %v1642, 104
        %v1655 = vpop.permute.xlu0 %1654
        %v1657 = vpack.c.bf16 %v1642, %v1642
        %v1658 = vpack.c.bf16 %v1649, %v1649
        %v1659 = vpack.c.bf16 %v1652, %v1652
        %v1660 = vpack.c.bf16 %v1655, %v1655
        %1662 = vrot.lane.b32.xlu0 %v1657, 96
        %v1663 = vpop.permute.xlu0 %1662
        %v1665 = vsel %vm817, %v1657, 0
        %v1668 = vsel %vm817, %v1663, 0
        %1670 = vmatprep.subr.bf16.mxu0 0
        %1671 = vmatpush1.bf16.xpose.msra.mxu0 0
        %1672 = vmatprep.subr.bf16.mxu0 0
        %1673 = vmatpush1.bf16.xpose.msra.mxu0 0
        %1674 = vmatprep.subr.bf16.mxu0 0
        %1675 = vmatpush1.bf16.xpose.msra.mxu0 0
        %1676 = vmatprep.subr.bf16.mxu0 0
        %1677 = vmatpush1.bf16.xpose.msra.mxu0 0
        %1678 = vmatprep.subr.bf16.mxu0 0
        %1679 = vmatpush1.bf16.xpose.msra.mxu0 0
        %1680 = vmatprep.subr.bf16.mxu0 0
        %1681 = vmatpush1.bf16.xpose.msra.mxu0 0
        %1682 = vmatprep.subr.bf16.mxu0 0
        %1683 = vmatpush1.bf16.xpose.msra.mxu0 0
        %1684 = vmatprep.subr.bf16.mxu0 0
        %1685 = vmatpush1.bf16.xpose.msra.mxu0 %v1668
        %1686 = vmatprep.subr.bf16.mxu0 0
        %1687 = vmatpush2.bf16.xpose.msra.mxu0 0
        %1688 = vmatprep.subr.bf16.mxu0 0
        %1689 = vmatpush2.bf16.xpose.msra.mxu0 0
        %1690 = vmatprep.subr.bf16.mxu0 0
        %1691 = vmatpush2.bf16.xpose.msra.mxu0 0
        %1692 = vmatprep.subr.bf16.mxu0 0
        %1693 = vmatpush2.bf16.xpose.msra.mxu0 0
        %1694 = vmatprep.subr.bf16.mxu0 0
        %1695 = vmatpush2.bf16.xpose.msra.mxu0 0
        %1696 = vmatprep.subr.bf16.mxu0 0
        %1697 = vmatpush2.bf16.xpose.msra.mxu0 0
        %1698 = vmatprep.subr.bf16.mxu0 0
        %1699 = vmatpush2.bf16.xpose.msra.mxu0 0
        %1700 = vmatprep.subr.bf16.mxu0 0
        %1701 = vmatpush2.bf16.xpose.msra.mxu0 0
        %1702 = vmatprep.mubr.bf16.mxu0 0
        %1703 = vmatmul.mubr.bf16.gmra.mxu0 %v1665
        %v1704 = vpop.f32.mrf.mxu0
        %v1705 = vadd.f32 %v812, %v1704
        %v1706 = vpop.f32.mrf.mxu0
        %v1707 = vpop.f32.mrf.mxu0
        %v1708 = vpop.f32.mrf.mxu0
        %1709 = vdwg.mxu0
        %1711 = vrot.lane.b32.xlu0 %v1658, 96
        %v1712 = vpop.permute.xlu0 %1711
        %v1714 = vsel %vm817, %v1658, 0
        %v1717 = vsel %vm817, %v1712, 0
        %1719 = vmatprep.subr.bf16.mxu0 0
        %1720 = vmatpush1.bf16.xpose.msra.mxu0 0
        %1721 = vmatprep.subr.bf16.mxu0 0
        %1722 = vmatpush1.bf16.xpose.msra.mxu0 0
        %1723 = vmatprep.subr.bf16.mxu0 0
        %1724 = vmatpush1.bf16.xpose.msra.mxu0 0
        %1725 = vmatprep.subr.bf16.mxu0 0
        %1726 = vmatpush1.bf16.xpose.msra.mxu0 0
        %1727 = vmatprep.subr.bf16.mxu0 0
        %1728 = vmatpush1.bf16.xpose.msra.mxu0 0
        %1729 = vmatprep.subr.bf16.mxu0 0
        %1730 = vmatpush1.bf16.xpose.msra.mxu0 0
        %1731 = vmatprep.subr.bf16.mxu0 0
        %1732 = vmatpush1.bf16.xpose.msra.mxu0 0
        %1733 = vmatprep.subr.bf16.mxu0 0
        %1734 = vmatpush1.bf16.xpose.msra.mxu0 %v1717
        %1735 = vmatprep.subr.bf16.mxu0 0
        %1736 = vmatpush2.bf16.xpose.msra.mxu0 0
        %1737 = vmatprep.subr.bf16.mxu0 0
        %1738 = vmatpush2.bf16.xpose.msra.mxu0 0
        %1739 = vmatprep.subr.bf16.mxu0 0
        %1740 = vmatpush2.bf16.xpose.msra.mxu0 0
        %1741 = vmatprep.subr.bf16.mxu0 0
        %1742 = vmatpush2.bf16.xpose.msra.mxu0 0
        %1743 = vmatprep.subr.bf16.mxu0 0
        %1744 = vmatpush2.bf16.xpose.msra.mxu0 0
        %1745 = vmatprep.subr.bf16.mxu0 0
        %1746 = vmatpush2.bf16.xpose.msra.mxu0 0
        %1747 = vmatprep.subr.bf16.mxu0 0
        %1748 = vmatpush2.bf16.xpose.msra.mxu0 0
        %1749 = vmatprep.subr.bf16.mxu0 0
        %1750 = vmatpush2.bf16.xpose.msra.mxu0 0
        %1751 = vmatprep.mubr.bf16.mxu0 0
        %1752 = vmatmul.mubr.bf16.gmra.mxu0 %v1714
        %v1753 = vpop.f32.mrf.mxu0
        %v1754 = vadd.f32 %v812, %v1753
        %v1755 = vpop.f32.mrf.mxu0
        %v1756 = vpop.f32.mrf.mxu0
        %v1757 = vpop.f32.mrf.mxu0
        %1758 = vdwg.mxu0
        %1760 = vrot.lane.b32.xlu0 %v1659, 96
        %v1761 = vpop.permute.xlu0 %1760
        %v1763 = vsel %vm817, %v1659, 0
        %v1766 = vsel %vm817, %v1761, 0
        %1768 = vmatprep.subr.bf16.mxu0 0
        %1769 = vmatpush1.bf16.xpose.msra.mxu0 0
        %1770 = vmatprep.subr.bf16.mxu0 0
        %1771 = vmatpush1.bf16.xpose.msra.mxu0 0
        %1772 = vmatprep.subr.bf16.mxu0 0
        %1773 = vmatpush1.bf16.xpose.msra.mxu0 0
        %1774 = vmatprep.subr.bf16.mxu0 0
        %1775 = vmatpush1.bf16.xpose.msra.mxu0 0
        %1776 = vmatprep.subr.bf16.mxu0 0
        %1777 = vmatpush1.bf16.xpose.msra.mxu0 0
        %1778 = vmatprep.subr.bf16.mxu0 0
        %1779 = vmatpush1.bf16.xpose.msra.mxu0 0
        %1780 = vmatprep.subr.bf16.mxu0 0
        %1781 = vmatpush1.bf16.xpose.msra.mxu0 0
        %1782 = vmatprep.subr.bf16.mxu0 0
        %1783 = vmatpush1.bf16.xpose.msra.mxu0 %v1766
        %1784 = vmatprep.subr.bf16.mxu0 0
        %1785 = vmatpush2.bf16.xpose.msra.mxu0 0
        %1786 = vmatprep.subr.bf16.mxu0 0
        %1787 = vmatpush2.bf16.xpose.msra.mxu0 0
        %1788 = vmatprep.subr.bf16.mxu0 0
        %1789 = vmatpush2.bf16.xpose.msra.mxu0 0
        %1790 = vmatprep.subr.bf16.mxu0 0
        %1791 = vmatpush2.bf16.xpose.msra.mxu0 0
        %1792 = vmatprep.subr.bf16.mxu0 0
        %1793 = vmatpush2.bf16.xpose.msra.mxu0 0
        %1794 = vmatprep.subr.bf16.mxu0 0
        %1795 = vmatpush2.bf16.xpose.msra.mxu0 0
        %1796 = vmatprep.subr.bf16.mxu0 0
        %1797 = vmatpush2.bf16.xpose.msra.mxu0 0
        %1798 = vmatprep.subr.bf16.mxu0 0
        %1799 = vmatpush2.bf16.xpose.msra.mxu0 0
        %1800 = vmatprep.mubr.bf16.mxu0 0
        %1801 = vmatmul.mubr.bf16.gmra.mxu0 %v1763
        %v1802 = vpop.f32.mrf.mxu0
        %v1803 = vadd.f32 %v812, %v1802
        %v1804 = vpop.f32.mrf.mxu0
        %v1805 = vpop.f32.mrf.mxu0
        %v1806 = vpop.f32.mrf.mxu0
        %1807 = vdwg.mxu0
        %1809 = vrot.lane.b32.xlu0 %v1660, 96
        %v1810 = vpop.permute.xlu0 %1809
        %v1812 = vsel %vm817, %v1660, 0
        %v1815 = vsel %vm817, %v1810, 0
        %1817 = vmatprep.subr.bf16.mxu0 0
        %1818 = vmatpush1.bf16.xpose.msra.mxu0 0
        %1819 = vmatprep.subr.bf16.mxu0 0
        %1820 = vmatpush1.bf16.xpose.msra.mxu0 0
        %1821 = vmatprep.subr.bf16.mxu0 0
        %1822 = vmatpush1.bf16.xpose.msra.mxu0 0
        %1823 = vmatprep.subr.bf16.mxu0 0
        %1824 = vmatpush1.bf16.xpose.msra.mxu0 0
        %1825 = vmatprep.subr.bf16.mxu0 0
        %1826 = vmatpush1.bf16.xpose.msra.mxu0 0
        %1827 = vmatprep.subr.bf16.mxu0 0
        %1828 = vmatpush1.bf16.xpose.msra.mxu0 0
        %1829 = vmatprep.subr.bf16.mxu0 0
        %1830 = vmatpush1.bf16.xpose.msra.mxu0 0
        %1831 = vmatprep.subr.bf16.mxu0 0
        %1832 = vmatpush1.bf16.xpose.msra.mxu0 %v1815
        %1833 = vmatprep.subr.bf16.mxu0 0
        %1834 = vmatpush2.bf16.xpose.msra.mxu0 0
        %1835 = vmatprep.subr.bf16.mxu0 0
        %1836 = vmatpush2.bf16.xpose.msra.mxu0 0
        %1837 = vmatprep.subr.bf16.mxu0 0
        %1838 = vmatpush2.bf16.xpose.msra.mxu0 0
        %1839 = vmatprep.subr.bf16.mxu0 0
        %1840 = vmatpush2.bf16.xpose.msra.mxu0 0
        %1841 = vmatprep.subr.bf16.mxu0 0
        %1842 = vmatpush2.bf16.xpose.msra.mxu0 0
        %1843 = vmatprep.subr.bf16.mxu0 0
        %1844 = vmatpush2.bf16.xpose.msra.mxu0 0
        %1845 = vmatprep.subr.bf16.mxu0 0
        %1846 = vmatpush2.bf16.xpose.msra.mxu0 0
        %1847 = vmatprep.subr.bf16.mxu0 0
        %1848 = vmatpush2.bf16.xpose.msra.mxu0 0
        %1849 = vmatprep.mubr.bf16.mxu0 0
        %1850 = vmatmul.mubr.bf16.gmra.mxu0 %v1812
        %v1851 = vpop.f32.mrf.mxu0
        %v1852 = vadd.f32 %v812, %v1851
        %v1853 = vpop.f32.mrf.mxu0
        %v1854 = vpop.f32.mrf.mxu0
        %v1855 = vpop.f32.mrf.mxu0
        %1856 = vdwg.mxu0
        %v1857 = vsel %vm817, %v1705, -inf
        %1858 = vmax.xlane.f32.xlu0 %v1857
        %v1859 = vpop.xlane.xlu0 %1858
        %v1860 = vsel %vm817, %v1754, -inf
        %1861 = vmax.xlane.f32.xlu0 %v1860
        %v1862 = vpop.xlane.xlu0 %1861
        %v1863 = vsel %vm817, %v1803, -inf
        %1864 = vmax.xlane.f32.xlu0 %v1863
        %v1865 = vpop.xlane.xlu0 %1864
        %v1866 = vsel %vm817, %v1852, -inf
        %1867 = vmax.xlane.f32.xlu0 %v1866
        %v1868 = vpop.xlane.xlu0 %1867
        %v1869 = vsub.f32 %v1705, %v1859
        %v1870 = vsub.f32 %v1754, %v1862
        %v1871 = vsub.f32 %v1803, %v1865
        %v1872 = vsub.f32 %v1852, %v1868
        %v1873 = vmul.f32 %v1869, 1.442695
        %v1874 = vpow.pop %v1873
        %v1875 = vmul.f32 %v1870, 1.442695
        %v1876 = vpow.pop %v1875
        %v1877 = vmul.f32 %v1871, 1.442695
        %v1878 = vpow.pop %v1877
        %v1879 = vmul.f32 %v1872, 1.442695
        %v1880 = vpow.pop %v1879
        %v1881 = vsel %vm817, %v1874, 0.0
        %1882 = vadd.xlane.f32.xlu0 %v1881
        %v1883 = vpop.xlane.xlu0 %1882
        %v1884 = vsel %vm817, %v1876, 0.0
        %1885 = vadd.xlane.f32.xlu0 %v1884
        %v1886 = vpop.xlane.xlu0 %1885
        %v1887 = vsel %vm817, %v1878, 0.0
        %1888 = vadd.xlane.f32.xlu0 %v1887
        %v1889 = vpop.xlane.xlu0 %1888
        %v1890 = vsel %vm817, %v1880, 0.0
        %1891 = vadd.xlane.f32.xlu0 %v1890
        %v1892 = vpop.xlane.xlu0 %1891
        %v1893 = vrcp.pop %v1883
        %v1894 = vrcp.pop %v1886
        %v1895 = vrcp.pop %v1889
        %v1896 = vrcp.pop %v1892
        %v1897 = vmul.f32 %v1874, %v1893
        %v1898 = vmul.f32 %v1876, %v1894
        %v1899 = vmul.f32 %v1878, %v1895
        %v1900 = vmul.f32 %v1880, %v1896
        %v1901 = vpack.c.bf16 %v1897, %v1897
        %v1902 = vpack.c.bf16 %v1898, %v1898
        %v1903 = vpack.c.bf16 %v1899, %v1899
        %v1904 = vpack.c.bf16 %v1900, %v1900
        %1905 = vrot.lane.b32.xlu0 %v1657, 64
        %v1906 = vpop.permute.xlu0 %1905
        %v1908 = vsel %vm817, %v1901, 0
        %v1911 = vsel %vm1064, %v1906, 0
        %1913 = vmatprep.subr.bf16.mxu0 0
        %1914 = vmatpush1.bf16.msra.mxu0 0
        %1915 = vmatprep.subr.bf16.mxu0 0
        %1916 = vmatpush1.bf16.msra.mxu0 0
        %1917 = vmatprep.subr.bf16.mxu0 0
        %1918 = vmatpush1.bf16.msra.mxu0 0
        %1919 = vmatprep.subr.bf16.mxu0 0
        %1920 = vmatpush1.bf16.msra.mxu0 0
        %1921 = vmatprep.subr.bf16.mxu0 0
        %1922 = vmatpush1.bf16.msra.mxu0 0
        %1923 = vmatprep.subr.bf16.mxu0 0
        %1924 = vmatpush1.bf16.msra.mxu0 0
        %1925 = vmatprep.subr.bf16.mxu0 0
        %1926 = vmatpush1.bf16.msra.mxu0 0
        %1927 = vmatprep.subr.bf16.mxu0 0
        %1928 = vmatpush1.bf16.msra.mxu0 %v1911
        %1929 = vmatprep.subr.bf16.mxu0 0
        %1930 = vmatpush2.bf16.msra.mxu0 0
        %1931 = vmatprep.subr.bf16.mxu0 0
        %1932 = vmatpush2.bf16.msra.mxu0 0
        %1933 = vmatprep.subr.bf16.mxu0 0
        %1934 = vmatpush2.bf16.msra.mxu0 0
        %1935 = vmatprep.subr.bf16.mxu0 0
        %1936 = vmatpush2.bf16.msra.mxu0 0
        %1937 = vmatprep.subr.bf16.mxu0 0
        %1938 = vmatpush2.bf16.msra.mxu0 0
        %1939 = vmatprep.subr.bf16.mxu0 0
        %1940 = vmatpush2.bf16.msra.mxu0 0
        %1941 = vmatprep.subr.bf16.mxu0 0
        %1942 = vmatpush2.bf16.msra.mxu0 0
        %1943 = vmatprep.subr.bf16.mxu0 0
        %1944 = vmatpush2.bf16.msra.mxu0 0
        %1945 = vmatprep.mubr.bf16.mxu0 0
        %1946 = vmatmul.mubr.bf16.gmra.mxu0 %v1908
        %v1947 = vpop.f32.mrf.mxu0
        %v1948 = vadd.f32 0.0, %v1947
        %v1949 = vpop.f32.mrf.mxu0
        %v1950 = vpop.f32.mrf.mxu0
        %v1951 = vpop.f32.mrf.mxu0
        %1952 = vdwg.mxu0
        %1953 = vrot.lane.b32.xlu0 %v1658, 64
        %v1954 = vpop.permute.xlu0 %1953
        %v1956 = vsel %vm817, %v1902, 0
        %v1959 = vsel %vm1064, %v1954, 0
        %1961 = vmatprep.subr.bf16.mxu0 0
        %1962 = vmatpush1.bf16.msra.mxu0 0
        %1963 = vmatprep.subr.bf16.mxu0 0
        %1964 = vmatpush1.bf16.msra.mxu0 0
        %1965 = vmatprep.subr.bf16.mxu0 0
        %1966 = vmatpush1.bf16.msra.mxu0 0
        %1967 = vmatprep.subr.bf16.mxu0 0
        %1968 = vmatpush1.bf16.msra.mxu0 0
        %1969 = vmatprep.subr.bf16.mxu0 0
        %1970 = vmatpush1.bf16.msra.mxu0 0
        %1971 = vmatprep.subr.bf16.mxu0 0
        %1972 = vmatpush1.bf16.msra.mxu0 0
        %1973 = vmatprep.subr.bf16.mxu0 0
        %1974 = vmatpush1.bf16.msra.mxu0 0
        %1975 = vmatprep.subr.bf16.mxu0 0
        %1976 = vmatpush1.bf16.msra.mxu0 %v1959
        %1977 = vmatprep.subr.bf16.mxu0 0
        %1978 = vmatpush2.bf16.msra.mxu0 0
        %1979 = vmatprep.subr.bf16.mxu0 0
        %1980 = vmatpush2.bf16.msra.mxu0 0
        %1981 = vmatprep.subr.bf16.mxu0 0
        %1982 = vmatpush2.bf16.msra.mxu0 0
        %1983 = vmatprep.subr.bf16.mxu0 0
        %1984 = vmatpush2.bf16.msra.mxu0 0
        %1985 = vmatprep.subr.bf16.mxu0 0
        %1986 = vmatpush2.bf16.msra.mxu0 0
        %1987 = vmatprep.subr.bf16.mxu0 0
        %1988 = vmatpush2.bf16.msra.mxu0 0
        %1989 = vmatprep.subr.bf16.mxu0 0
        %1990 = vmatpush2.bf16.msra.mxu0 0
        %1991 = vmatprep.subr.bf16.mxu0 0
        %1992 = vmatpush2.bf16.msra.mxu0 0
        %1993 = vmatprep.mubr.bf16.mxu0 0
        %1994 = vmatmul.mubr.bf16.gmra.mxu0 %v1956
        %v1995 = vpop.f32.mrf.mxu0
        %v1996 = vadd.f32 0.0, %v1995
        %v1997 = vpop.f32.mrf.mxu0
        %v1998 = vpop.f32.mrf.mxu0
        %v1999 = vpop.f32.mrf.mxu0
        %2000 = vdwg.mxu0
        %2001 = vrot.lane.b32.xlu0 %v1659, 64
        %v2002 = vpop.permute.xlu0 %2001
        %v2004 = vsel %vm817, %v1903, 0
        %v2007 = vsel %vm1064, %v2002, 0
        %2009 = vmatprep.subr.bf16.mxu0 0
        %2010 = vmatpush1.bf16.msra.mxu0 0
        %2011 = vmatprep.subr.bf16.mxu0 0
        %2012 = vmatpush1.bf16.msra.mxu0 0
        %2013 = vmatprep.subr.bf16.mxu0 0
        %2014 = vmatpush1.bf16.msra.mxu0 0
        %2015 = vmatprep.subr.bf16.mxu0 0
        %2016 = vmatpush1.bf16.msra.mxu0 0
        %2017 = vmatprep.subr.bf16.mxu0 0
        %2018 = vmatpush1.bf16.msra.mxu0 0
        %2019 = vmatprep.subr.bf16.mxu0 0
        %2020 = vmatpush1.bf16.msra.mxu0 0
        %2021 = vmatprep.subr.bf16.mxu0 0
        %2022 = vmatpush1.bf16.msra.mxu0 0
        %2023 = vmatprep.subr.bf16.mxu0 0
        %2024 = vmatpush1.bf16.msra.mxu0 %v2007
        %2025 = vmatprep.subr.bf16.mxu0 0
        %2026 = vmatpush2.bf16.msra.mxu0 0
        %2027 = vmatprep.subr.bf16.mxu0 0
        %2028 = vmatpush2.bf16.msra.mxu0 0
        %2029 = vmatprep.subr.bf16.mxu0 0
        %2030 = vmatpush2.bf16.msra.mxu0 0
        %2031 = vmatprep.subr.bf16.mxu0 0
        %2032 = vmatpush2.bf16.msra.mxu0 0
        %2033 = vmatprep.subr.bf16.mxu0 0
        %2034 = vmatpush2.bf16.msra.mxu0 0
        %2035 = vmatprep.subr.bf16.mxu0 0
        %2036 = vmatpush2.bf16.msra.mxu0 0
        %2037 = vmatprep.subr.bf16.mxu0 0
        %2038 = vmatpush2.bf16.msra.mxu0 0
        %2039 = vmatprep.subr.bf16.mxu0 0
        %2040 = vmatpush2.bf16.msra.mxu0 0
        %2041 = vmatprep.mubr.bf16.mxu0 0
        %2042 = vmatmul.mubr.bf16.gmra.mxu0 %v2004
        %v2043 = vpop.f32.mrf.mxu0
        %v2044 = vadd.f32 0.0, %v2043
        %v2045 = vpop.f32.mrf.mxu0
        %v2046 = vpop.f32.mrf.mxu0
        %v2047 = vpop.f32.mrf.mxu0
        %2048 = vdwg.mxu0
        %2049 = vrot.lane.b32.xlu0 %v1660, 64
        %v2050 = vpop.permute.xlu0 %2049
        %v2052 = vsel %vm817, %v1904, 0
        %v2055 = vsel %vm1064, %v2050, 0
        %2057 = vmatprep.subr.bf16.mxu0 0
        %2058 = vmatpush1.bf16.msra.mxu0 0
        %2059 = vmatprep.subr.bf16.mxu0 0
        %2060 = vmatpush1.bf16.msra.mxu0 0
        %2061 = vmatprep.subr.bf16.mxu0 0
        %2062 = vmatpush1.bf16.msra.mxu0 0
        %2063 = vmatprep.subr.bf16.mxu0 0
        %2064 = vmatpush1.bf16.msra.mxu0 0
        %2065 = vmatprep.subr.bf16.mxu0 0
        %2066 = vmatpush1.bf16.msra.mxu0 0
        %2067 = vmatprep.subr.bf16.mxu0 0
        %2068 = vmatpush1.bf16.msra.mxu0 0
        %2069 = vmatprep.subr.bf16.mxu0 0
        %2070 = vmatpush1.bf16.msra.mxu0 0
        %2071 = vmatprep.subr.bf16.mxu0 0
        %2072 = vmatpush1.bf16.msra.mxu0 %v2055
        %2073 = vmatprep.subr.bf16.mxu0 0
        %2074 = vmatpush2.bf16.msra.mxu0 0
        %2075 = vmatprep.subr.bf16.mxu0 0
        %2076 = vmatpush2.bf16.msra.mxu0 0
        %2077 = vmatprep.subr.bf16.mxu0 0
        %2078 = vmatpush2.bf16.msra.mxu0 0
        %2079 = vmatprep.subr.bf16.mxu0 0
        %2080 = vmatpush2.bf16.msra.mxu0 0
        %2081 = vmatprep.subr.bf16.mxu0 0
        %2082 = vmatpush2.bf16.msra.mxu0 0
        %2083 = vmatprep.subr.bf16.mxu0 0
        %2084 = vmatpush2.bf16.msra.mxu0 0
        %2085 = vmatprep.subr.bf16.mxu0 0
        %2086 = vmatpush2.bf16.msra.mxu0 0
        %2087 = vmatprep.subr.bf16.mxu0 0
        %2088 = vmatpush2.bf16.msra.mxu0 0
        %2089 = vmatprep.mubr.bf16.mxu0 0
        %2090 = vmatmul.mubr.bf16.gmra.mxu0 %v2052
        %v2091 = vpop.f32.mrf.mxu0
        %v2092 = vadd.f32 0.0, %v2091
        %v2093 = vpop.f32.mrf.mxu0
        %v2094 = vpop.f32.mrf.mxu0
        %v2095 = vpop.f32.mrf.mxu0
        %2096 = vdwg.mxu0
        %2098 = vrot.lane.b32.xlu0 %v1996, 8
        %v2099 = vpop.permute.xlu0 %2098
        %2102 = vrot.lane.b32.xlu0 %v2044, 16
        %v2103 = vpop.permute.xlu0 %2102
        %2106 = vrot.lane.b32.xlu0 %v2092, 24
        %v2107 = vpop.permute.xlu0 %2106
        %v2109 = vsel %vm817, %v1948, %v2099
        %v2110 = vsel %vm1265, %v2109, %v2103
        %v2111 = vsel %vm1267, %v2110, %v2107
        %v2112 = vpack.c.bf16 %v2111, %v2111
        %s2113 = scalar_lea.vmem %s6, 16
        %v2114 = vld [vmem:[%s2113] sm:$0xf]
        %v2115 = vld [vmem:[%s2113 + $0x4] sm:$0xf]
        %v2116 = vld [vmem:[%s2113 + $0x8] sm:$0xf]
        %v2117 = vld [vmem:[%s2113 + $0xc] sm:$0xf]
        %s2118 = scalar_lea.vmem %s7, 1
        %v2119 = vld [vmem:[%s2118] sm:$0x1]
        %v2121 = vlaneseq
        %v2122 = vshrl.u32 %v2121, 7
        %v2123 = vsub.s32 0, %v2122
        %v2124 = vrot.slane %v2119, %v2123
        %v2130 = vunpack.c.l.b16 %v2114
        %v2131 = vunpack.c.l.b16 %v2115
        %v2132 = vunpack.c.l.b16 %v2116
        %v2133 = vunpack.c.l.b16 %v2117
        %v2134 = vpack.c.b16 %v2131, %v2130
        %v2135 = vpack.c.b16 %v2133, %v2132
        %v2139 = vsel %vm698, %v2112, 0
        %2141 = vmatprep.subr.bf16.mxu0 0
        %2142 = vmatpush1.bf16.msra.mxu0 0
        %2143 = vmatprep.subr.bf16.mxu0 0
        %2144 = vmatpush1.bf16.msra.mxu0 0
        %2145 = vmatprep.subr.bf16.mxu0 0
        %2146 = vmatpush1.bf16.msra.mxu0 0
        %2147 = vmatprep.subr.bf16.mxu0 0
        %2148 = vmatpush1.bf16.msra.mxu0 0
        %2149 = vmatprep.subr.bf16.mxu0 0
        %2150 = vmatpush1.bf16.msra.mxu0 0
        %2151 = vmatprep.subr.bf16.mxu0 0
        %2152 = vmatpush1.bf16.msra.mxu0 0
        %2153 = vmatprep.subr.bf16.mxu0 0
        %2154 = vmatpush1.bf16.msra.mxu0 %v2135
        %2155 = vmatprep.subr.bf16.mxu0 0
        %2156 = vmatpush1.bf16.msra.mxu0 %v2134
        %2157 = vmatprep.subr.bf16.mxu0 0
        %2158 = vmatpush2.bf16.msra.mxu0 0
        %2159 = vmatprep.subr.bf16.mxu0 0
        %2160 = vmatpush2.bf16.msra.mxu0 0
        %2161 = vmatprep.subr.bf16.mxu0 0
        %2162 = vmatpush2.bf16.msra.mxu0 0
        %2163 = vmatprep.subr.bf16.mxu0 0
        %2164 = vmatpush2.bf16.msra.mxu0 0
        %2165 = vmatprep.subr.bf16.mxu0 0
        %2166 = vmatpush2.bf16.msra.mxu0 0
        %2167 = vmatprep.subr.bf16.mxu0 0
        %2168 = vmatpush2.bf16.msra.mxu0 0
        %2169 = vmatprep.subr.bf16.mxu0 0
        %2170 = vmatpush2.bf16.msra.mxu0 0
        %2171 = vmatprep.subr.bf16.mxu0 0
        %2172 = vmatpush2.bf16.msra.mxu0 0
        %2173 = vmatprep.mubr.bf16.mxu0 0
        %2174 = vmatmul.mubr.bf16.gmra.mxu0 %v2139
        %v2175 = vpop.f32.mrf.mxu0
        %v2176 = vadd.f32 %v2124, %v2175
        %v2177 = vpop.f32.mrf.mxu0
        %v2178 = vpop.f32.mrf.mxu0
        %v2179 = vpop.f32.mrf.mxu0
        %2180 = vdwg.mxu0
        %v2181 = vadd.f32 %v1546, %v2176
        %s2182 = scalar_lea.vmem %s8, 1
        %v2183 = vld [vmem:[%s2182] sm:$0x1]
        %s2184 = scalar_lea.vmem %s9, 1
        %v2185 = vld [vmem:[%s2184] sm:$0x1]
        %v2186 = vsel %vm698, %v2181, 0.0
        %2187 = vadd.xlane.f32.xlu0 %v2186
        %v2188 = vpop.xlane.xlu0 %2187
        %v2189 = vmul.f32 %v2188, %v702
        %v2190 = vsub.f32 %v2181, %v2189
        %v2191 = vmul.f32 %v2190, %v2190
        %v2192 = vsel %vm698, %v2191, 0.0
        %2193 = vadd.xlane.f32.xlu0 %v2192
        %v2194 = vpop.xlane.xlu0 %2193
        %v2195 = vmul.f32 %v2194, %v702
        %v2197 = vlaneseq
        %v2198 = vshrl.u32 %v2197, 7
        %v2199 = vsub.s32 0, %v2198
        %v2200 = vrot.slane %v2183, %v2199
        %v2202 = vmul.f32 %v2200, %v2190
        %v2203 = vadd.f32 %v2195, 1e-05
        %v2204 = vrsqrt.pop %v2203
        %v2205 = vmul.f32 %v2202, %v2204
        %v2207 = vlaneseq
        %v2208 = vshrl.u32 %v2207, 7
        %v2209 = vsub.s32 0, %v2208
        %v2210 = vrot.slane %v2185, %v2209
        %v2212 = vadd.f32 %v2205, %v2210
        %v2213 = vpack.c.bf16 %v2212, %v2212
        %s2214 = scalar_lea.vmem %s10, 16
        %v2215 = vld [vmem:[%s2214] sm:$0xf]
        %v2216 = vld [vmem:[%s2214 + $0x4] sm:$0xf]
        %v2217 = vld [vmem:[%s2214 + $0x8] sm:$0xf]
        %v2218 = vld [vmem:[%s2214 + $0xc] sm:$0xf]
        %s2219 = scalar_lea.vmem %s11, 1
        %v2220 = vld [vmem:[%s2219] sm:$0x1]
        %v2222 = vlaneseq
        %v2223 = vshrl.u32 %v2222, 7
        %v2224 = vsub.s32 0, %v2223
        %v2225 = vrot.slane %v2220, %v2224
        %v2231 = vunpack.c.l.b16 %v2215
        %v2232 = vunpack.c.l.b16 %v2216
        %v2233 = vunpack.c.l.b16 %v2217
        %v2234 = vunpack.c.l.b16 %v2218
        %v2235 = vpack.c.b16 %v2232, %v2231
        %v2236 = vpack.c.b16 %v2234, %v2233
        %v2240 = vsel %vm698, %v2213, 0
        %2242 = vmatprep.subr.bf16.mxu0 0
        %2243 = vmatpush1.bf16.msra.mxu0 0
        %2244 = vmatprep.subr.bf16.mxu0 0
        %2245 = vmatpush1.bf16.msra.mxu0 0
        %2246 = vmatprep.subr.bf16.mxu0 0
        %2247 = vmatpush1.bf16.msra.mxu0 0
        %2248 = vmatprep.subr.bf16.mxu0 0
        %2249 = vmatpush1.bf16.msra.mxu0 0
        %2250 = vmatprep.subr.bf16.mxu0 0
        %2251 = vmatpush1.bf16.msra.mxu0 0
        %2252 = vmatprep.subr.bf16.mxu0 0
        %2253 = vmatpush1.bf16.msra.mxu0 0
        %2254 = vmatprep.subr.bf16.mxu0 0
        %2255 = vmatpush1.bf16.msra.mxu0 %v2236
        %2256 = vmatprep.subr.bf16.mxu0 0
        %2257 = vmatpush1.bf16.msra.mxu0 %v2235
        %2258 = vmatprep.subr.bf16.mxu0 0
        %2259 = vmatpush2.bf16.msra.mxu0 0
        %2260 = vmatprep.subr.bf16.mxu0 0
        %2261 = vmatpush2.bf16.msra.mxu0 0
        %2262 = vmatprep.subr.bf16.mxu0 0
        %2263 = vmatpush2.bf16.msra.mxu0 0
        %2264 = vmatprep.subr.bf16.mxu0 0
        %2265 = vmatpush2.bf16.msra.mxu0 0
        %2266 = vmatprep.subr.bf16.mxu0 0
        %2267 = vmatpush2.bf16.msra.mxu0 0
        %2268 = vmatprep.subr.bf16.mxu0 0
        %2269 = vmatpush2.bf16.msra.mxu0 0
        %2270 = vmatprep.subr.bf16.mxu0 0
        %2271 = vmatpush2.bf16.msra.mxu0 0
        %2272 = vmatprep.subr.bf16.mxu0 0
        %2273 = vmatpush2.bf16.msra.mxu0 0
        %2274 = vmatprep.mubr.bf16.mxu0 0
        %2275 = vmatmul.mubr.bf16.gmra.mxu0 %v2240
        %v2276 = vpop.f32.mrf.mxu0
        %v2277 = vadd.f32 %v2225, %v2276
        %v2278 = vpop.f32.mrf.mxu0
        %v2279 = vpop.f32.mrf.mxu0
        %v2280 = vpop.f32.mrf.mxu0
        %2281 = vdwg.mxu0
        %v2282 = vmax.f32 %v2277, 0.0
        %v2283 = vpack.c.bf16 %v2282, %v2282
        %s2284 = scalar_lea.vmem %s12, 64
        %v2285 = vld [vmem:[%s2284] sm:$0xf]
        %v2286 = vld [vmem:[%s2284 + $0x4] sm:$0xf]
        %v2287 = vld [vmem:[%s2284 + $0x8] sm:$0xf]
        %v2288 = vld [vmem:[%s2284 + $0xc] sm:$0xf]
        %v2289 = vld [vmem:[%s2284 + $0x10] sm:$0xf]
        %v2290 = vld [vmem:[%s2284 + $0x14] sm:$0xf]
        %v2291 = vld [vmem:[%s2284 + $0x18] sm:$0xf]
        %v2292 = vld [vmem:[%s2284 + $0x1c] sm:$0xf]
        %v2293 = vld [vmem:[%s2284 + $0x20] sm:$0xf]
        %v2294 = vld [vmem:[%s2284 + $0x24] sm:$0xf]
        %v2295 = vld [vmem:[%s2284 + $0x28] sm:$0xf]
        %v2296 = vld [vmem:[%s2284 + $0x2c] sm:$0xf]
        %v2297 = vld [vmem:[%s2284 + $0x30] sm:$0xf]
        %v2298 = vld [vmem:[%s2284 + $0x34] sm:$0xf]
        %v2299 = vld [vmem:[%s2284 + $0x38] sm:$0xf]
        %v2300 = vld [vmem:[%s2284 + $0x3c] sm:$0xf]
        %s2301 = scalar_lea.vmem %s13, 1
        %v2302 = vld [vmem:[%s2301] sm:$0x1]
        %v2304 = vlaneseq
        %v2305 = vshrl.u32 %v2304, 7
        %v2306 = vsub.s32 0, %v2305
        %v2307 = vrot.slane %v2302, %v2306
        %v2325 = vunpack.c.l.b16 %v2285
        %v2326 = vunpack.c.l.b16 %v2286
        %v2327 = vunpack.c.l.b16 %v2287
        %v2328 = vunpack.c.l.b16 %v2288
        %v2329 = vunpack.c.l.b16 %v2289
        %v2330 = vunpack.c.l.b16 %v2290
        %v2331 = vunpack.c.l.b16 %v2291
        %v2332 = vunpack.c.l.b16 %v2292
        %v2333 = vunpack.c.l.b16 %v2293
        %v2334 = vunpack.c.l.b16 %v2294
        %v2335 = vunpack.c.l.b16 %v2295
        %v2336 = vunpack.c.l.b16 %v2296
        %v2337 = vunpack.c.l.b16 %v2297
        %v2338 = vunpack.c.l.b16 %v2298
        %v2339 = vunpack.c.l.b16 %v2299
        %v2340 = vunpack.c.l.b16 %v2300
        %v2341 = vpack.c.b16 %v2326, %v2325
        %v2342 = vpack.c.b16 %v2328, %v2327
        %v2343 = vpack.c.b16 %v2330, %v2329
        %v2344 = vpack.c.b16 %v2332, %v2331
        %v2345 = vpack.c.b16 %v2334, %v2333
        %v2346 = vpack.c.b16 %v2336, %v2335
        %v2347 = vpack.c.b16 %v2338, %v2337
        %v2348 = vpack.c.b16 %v2340, %v2339
        %2357 = vmatprep.subr.bf16.mxu0 0
        %2358 = vmatpush1.bf16.msra.mxu0 %v2348
        %2359 = vmatprep.subr.bf16.mxu0 0
        %2360 = vmatpush1.bf16.msra.mxu0 %v2347
        %2361 = vmatprep.subr.bf16.mxu0 0
        %2362 = vmatpush1.bf16.msra.mxu0 %v2346
        %2363 = vmatprep.subr.bf16.mxu0 0
        %2364 = vmatpush1.bf16.msra.mxu0 %v2345
        %2365 = vmatprep.subr.bf16.mxu0 0
        %2366 = vmatpush1.bf16.msra.mxu0 %v2344
        %2367 = vmatprep.subr.bf16.mxu0 0
        %2368 = vmatpush1.bf16.msra.mxu0 %v2343
        %2369 = vmatprep.subr.bf16.mxu0 0
        %2370 = vmatpush1.bf16.msra.mxu0 %v2342
        %2371 = vmatprep.subr.bf16.mxu0 0
        %2372 = vmatpush1.bf16.msra.mxu0 %v2341
        %2373 = vmatprep.subr.bf16.mxu0 0
        %2374 = vmatpush2.bf16.msra.mxu0 0
        %2375 = vmatprep.subr.bf16.mxu0 0
        %2376 = vmatpush2.bf16.msra.mxu0 0
        %2377 = vmatprep.subr.bf16.mxu0 0
        %2378 = vmatpush2.bf16.msra.mxu0 0
        %2379 = vmatprep.subr.bf16.mxu0 0
        %2380 = vmatpush2.bf16.msra.mxu0 0
        %2381 = vmatprep.subr.bf16.mxu0 0
        %2382 = vmatpush2.bf16.msra.mxu0 0
        %2383 = vmatprep.subr.bf16.mxu0 0
        %2384 = vmatpush2.bf16.msra.mxu0 0
        %2385 = vmatprep.subr.bf16.mxu0 0
        %2386 = vmatpush2.bf16.msra.mxu0 0
        %2387 = vmatprep.subr.bf16.mxu0 0
        %2388 = vmatpush2.bf16.msra.mxu0 0
        %2389 = vmatprep.mubr.bf16.mxu0 0
        %2390 = vmatmul.mubr.bf16.gmra.mxu0 %v2283
        %v2391 = vpop.f32.mrf.mxu0
        %v2392 = vadd.f32 %v2307, %v2391
        %v2393 = vpop.f32.mrf.mxu0
        %v2394 = vpop.f32.mrf.mxu0
        %v2395 = vpop.f32.mrf.mxu0
        %2396 = vdwg.mxu0
        %v2397 = vadd.f32 %v2181, %v2392
        %v2398 = vld [vmem:[%s14] sm:$0x1]
        %v2399 = vld [vmem:[%s15] sm:$0x1]
        %v2400 = vsel %vm698, %v2397, 0.0
        %2401 = vadd.xlane.f32.xlu0 %v2400
        %v2402 = vpop.xlane.xlu0 %2401
        %v2403 = vmul.f32 %v2402, %v702
        %v2404 = vsub.f32 %v2397, %v2403
        %v2405 = vmul.f32 %v2404, %v2404
        %v2406 = vsel %vm698, %v2405, 0.0
        %2407 = vadd.xlane.f32.xlu0 %v2406
        %v2408 = vpop.xlane.xlu0 %2407
        %v2409 = vmul.f32 %v2408, %v702
        %v2411 = vlaneseq
        %v2412 = vshrl.u32 %v2411, 7
        %v2413 = vsub.s32 0, %v2412
        %v2414 = vrot.slane %v2398, %v2413
        %v2416 = vmul.f32 %v2414, %v2404
        %v2417 = vadd.f32 %v2409, 1e-12
        %v2418 = vrsqrt.pop %v2417
        %v2419 = vmul.f32 %v2416, %v2418
        %v2421 = vlaneseq
        %v2422 = vshrl.u32 %v2421, 7
        %v2423 = vsub.s32 0, %v2422
        %v2424 = vrot.slane %v2399, %v2423
        %v2426 = vadd.f32 %v2419, %v2424
        %v2427 = vsel %vm698, %v2426, 0.0
        %v2428 = vrot.slane %v2427, 4
        %v2429 = vadd.f32 %v2427, %v2428
        %v2430 = vrot.slane %v2429, 2
        %v2431 = vadd.f32 %v2429, %v2430
        %v2432 = vrot.slane %v2431, 1
        %v2433 = vadd.f32 %v2431, %v2432
        %v2434 = vrcp.pop 8.0
        %v2435 = vmul.f32 %v2433, %v2434
        %v2436 = vpack.c.bf16 %v2435, %v2435
        %v2437 = vld [vmem:[%s16] sm:$0xf]
        %v2438 = vld [vmem:[%s16 + $0x4] sm:$0xf]
        %v2439 = vld [vmem:[%s16 + $0x8] sm:$0xf]
        %v2440 = vld [vmem:[%s16 + $0xc] sm:$0xf]
        %v2441 = vld [vmem:[%s17] sm:$0x1]
        %v2446 = vunpack.c.l.b16 %v2437
        %v2447 = vunpack.c.l.b16 %v2438
        %v2448 = vunpack.c.l.b16 %v2439
        %v2449 = vunpack.c.l.b16 %v2440
        %v2450 = vpack.c.b16 %v2447, %v2446
        %v2451 = vpack.c.b16 %v2449, %v2448
        %v2455 = vsel %vm698, %v2436, 0
        %2457 = vmatprep.subr.bf16.mxu0 0
        %2458 = vmatpush1.bf16.msra.mxu0 0
        %2459 = vmatprep.subr.bf16.mxu0 0
        %2460 = vmatpush1.bf16.msra.mxu0 0
        %2461 = vmatprep.subr.bf16.mxu0 0
        %2462 = vmatpush1.bf16.msra.mxu0 0
        %2463 = vmatprep.subr.bf16.mxu0 0
        %2464 = vmatpush1.bf16.msra.mxu0 0
        %2465 = vmatprep.subr.bf16.mxu0 0
        %2466 = vmatpush1.bf16.msra.mxu0 0
        %2467 = vmatprep.subr.bf16.mxu0 0
        %2468 = vmatpush1.bf16.msra.mxu0 0
        %2469 = vmatprep.subr.bf16.mxu0 0
        %2470 = vmatpush1.bf16.msra.mxu0 %v2451
        %2471 = vmatprep.subr.bf16.mxu0 0
        %2472 = vmatpush1.bf16.msra.mxu0 %v2450
        %2473 = vmatprep.subr.bf16.mxu0 0
        %2474 = vmatpush2.bf16.msra.mxu0 0
        %2475 = vmatprep.subr.bf16.mxu0 0
        %2476 = vmatpush2.bf16.msra.mxu0 0
        %2477 = vmatprep.subr.bf16.mxu0 0
        %2478 = vmatpush2.bf16.msra.mxu0 0
        %2479 = vmatprep.subr.bf16.mxu0 0
        %2480 = vmatpush2.bf16.msra.mxu0 0
        %2481 = vmatprep.subr.bf16.mxu0 0
        %2482 = vmatpush2.bf16.msra.mxu0 0
        %2483 = vmatprep.subr.bf16.mxu0 0
        %2484 = vmatpush2.bf16.msra.mxu0 0
        %2485 = vmatprep.subr.bf16.mxu0 0
        %2486 = vmatpush2.bf16.msra.mxu0 0
        %2487 = vmatprep.subr.bf16.mxu0 0
        %2488 = vmatpush2.bf16.msra.mxu0 0
        %2489 = vmatprep.mubr.bf16.mxu0 0
        %2490 = vmatmul.mubr.bf16.gmra.mxu0 %v2455
        %v2491 = vpop.f32.mrf.mxu0
        %v2492 = vadd.f32 %v2441, %v2491
        %v2493 = vpop.f32.mrf.mxu0
        %v2494 = vpop.f32.mrf.mxu0
        %v2495 = vpop.f32.mrf.mxu0
        %2496 = vdwg.mxu0
        %v2497 = vmul.f32 %v2492, 0.5
        %v2498 = vrcp.pop 1.4142135
        %v2499 = vmul.f32 %v2492, %v2498
        %v2500 = verf.f32.pop %v2499
        %v2501 = vadd.f32 %v2500, 1.0
        %v2502 = vmul.f32 %v2497, %v2501
        %v2503 = vadd.f32 %v2502, %v2435
        %v2504 = vpack.c.bf16 %v2503, %v2503
        %v2505 = vld [vmem:[%s18] sm:$0xf]
        %v2506 = vld [vmem:[%s18 + $0x4] sm:$0xf]
        %v2507 = vld [vmem:[%s18 + $0x8] sm:$0xf]
        %v2508 = vld [vmem:[%s18 + $0xc] sm:$0xf]
        %v2509 = vld [vmem:[%s19] sm:$0x1]
        %v2514 = vunpack.c.l.b16 %v2505
        %v2515 = vunpack.c.l.b16 %v2506
        %v2516 = vunpack.c.l.b16 %v2507
        %v2517 = vunpack.c.l.b16 %v2508
        %v2518 = vpack.c.b16 %v2515, %v2514
        %v2519 = vpack.c.b16 %v2517, %v2516
        %v2523 = vsel %vm698, %v2504, 0
        %2525 = vmatprep.subr.bf16.mxu0 0
        %2526 = vmatpush1.bf16.msra.mxu0 0
        %2527 = vmatprep.subr.bf16.mxu0 0
        %2528 = vmatpush1.bf16.msra.mxu0 0
        %2529 = vmatprep.subr.bf16.mxu0 0
        %2530 = vmatpush1.bf16.msra.mxu0 0
        %2531 = vmatprep.subr.bf16.mxu0 0
        %2532 = vmatpush1.bf16.msra.mxu0 0
        %2533 = vmatprep.subr.bf16.mxu0 0
        %2534 = vmatpush1.bf16.msra.mxu0 0
        %2535 = vmatprep.subr.bf16.mxu0 0
        %2536 = vmatpush1.bf16.msra.mxu0 0
        %2537 = vmatprep.subr.bf16.mxu0 0
        %2538 = vmatpush1.bf16.msra.mxu0 %v2519
        %2539 = vmatprep.subr.bf16.mxu0 0
        %2540 = vmatpush1.bf16.msra.mxu0 %v2518
        %2541 = vmatprep.subr.bf16.mxu0 0
        %2542 = vmatpush2.bf16.msra.mxu0 0
        %2543 = vmatprep.subr.bf16.mxu0 0
        %2544 = vmatpush2.bf16.msra.mxu0 0
        %2545 = vmatprep.subr.bf16.mxu0 0
        %2546 = vmatpush2.bf16.msra.mxu0 0
        %2547 = vmatprep.subr.bf16.mxu0 0
        %2548 = vmatpush2.bf16.msra.mxu0 0
        %2549 = vmatprep.subr.bf16.mxu0 0
        %2550 = vmatpush2.bf16.msra.mxu0 0
        %2551 = vmatprep.subr.bf16.mxu0 0
        %2552 = vmatpush2.bf16.msra.mxu0 0
        %2553 = vmatprep.subr.bf16.mxu0 0
        %2554 = vmatpush2.bf16.msra.mxu0 0
        %2555 = vmatprep.subr.bf16.mxu0 0
        %2556 = vmatpush2.bf16.msra.mxu0 0
        %2557 = vmatprep.mubr.bf16.mxu0 0
        %2558 = vmatmul.mubr.bf16.gmra.mxu0 %v2523
        %v2559 = vpop.f32.mrf.mxu0
        %v2560 = vadd.f32 %v2509, %v2559
        %v2561 = vpop.f32.mrf.mxu0
        %v2562 = vpop.f32.mrf.mxu0
        %v2563 = vpop.f32.mrf.mxu0
        %2564 = vdwg.mxu0
        %v2565 = vmul.f32 %v2560, 0.5
        %v2566 = vmul.f32 %v2560, %v2498
        %v2567 = verf.f32.pop %v2566
        %v2568 = vadd.f32 %v2567, 1.0
        %v2569 = vmul.f32 %v2565, %v2568
        %v2570 = vpack.c.bf16 %v2569, %v2569
        %v2571 = vld [vmem:[%s20] sm:$0xf]
        %v2572 = vld [vmem:[%s20 + $0x4] sm:$0xf]
        %v2573 = vld [vmem:[%s21] sm:$0x1]
        %v2576 = vunpack.c.l.b16 %v2571
        %v2577 = vunpack.c.l.b16 %v2572
        %v2578 = vpack.c.b16 %v2577, %v2576
        %v2581 = vsel %vm1265, %v2570, 0
        %2583 = vmatprep.subr.bf16.mxu0 0
        %2584 = vmatpush1.bf16.msra.mxu0 0
        %2585 = vmatprep.subr.bf16.mxu0 0
        %2586 = vmatpush1.bf16.msra.mxu0 0
        %2587 = vmatprep.subr.bf16.mxu0 0
        %2588 = vmatpush1.bf16.msra.mxu0 0
        %2589 = vmatprep.subr.bf16.mxu0 0
        %2590 = vmatpush1.bf16.msra.mxu0 0
        %2591 = vmatprep.subr.bf16.mxu0 0
        %2592 = vmatpush1.bf16.msra.mxu0 0
        %2593 = vmatprep.subr.bf16.mxu0 0
        %2594 = vmatpush1.bf16.msra.mxu0 0
        %2595 = vmatprep.subr.bf16.mxu0 0
        %2596 = vmatpush1.bf16.msra.mxu0 0
        %2597 = vmatprep.subr.bf16.mxu0 0
        %2598 = vmatpush1.bf16.msra.mxu0 %v2578
        %2599 = vmatprep.subr.bf16.mxu0 0
        %2600 = vmatpush2.bf16.msra.mxu0 0
        %2601 = vmatprep.subr.bf16.mxu0 0
        %2602 = vmatpush2.bf16.msra.mxu0 0
        %2603 = vmatprep.subr.bf16.mxu0 0
        %2604 = vmatpush2.bf16.msra.mxu0 0
        %2605 = vmatprep.subr.bf16.mxu0 0
        %2606 = vmatpush2.bf16.msra.mxu0 0
        %2607 = vmatprep.subr.bf16.mxu0 0
        %2608 = vmatpush2.bf16.msra.mxu0 0
        %2609 = vmatprep.subr.bf16.mxu0 0
        %2610 = vmatpush2.bf16.msra.mxu0 0
        %2611 = vmatprep.subr.bf16.mxu0 0
        %2612 = vmatpush2.bf16.msra.mxu0 0
        %2613 = vmatprep.subr.bf16.mxu0 0
        %2614 = vmatpush2.bf16.msra.mxu0 0
        %2615 = vmatprep.mubr.bf16.mxu0 0
        %2616 = vmatmul.mubr.bf16.gmra.mxu0 %v2581
        %v2617 = vpop.f32.mrf.mxu0
        %v2618 = vadd.f32 %v2573, %v2617
        %v2619 = vpop.f32.mrf.mxu0
        %v2620 = vpop.f32.mrf.mxu0
        %v2621 = vpop.f32.mrf.mxu0
        %2622 = vdwg.mxu0
        %vm2623 = vcmask 8192
        %2624 = vst.msk [vmem:[%s684] sm:$0x1] %vm2623, %v2618
        %s2625 = sand.u32 %s516, 1
        %s2626 = scalar_lea.sflag [#allocation3], %s2625
        %s2627 = sand.u32 %s516, 1
        %s2628 = scalar_lea.vmem [#allocation2], %s2627
        // Predicated region
        $region109: #{tpu_custom_call.1} parent=107 // pred_check
          %p2629 = pneg %p526
        $region110: #{tpu_custom_call.1} parent=107 // pred_check_branch
          %2631 = sbr.rel (%p2629) target = $region112
        $region111: #{tpu_custom_call.1} parent=107 // pred_region
          %s2633 = ssub.s32 16, 16
          %2634 = vsyncadd %s2626, %s2633
          %s2635 = smul.addr %s36, 16
          %s2636 = scalar_lea.hbm %s22, %s2635
          %s2638 = sshll.u32 %s2628, 4
          %s2639 = int_to_ptr.vmem [resolvable:$true] %s2638
          %2641 = dma.vmem_to_hbm [thread:$0]  %s2639, 16, %s2636, %s2626
        $region112: #{tpu_custom_call.1} parent=107 // pred_fallthru
          _
      $region108: #{tpu_custom_call.1} parent=5 // pred_fallthru
        _
      %p2642 = scmp.le.s32.totalorder 2, %s31
      // Predicated region
      $region113: #{tpu_custom_call.1} parent=5 // pred_check
        %p2643 = pneg %p2642
      $region114: #{tpu_custom_call.1} parent=5 // pred_check_branch
        %2645 = sbr.rel (%p2643) target = $region116
      $region115: #{tpu_custom_call.1} parent=5 // pred_region
        %s2646 = ssub.s32 %s31, 2
        // Predicated region
        $region117: #{tpu_custom_call.1} parent=115 // pred_check
          %p2647 = pneg %p532
        $region118: #{tpu_custom_call.1} parent=115 // pred_check_branch
          %2649 = sbr.rel (%p2647) target = $region120
        $region119: #{tpu_custom_call.1} parent=115 // pred_region
          %s2650 = sand.u32 %s517, 1
          %s2651 = scalar_lea.sflag [#allocation3], %s2650
          %s2652 = sand.u32 %s517, 1
          %s2653 = scalar_lea.vmem [#allocation2], %s2652
          %2654 = dma.done %s2651, 16
        $region120: #{tpu_custom_call.1} parent=115 // pred_fallthru
          _
      $region116: #{tpu_custom_call.1} parent=5 // pred_fallthru
        _
    $region6: #{tpu_custom_call.1} parent=1 // loop_footer
      %s35 = sadd.s32 1, %s31
    $region7: #{tpu_custom_call.1} parent=1 // loop_footer_branch
      %30 = sbr.rel target = $region3
    $region8: #{tpu_custom_call.1} parent=1 // loop_exit
      _
    %2655 = vsyncpa [#allocation3], 1
    %s2656 = scalar_lea.sflag [#allocation3], 1
    %2657 = vsyncpa %s2656, 1

</llo_original>
